<compile_context>
chip_gen: v7x
topology: tpu7x:2x2x1
jax: 0.10.0
libtpu: 0.0.40
codegen_flags: <defaults>
</compile_context>

<pallas_src>
import jax
import jax.numpy as jnp
from jax.experimental import pallas as pl
from jax.experimental.pallas import tpu as pltpu


# ----------------------------------------------------------------------------
# Parameter prep: pack / transpose / zero-pad all weights once (not per call).
# ----------------------------------------------------------------------------
def prepare_params(params, kernel_size=2):
    blocks = params["blocks"]
    widths = [blocks[0]["w1"].shape[1]] + [b["w1"].shape[0] for b in blocks]
    CP = ((max(widths) + 127) // 128) * 128          # padded channel width
    O = params["w_fc"].shape[0]
    OP = ((O + 127) // 128) * 128                    # padded head output width

    def pack_conv_w(w):   # (c_out, c_in, k) -> (k, CP, CP) bf16, [j, ci, co]
        c_out, c_in, k = w.shape
        wp = jnp.zeros((k, CP, CP), jnp.float32)
        wp = wp.at[:, :c_in, :c_out].set(jnp.transpose(w, (2, 1, 0)))
        return wp.astype(jnp.bfloat16)

    def pack_bias(b):     # (c,) -> (1, CP) f32
        return jnp.zeros((1, CP), jnp.float32).at[0, : b.shape[0]].set(b)

    levels, has_down = [], []
    for blk in blocks:
        c_out, c_in, k = blk["w1"].shape
        assert k == kernel_size
        lw = {
            "w1": pack_conv_w(blk["w1"]), "b1": pack_bias(blk["b1"]),
            "w2": pack_conv_w(blk["w2"]), "b2": pack_bias(blk["b2"]),
        }
        if c_in != c_out:
            wd = jnp.zeros((CP, CP), jnp.float32)
            wd = wd.at[:c_in, :c_out].set(blk["wd"][:, :, 0].T)
            lw["wd"] = wd.astype(jnp.bfloat16)
            lw["bd"] = pack_bias(blk["bd"])
            has_down.append(True)
        else:
            has_down.append(False)
        levels.append(lw)

    H = params["w_fc"].shape[1]
    wfc = jnp.zeros((CP, OP), jnp.float32).at[:H, :O].set(params["w_fc"].T)
    bfc = jnp.zeros((1, OP), jnp.float32).at[0, :O].set(params["b_fc"])

    return {
        "levels": levels,
        "has_down": tuple(has_down),
        "dilations": tuple(2 ** i for i in range(len(blocks))),
        "kernel_size": kernel_size,
        "wfc": wfc.astype(jnp.bfloat16),
        "bfc": bfc,
        "CP": CP,
        "OP": OP,
        "output_size": O,
    }


# ----------------------------------------------------------------------------
# Fused TCN kernel: all TemporalBlocks + Linear head in one body.
# ----------------------------------------------------------------------------
def make_fused_tcn_kernel(num_levels, has_down, dilations, kernel_size,
                          R, Bg_pad, CP):
    k = kernel_size

    def kernel(*refs):
        x_ref = refs[0]
        idx = 1
        level_refs = []
        for lvl in range(num_levels):
            n = 6 if has_down[lvl] else 4
            level_refs.append(refs[idx: idx + n])
            idx += n
        wfc_ref, bfc_ref = refs[idx], refs[idx + 1]
        out_ref = refs[idx + 2]

        def causal_conv(v_f32, w_ref, b_ref, dil):
            # Per-tap dot on the un-shifted input, then row-shifted accumulate
            # of the outputs.  Shifts are multiples of Bg_pad (>=8) rows, so
            # they are pure sublane-tile re-indexing (no relayout).
            vb = v_f32.astype(jnp.bfloat16)
            acc = None
            for j in range(k):
                z = jnp.dot(vb, w_ref[j], preferred_element_type=jnp.float32)
                s = (k - 1 - j) * dil * Bg_pad
                if s > 0:
                    if s >= R:
                        z = jnp.zeros((R, CP), jnp.float32)
                    else:
                        z = jnp.concatenate(
                            [jnp.zeros((s, CP), jnp.float32), z[: R - s, :]],
                            axis=0)
                acc = z if acc is None else acc + z
            return acc + b_ref[...]          # bias add / ReLU in f32

        h = x_ref[...]                       # (R, CP) f32, VMEM-resident
        for lvl in range(num_levels):
            dil = dilations[lvl]
            if has_down[lvl]:
                w1_r, b1_r, w2_r, b2_r, wd_r, bd_r = level_refs[lvl]
            else:
                w1_r, b1_r, w2_r, b2_r = level_refs[lvl]

            h1 = jnp.maximum(causal_conv(h, w1_r, b1_r, dil), 0.0)
            # dropout1: inference-mode identity
            h2 = jnp.maximum(causal_conv(h1, w2_r, b2_r, dil), 0.0)
            # dropout2: inference-mode identity

            if has_down[lvl]:
                res = (jnp.dot(h.astype(jnp.bfloat16), wd_r[...],
                               preferred_element_type=jnp.float32)
                       + bd_r[...])
            else:
                res = h                      # padded channels stay exactly 0
            h = jnp.maximum(h2 + res, 0.0)

        # Linear head on the last time step (rows of t = T-1), lane-dense out.
        h_last = h[R - Bg_pad:, :]           # (Bg_pad, CP)
        out = (jnp.dot(h_last.astype(jnp.bfloat16), wfc_ref[...],
                       preferred_element_type=jnp.float32) + bfc_ref[...])
        out_ref[...] = out.astype(out_ref.dtype)

    return kernel


# ----------------------------------------------------------------------------
# Forward wrapper: layout plumbing + single pallas_call.
# ----------------------------------------------------------------------------
def tcn_forward(x, prepared, *, num_batch_groups=1):
    """x: (B, T, input_size).  Returns (B, output_size)."""
    B, T, I = x.shape
    CP, OP = prepared["CP"], prepared["OP"]
    k = prepared["kernel_size"]
    G = max(1, min(num_batch_groups, B))
    Bg = -(-B // G)                               # batch elems per group
    Bg_pad = max(8, ((Bg + 7) // 8) * 8)          # sublane-aligned batch pad
    R = T * Bg_pad                                # rows per group (time-major)

    # Input layout per group: time-major (T*Bg_pad, CP), channels lane-dense.
    xs, counts = [], []
    for g in range(G):
        xg = x[g * Bg: min((g + 1) * Bg, B)].astype(jnp.float32)
        counts.append(xg.shape[0])
        xg = jnp.pad(xg, ((0, Bg_pad - xg.shape[0]), (0, 0), (0, CP - I)))
        xs.append(jnp.transpose(xg, (1, 0, 2)).reshape(R, CP))
    x_packed = jnp.stack(xs, axis=0)              # (G, R, CP)

    # Flatten operands (weights were packed once in prepare_params).
    args = [x_packed]
    in_specs = [pl.BlockSpec((None, R, CP), lambda g: (g, 0, 0))]

    def add_full(a):
        args.append(a)
        nd = a.ndim
        in_specs.append(pl.BlockSpec(a.shape, lambda g, _n=nd: (0,) * _n))

    for lvl, lw in enumerate(prepared["levels"]):
        add_full(lw["w1"]); add_full(lw["b1"])
        add_full(lw["w2"]); add_full(lw["b2"])
        if prepared["has_down"][lvl]:
            add_full(lw["wd"]); add_full(lw["bd"])
    add_full(prepared["wfc"]); add_full(prepared["bfc"])

    kernel = make_fused_tcn_kernel(
        num_levels=len(prepared["levels"]),
        has_down=prepared["has_down"],
        dilations=prepared["dilations"],
        kernel_size=k, R=R, Bg_pad=Bg_pad, CP=CP)

    out = pl.pallas_call(
        kernel,
        grid=(G,),
        in_specs=in_specs,
        out_specs=pl.BlockSpec((None, Bg_pad, OP), lambda g: (g, 0, 0)),
        out_shape=jax.ShapeDtypeStruct((G, Bg_pad, OP), jnp.float32),
        compiler_params=pltpu.CompilerParams(
            dimension_semantics=("parallel",),      # batch groups -> both TCs on v7x
            vmem_limit_bytes=32 * 1024 * 1024),
    )(*args)

    O = prepared["output_size"]
    ys = [out[g, :counts[g], :O] for g in range(G)]
    return jnp.concatenate(ys, axis=0)


# ----------------------------------------------------------------------------
# Pure-JAX f32 reference mirroring the PyTorch module (eval mode).
# ----------------------------------------------------------------------------
def tcn_reference(x, params, *, kernel_size=2):
    B, T, I = x.shape
    h = x.astype(jnp.float32)                     # (B, T, C) channels-last
    for level, blk in enumerate(params["blocks"]):
        d = 2 ** level
        c_out, c_in, k = blk["w1"].shape

        def causal_conv(v, w, b):
            y = jnp.broadcast_to(b, (B, T, w.shape[0])).astype(jnp.float32)
            for j in range(w.shape[2]):
                s = (w.shape[2] - 1 - j) * d
                vs = jnp.pad(v, ((0, 0), (s, 0), (0, 0)))[:, :T, :]
                y = y + jnp.einsum("btc,oc->bto", vs, w[:, :, j])
            return y

        out1 = jax.nn.relu(causal_conv(h, blk["w1"], blk["b1"]))
        out2 = jax.nn.relu(causal_conv(out1, blk["w2"], blk["b2"]))
        if c_in != c_out:
            res = jnp.einsum("btc,oc->bto", h, blk["wd"][:, :, 0]) + blk["bd"]
        else:
            res = h
        h = jax.nn.relu(out2 + res)
    return h[:, -1, :] @ params["w_fc"].T + params["b_fc"]


# ----------------------------------------------------------------------------
# Deterministic param init (PyTorch shapes).
# ----------------------------------------------------------------------------
def init_params(key, input_size, output_size, num_channels, kernel_size=2):
    keys = jax.random.split(key, 6 * len(num_channels) + 2)
    blocks = []
    c_in = input_size
    idx = 0
    for c_out in num_channels:
        ks = keys[idx: idx + 6]
        idx += 6
        blk = {
            "w1": 0.05 * jax.random.normal(ks[0], (c_out, c_in, kernel_size), jnp.float32),
            "b1": 0.10 * jax.random.normal(ks[1], (c_out,), jnp.float32),
            "w2": 0.05 * jax.random.normal(ks[2], (c_out, c_out, kernel_size), jnp.float32),
            "b2": 0.10 * jax.random.normal(ks[3], (c_out,), jnp.float32),
        }
        if c_in != c_out:
            blk["wd"] = 0.05 * jax.random.normal(ks[4], (c_out, c_in, 1), jnp.float32)
            blk["bd"] = 0.10 * jax.random.normal(ks[5], (c_out,), jnp.float32)
        blocks.append(blk)
        c_in = c_out
    bound = 1.0 / jnp.sqrt(jnp.float32(c_in))
    w_fc = jax.random.uniform(keys[idx], (output_size, c_in), jnp.float32, -bound, bound)
    b_fc = jax.random.uniform(keys[idx + 1], (output_size,), jnp.float32, -bound, bound)
    return {"blocks": blocks, "w_fc": w_fc, "b_fc": b_fc}


if __name__ == "__main__":
    # Small shapes consistent with the module:
    #   x: (batch=2, seq=16, input_size=8), num_channels=(16, 16, 32), output=4
    B, T, I, O = 2, 16, 8, 4
    num_channels = (16, 16, 32)
    kernel_size = 2

    key = jax.random.PRNGKey(0)
    k_x, k_p = jax.random.split(key)
    x = jax.random.normal(k_x, (B, T, I), jnp.float32)
    params = init_params(k_p, I, O, num_channels, kernel_size)
    prepared = prepare_params(params, kernel_size=kernel_size)

    out = tcn_forward(x, prepared, num_batch_groups=2)
    out = jax.block_until_ready(out)

    ref = tcn_reference(x, params, kernel_size=kernel_size)
    assert out.shape == (B, O), out.shape
    # bf16 matmul operands with f32 accumulation -> relaxed tolerance.
    assert jnp.allclose(out, ref, atol=5e-2, rtol=5e-2), (out, ref)

    print("KERNEL_OK")
</pallas_src>

<mosaic_0001>
module attributes {stable_mosaic.version = 11 : i64} {
  func.func @kernel(%arg0: i32, %arg1: memref<1x128x128xf32, #tpu.memory_space<vmem>>, %arg2: memref<2x128x128xbf16, #tpu.memory_space<vmem>>, %arg3: memref<1x128xf32, #tpu.memory_space<vmem>>, %arg4: memref<2x128x128xbf16, #tpu.memory_space<vmem>>, %arg5: memref<1x128xf32, #tpu.memory_space<vmem>>, %arg6: memref<128x128xbf16, #tpu.memory_space<vmem>>, %arg7: memref<1x128xf32, #tpu.memory_space<vmem>>, %arg8: memref<2x128x128xbf16, #tpu.memory_space<vmem>>, %arg9: memref<1x128xf32, #tpu.memory_space<vmem>>, %arg10: memref<2x128x128xbf16, #tpu.memory_space<vmem>>, %arg11: memref<1x128xf32, #tpu.memory_space<vmem>>, %arg12: memref<2x128x128xbf16, #tpu.memory_space<vmem>>, %arg13: memref<1x128xf32, #tpu.memory_space<vmem>>, %arg14: memref<2x128x128xbf16, #tpu.memory_space<vmem>>, %arg15: memref<1x128xf32, #tpu.memory_space<vmem>>, %arg16: memref<128x128xbf16, #tpu.memory_space<vmem>>, %arg17: memref<1x128xf32, #tpu.memory_space<vmem>>, %arg18: memref<128x128xbf16, #tpu.memory_space<vmem>>, %arg19: memref<1x128xf32, #tpu.memory_space<vmem>>, %arg20: memref<1x8x128xf32, #tpu.memory_space<vmem>>) attributes {dimension_semantics = [#tpu.dimension_semantics<parallel>], iteration_bounds = array<i64: 2>, scalar_prefetch = 0 : i64, scratch_operands = 0 : i64, tpu.core_type = #tpu.core_type<tc>, window_params = [{transform_indices = @transform_0, window_bounds = array<i64: 1, 128, 128>}, {pipeline_mode = #tpu.pipeline_mode<synchronous>, transform_indices = @transform_1, window_bounds = array<i64: 2, 128, 128>}, {pipeline_mode = #tpu.pipeline_mode<synchronous>, transform_indices = @transform_2, window_bounds = array<i64: 1, 128>}, {pipeline_mode = #tpu.pipeline_mode<synchronous>, transform_indices = @transform_3, window_bounds = array<i64: 2, 128, 128>}, {pipeline_mode = #tpu.pipeline_mode<synchronous>, transform_indices = @transform_4, window_bounds = array<i64: 1, 128>}, {pipeline_mode = #tpu.pipeline_mode<synchronous>, transform_indices = @transform_5, window_bounds = array<i64: 128, 128>}, {pipeline_mode = #tpu.pipeline_mode<synchronous>, transform_indices = @transform_6, window_bounds = array<i64: 1, 128>}, {pipeline_mode = #tpu.pipeline_mode<synchronous>, transform_indices = @transform_7, window_bounds = array<i64: 2, 128, 128>}, {pipeline_mode = #tpu.pipeline_mode<synchronous>, transform_indices = @transform_8, window_bounds = array<i64: 1, 128>}, {pipeline_mode = #tpu.pipeline_mode<synchronous>, transform_indices = @transform_9, window_bounds = array<i64: 2, 128, 128>}, {pipeline_mode = #tpu.pipeline_mode<synchronous>, transform_indices = @transform_10, window_bounds = array<i64: 1, 128>}, {pipeline_mode = #tpu.pipeline_mode<synchronous>, transform_indices = @transform_11, window_bounds = array<i64: 2, 128, 128>}, {pipeline_mode = #tpu.pipeline_mode<synchronous>, transform_indices = @transform_12, window_bounds = array<i64: 1, 128>}, {pipeline_mode = #tpu.pipeline_mode<synchronous>, transform_indices = @transform_13, window_bounds = array<i64: 2, 128, 128>}, {pipeline_mode = #tpu.pipeline_mode<synchronous>, transform_indices = @transform_14, window_bounds = array<i64: 1, 128>}, {pipeline_mode = #tpu.pipeline_mode<synchronous>, transform_indices = @transform_15, window_bounds = array<i64: 128, 128>}, {pipeline_mode = #tpu.pipeline_mode<synchronous>, transform_indices = @transform_16, window_bounds = array<i64: 1, 128>}, {pipeline_mode = #tpu.pipeline_mode<synchronous>, transform_indices = @transform_17, window_bounds = array<i64: 128, 128>}, {pipeline_mode = #tpu.pipeline_mode<synchronous>, transform_indices = @transform_18, window_bounds = array<i64: 1, 128>}, {transform_indices = @transform_19, window_bounds = array<i64: 1, 8, 128>}]} {
    %c0 = arith.constant 0 : index
    %c0_0 = arith.constant 0 : index
    %c0_1 = arith.constant 0 : index
    %0 = vector.load %arg1[%c0, %c0_0, %c0_1] : memref<1x128x128xf32, #tpu.memory_space<vmem>>, vector<1x128x128xf32>
    %1 = vector.shape_cast %0 : vector<1x128x128xf32> to vector<128x128xf32>
    %2 = arith.truncf %1 : vector<128x128xf32> to vector<128x128xbf16>
    %c0_2 = arith.constant 0 : index
    %c0_3 = arith.constant 0 : index
    %c0_4 = arith.constant 0 : index
    %3 = vector.load %arg2[%c0_2, %c0_3, %c0_4] : memref<2x128x128xbf16, #tpu.memory_space<vmem>>, vector<1x128x128xbf16>
    %4 = vector.shape_cast %3 : vector<1x128x128xbf16> to vector<128x128xbf16>
    %cst = arith.constant dense<0.000000e+00> : vector<128x128xf32>
    %5 = tpu.matmul %2, %4, %cst {dimension_numbers = #tpu.dot_dimension_numbers<[1], [0], [0], [1], [0, 0, 1, 1], [], []>} : vector<128x128xbf16>, vector<128x128xbf16>, vector<128x128xf32> -> vector<128x128xf32>
    %cst_5 = arith.constant 0.000000e+00 : f32
    %6 = vector.broadcast %cst_5 : f32 to vector<8x128xf32>
    %7 = vector.extract_strided_slice %5 {offsets = [0, 0], sizes = [120, 128], strides = [1, 1]} : vector<128x128xf32> to vector<120x128xf32>
    %8 = tpu.concatenate %6, %7 in 0 : vector<8x128xf32>, vector<120x128xf32> -> vector<128x128xf32>
    %c1 = arith.constant 1 : index
    %c0_6 = arith.constant 0 : index
    %c0_7 = arith.constant 0 : index
    %9 = vector.load %arg2[%c1, %c0_6, %c0_7] : memref<2x128x128xbf16, #tpu.memory_space<vmem>>, vector<1x128x128xbf16>
    %10 = vector.shape_cast %9 : vector<1x128x128xbf16> to vector<128x128xbf16>
    %cst_8 = arith.constant dense<0.000000e+00> : vector<128x128xf32>
    %11 = tpu.matmul %2, %10, %cst_8 {dimension_numbers = #tpu.dot_dimension_numbers<[1], [0], [0], [1], [0, 0, 1, 1], [], []>} : vector<128x128xbf16>, vector<128x128xbf16>, vector<128x128xf32> -> vector<128x128xf32>
    %12 = arith.addf %8, %11 : vector<128x128xf32>
    %c0_9 = arith.constant 0 : index
    %c0_10 = arith.constant 0 : index
    %13 = vector.load %arg3[%c0_9, %c0_10] : memref<1x128xf32, #tpu.memory_space<vmem>>, vector<1x128xf32>
    %14 = vector.broadcast %13 : vector<1x128xf32> to vector<128x128xf32>
    %15 = arith.addf %12, %14 : vector<128x128xf32>
    %cst_11 = arith.constant 0.000000e+00 : f32
    %16 = vector.broadcast %cst_11 : f32 to vector<128x128xf32>
    %17 = arith.maximumf %15, %16 : vector<128x128xf32>
    %18 = arith.truncf %17 : vector<128x128xf32> to vector<128x128xbf16>
    %c0_12 = arith.constant 0 : index
    %c0_13 = arith.constant 0 : index
    %c0_14 = arith.constant 0 : index
    %19 = vector.load %arg4[%c0_12, %c0_13, %c0_14] : memref<2x128x128xbf16, #tpu.memory_space<vmem>>, vector<1x128x128xbf16>
    %20 = vector.shape_cast %19 : vector<1x128x128xbf16> to vector<128x128xbf16>
    %cst_15 = arith.constant dense<0.000000e+00> : vector<128x128xf32>
    %21 = tpu.matmul %18, %20, %cst_15 {dimension_numbers = #tpu.dot_dimension_numbers<[1], [0], [0], [1], [0, 0, 1, 1], [], []>} : vector<128x128xbf16>, vector<128x128xbf16>, vector<128x128xf32> -> vector<128x128xf32>
    %cst_16 = arith.constant 0.000000e+00 : f32
    %22 = vector.broadcast %cst_16 : f32 to vector<8x128xf32>
    %23 = vector.extract_strided_slice %21 {offsets = [0, 0], sizes = [120, 128], strides = [1, 1]} : vector<128x128xf32> to vector<120x128xf32>
    %24 = tpu.concatenate %22, %23 in 0 : vector<8x128xf32>, vector<120x128xf32> -> vector<128x128xf32>
    %c1_17 = arith.constant 1 : index
    %c0_18 = arith.constant 0 : index
    %c0_19 = arith.constant 0 : index
    %25 = vector.load %arg4[%c1_17, %c0_18, %c0_19] : memref<2x128x128xbf16, #tpu.memory_space<vmem>>, vector<1x128x128xbf16>
    %26 = vector.shape_cast %25 : vector<1x128x128xbf16> to vector<128x128xbf16>
    %cst_20 = arith.constant dense<0.000000e+00> : vector<128x128xf32>
    %27 = tpu.matmul %18, %26, %cst_20 {dimension_numbers = #tpu.dot_dimension_numbers<[1], [0], [0], [1], [0, 0, 1, 1], [], []>} : vector<128x128xbf16>, vector<128x128xbf16>, vector<128x128xf32> -> vector<128x128xf32>
    %28 = arith.addf %24, %27 : vector<128x128xf32>
    %c0_21 = arith.constant 0 : index
    %c0_22 = arith.constant 0 : index
    %29 = vector.load %arg5[%c0_21, %c0_22] : memref<1x128xf32, #tpu.memory_space<vmem>>, vector<1x128xf32>
    %30 = vector.broadcast %29 : vector<1x128xf32> to vector<128x128xf32>
    %31 = arith.addf %28, %30 : vector<128x128xf32>
    %cst_23 = arith.constant 0.000000e+00 : f32
    %32 = vector.broadcast %cst_23 : f32 to vector<128x128xf32>
    %33 = arith.maximumf %31, %32 : vector<128x128xf32>
    %34 = arith.truncf %1 : vector<128x128xf32> to vector<128x128xbf16>
    %c0_24 = arith.constant 0 : index
    %c0_25 = arith.constant 0 : index
    %35 = vector.load %arg6[%c0_24, %c0_25] : memref<128x128xbf16, #tpu.memory_space<vmem>>, vector<128x128xbf16>
    %cst_26 = arith.constant dense<0.000000e+00> : vector<128x128xf32>
    %36 = tpu.matmul %34, %35, %cst_26 {dimension_numbers = #tpu.dot_dimension_numbers<[1], [0], [0], [1], [0, 0, 1, 1], [], []>} : vector<128x128xbf16>, vector<128x128xbf16>, vector<128x128xf32> -> vector<128x128xf32>
    %c0_27 = arith.constant 0 : index
    %c0_28 = arith.constant 0 : index
    %37 = vector.load %arg7[%c0_27, %c0_28] : memref<1x128xf32, #tpu.memory_space<vmem>>, vector<1x128xf32>
    %38 = vector.broadcast %37 : vector<1x128xf32> to vector<128x128xf32>
    %39 = arith.addf %36, %38 : vector<128x128xf32>
    %40 = arith.addf %33, %39 : vector<128x128xf32>
    %cst_29 = arith.constant 0.000000e+00 : f32
    %41 = vector.broadcast %cst_29 : f32 to vector<128x128xf32>
    %42 = arith.maximumf %40, %41 : vector<128x128xf32>
    %43 = arith.truncf %42 : vector<128x128xf32> to vector<128x128xbf16>
    %c0_30 = arith.constant 0 : index
    %c0_31 = arith.constant 0 : index
    %c0_32 = arith.constant 0 : index
    %44 = vector.load %arg8[%c0_30, %c0_31, %c0_32] : memref<2x128x128xbf16, #tpu.memory_space<vmem>>, vector<1x128x128xbf16>
    %45 = vector.shape_cast %44 : vector<1x128x128xbf16> to vector<128x128xbf16>
    %cst_33 = arith.constant dense<0.000000e+00> : vector<128x128xf32>
    %46 = tpu.matmul %43, %45, %cst_33 {dimension_numbers = #tpu.dot_dimension_numbers<[1], [0], [0], [1], [0, 0, 1, 1], [], []>} : vector<128x128xbf16>, vector<128x128xbf16>, vector<128x128xf32> -> vector<128x128xf32>
    %cst_34 = arith.constant 0.000000e+00 : f32
    %47 = vector.broadcast %cst_34 : f32 to vector<16x128xf32>
    %48 = vector.extract_strided_slice %46 {offsets = [0, 0], sizes = [112, 128], strides = [1, 1]} : vector<128x128xf32> to vector<112x128xf32>
    %49 = tpu.concatenate %47, %48 in 0 : vector<16x128xf32>, vector<112x128xf32> -> vector<128x128xf32>
    %c1_35 = arith.constant 1 : index
    %c0_36 = arith.constant 0 : index
    %c0_37 = arith.constant 0 : index
    %50 = vector.load %arg8[%c1_35, %c0_36, %c0_37] : memref<2x128x128xbf16, #tpu.memory_space<vmem>>, vector<1x128x128xbf16>
    %51 = vector.shape_cast %50 : vector<1x128x128xbf16> to vector<128x128xbf16>
    %cst_38 = arith.constant dense<0.000000e+00> : vector<128x128xf32>
    %52 = tpu.matmul %43, %51, %cst_38 {dimension_numbers = #tpu.dot_dimension_numbers<[1], [0], [0], [1], [0, 0, 1, 1], [], []>} : vector<128x128xbf16>, vector<128x128xbf16>, vector<128x128xf32> -> vector<128x128xf32>
    %53 = arith.addf %49, %52 : vector<128x128xf32>
    %c0_39 = arith.constant 0 : index
    %c0_40 = arith.constant 0 : index
    %54 = vector.load %arg9[%c0_39, %c0_40] : memref<1x128xf32, #tpu.memory_space<vmem>>, vector<1x128xf32>
    %55 = vector.broadcast %54 : vector<1x128xf32> to vector<128x128xf32>
    %56 = arith.addf %53, %55 : vector<128x128xf32>
    %cst_41 = arith.constant 0.000000e+00 : f32
    %57 = vector.broadcast %cst_41 : f32 to vector<128x128xf32>
    %58 = arith.maximumf %56, %57 : vector<128x128xf32>
    %59 = arith.truncf %58 : vector<128x128xf32> to vector<128x128xbf16>
    %c0_42 = arith.constant 0 : index
    %c0_43 = arith.constant 0 : index
    %c0_44 = arith.constant 0 : index
    %60 = vector.load %arg10[%c0_42, %c0_43, %c0_44] : memref<2x128x128xbf16, #tpu.memory_space<vmem>>, vector<1x128x128xbf16>
    %61 = vector.shape_cast %60 : vector<1x128x128xbf16> to vector<128x128xbf16>
    %cst_45 = arith.constant dense<0.000000e+00> : vector<128x128xf32>
    %62 = tpu.matmul %59, %61, %cst_45 {dimension_numbers = #tpu.dot_dimension_numbers<[1], [0], [0], [1], [0, 0, 1, 1], [], []>} : vector<128x128xbf16>, vector<128x128xbf16>, vector<128x128xf32> -> vector<128x128xf32>
    %cst_46 = arith.constant 0.000000e+00 : f32
    %63 = vector.broadcast %cst_46 : f32 to vector<16x128xf32>
    %64 = vector.extract_strided_slice %62 {offsets = [0, 0], sizes = [112, 128], strides = [1, 1]} : vector<128x128xf32> to vector<112x128xf32>
    %65 = tpu.concatenate %63, %64 in 0 : vector<16x128xf32>, vector<112x128xf32> -> vector<128x128xf32>
    %c1_47 = arith.constant 1 : index
    %c0_48 = arith.constant 0 : index
    %c0_49 = arith.constant 0 : index
    %66 = vector.load %arg10[%c1_47, %c0_48, %c0_49] : memref<2x128x128xbf16, #tpu.memory_space<vmem>>, vector<1x128x128xbf16>
    %67 = vector.shape_cast %66 : vector<1x128x128xbf16> to vector<128x128xbf16>
    %cst_50 = arith.constant dense<0.000000e+00> : vector<128x128xf32>
    %68 = tpu.matmul %59, %67, %cst_50 {dimension_numbers = #tpu.dot_dimension_numbers<[1], [0], [0], [1], [0, 0, 1, 1], [], []>} : vector<128x128xbf16>, vector<128x128xbf16>, vector<128x128xf32> -> vector<128x128xf32>
    %69 = arith.addf %65, %68 : vector<128x128xf32>
    %c0_51 = arith.constant 0 : index
    %c0_52 = arith.constant 0 : index
    %70 = vector.load %arg11[%c0_51, %c0_52] : memref<1x128xf32, #tpu.memory_space<vmem>>, vector<1x128xf32>
    %71 = vector.broadcast %70 : vector<1x128xf32> to vector<128x128xf32>
    %72 = arith.addf %69, %71 : vector<128x128xf32>
    %cst_53 = arith.constant 0.000000e+00 : f32
    %73 = vector.broadcast %cst_53 : f32 to vector<128x128xf32>
    %74 = arith.maximumf %72, %73 : vector<128x128xf32>
    %75 = arith.addf %74, %42 : vector<128x128xf32>
    %cst_54 = arith.constant 0.000000e+00 : f32
    %76 = vector.broadcast %cst_54 : f32 to vector<128x128xf32>
    %77 = arith.maximumf %75, %76 : vector<128x128xf32>
    %78 = arith.truncf %77 : vector<128x128xf32> to vector<128x128xbf16>
    %c0_55 = arith.constant 0 : index
    %c0_56 = arith.constant 0 : index
    %c0_57 = arith.constant 0 : index
    %79 = vector.load %arg12[%c0_55, %c0_56, %c0_57] : memref<2x128x128xbf16, #tpu.memory_space<vmem>>, vector<1x128x128xbf16>
    %80 = vector.shape_cast %79 : vector<1x128x128xbf16> to vector<128x128xbf16>
    %cst_58 = arith.constant dense<0.000000e+00> : vector<128x128xf32>
    %81 = tpu.matmul %78, %80, %cst_58 {dimension_numbers = #tpu.dot_dimension_numbers<[1], [0], [0], [1], [0, 0, 1, 1], [], []>} : vector<128x128xbf16>, vector<128x128xbf16>, vector<128x128xf32> -> vector<128x128xf32>
    %cst_59 = arith.constant 0.000000e+00 : f32
    %82 = vector.broadcast %cst_59 : f32 to vector<32x128xf32>
    %83 = vector.extract_strided_slice %81 {offsets = [0, 0], sizes = [96, 128], strides = [1, 1]} : vector<128x128xf32> to vector<96x128xf32>
    %84 = tpu.concatenate %82, %83 in 0 : vector<32x128xf32>, vector<96x128xf32> -> vector<128x128xf32>
    %c1_60 = arith.constant 1 : index
    %c0_61 = arith.constant 0 : index
    %c0_62 = arith.constant 0 : index
    %85 = vector.load %arg12[%c1_60, %c0_61, %c0_62] : memref<2x128x128xbf16, #tpu.memory_space<vmem>>, vector<1x128x128xbf16>
    %86 = vector.shape_cast %85 : vector<1x128x128xbf16> to vector<128x128xbf16>
    %cst_63 = arith.constant dense<0.000000e+00> : vector<128x128xf32>
    %87 = tpu.matmul %78, %86, %cst_63 {dimension_numbers = #tpu.dot_dimension_numbers<[1], [0], [0], [1], [0, 0, 1, 1], [], []>} : vector<128x128xbf16>, vector<128x128xbf16>, vector<128x128xf32> -> vector<128x128xf32>
    %88 = arith.addf %84, %87 : vector<128x128xf32>
    %c0_64 = arith.constant 0 : index
    %c0_65 = arith.constant 0 : index
    %89 = vector.load %arg13[%c0_64, %c0_65] : memref<1x128xf32, #tpu.memory_space<vmem>>, vector<1x128xf32>
    %90 = vector.broadcast %89 : vector<1x128xf32> to vector<128x128xf32>
    %91 = arith.addf %88, %90 : vector<128x128xf32>
    %cst_66 = arith.constant 0.000000e+00 : f32
    %92 = vector.broadcast %cst_66 : f32 to vector<128x128xf32>
    %93 = arith.maximumf %91, %92 : vector<128x128xf32>
    %94 = arith.truncf %93 : vector<128x128xf32> to vector<128x128xbf16>
    %c0_67 = arith.constant 0 : index
    %c0_68 = arith.constant 0 : index
    %c0_69 = arith.constant 0 : index
    %95 = vector.load %arg14[%c0_67, %c0_68, %c0_69] : memref<2x128x128xbf16, #tpu.memory_space<vmem>>, vector<1x128x128xbf16>
    %96 = vector.shape_cast %95 : vector<1x128x128xbf16> to vector<128x128xbf16>
    %cst_70 = arith.constant dense<0.000000e+00> : vector<128x128xf32>
    %97 = tpu.matmul %94, %96, %cst_70 {dimension_numbers = #tpu.dot_dimension_numbers<[1], [0], [0], [1], [0, 0, 1, 1], [], []>} : vector<128x128xbf16>, vector<128x128xbf16>, vector<128x128xf32> -> vector<128x128xf32>
    %cst_71 = arith.constant 0.000000e+00 : f32
    %98 = vector.broadcast %cst_71 : f32 to vector<32x128xf32>
    %99 = vector.extract_strided_slice %97 {offsets = [0, 0], sizes = [96, 128], strides = [1, 1]} : vector<128x128xf32> to vector<96x128xf32>
    %100 = tpu.concatenate %98, %99 in 0 : vector<32x128xf32>, vector<96x128xf32> -> vector<128x128xf32>
    %c1_72 = arith.constant 1 : index
    %c0_73 = arith.constant 0 : index
    %c0_74 = arith.constant 0 : index
    %101 = vector.load %arg14[%c1_72, %c0_73, %c0_74] : memref<2x128x128xbf16, #tpu.memory_space<vmem>>, vector<1x128x128xbf16>
    %102 = vector.shape_cast %101 : vector<1x128x128xbf16> to vector<128x128xbf16>
    %cst_75 = arith.constant dense<0.000000e+00> : vector<128x128xf32>
    %103 = tpu.matmul %94, %102, %cst_75 {dimension_numbers = #tpu.dot_dimension_numbers<[1], [0], [0], [1], [0, 0, 1, 1], [], []>} : vector<128x128xbf16>, vector<128x128xbf16>, vector<128x128xf32> -> vector<128x128xf32>
    %104 = arith.addf %100, %103 : vector<128x128xf32>
    %c0_76 = arith.constant 0 : index
    %c0_77 = arith.constant 0 : index
    %105 = vector.load %arg15[%c0_76, %c0_77] : memref<1x128xf32, #tpu.memory_space<vmem>>, vector<1x128xf32>
    %106 = vector.broadcast %105 : vector<1x128xf32> to vector<128x128xf32>
    %107 = arith.addf %104, %106 : vector<128x128xf32>
    %cst_78 = arith.constant 0.000000e+00 : f32
    %108 = vector.broadcast %cst_78 : f32 to vector<128x128xf32>
    %109 = arith.maximumf %107, %108 : vector<128x128xf32>
    %110 = arith.truncf %77 : vector<128x128xf32> to vector<128x128xbf16>
    %c0_79 = arith.constant 0 : index
    %c0_80 = arith.constant 0 : index
    %111 = vector.load %arg16[%c0_79, %c0_80] : memref<128x128xbf16, #tpu.memory_space<vmem>>, vector<128x128xbf16>
    %cst_81 = arith.constant dense<0.000000e+00> : vector<128x128xf32>
    %112 = tpu.matmul %110, %111, %cst_81 {dimension_numbers = #tpu.dot_dimension_numbers<[1], [0], [0], [1], [0, 0, 1, 1], [], []>} : vector<128x128xbf16>, vector<128x128xbf16>, vector<128x128xf32> -> vector<128x128xf32>
    %c0_82 = arith.constant 0 : index
    %c0_83 = arith.constant 0 : index
    %113 = vector.load %arg17[%c0_82, %c0_83] : memref<1x128xf32, #tpu.memory_space<vmem>>, vector<1x128xf32>
    %114 = vector.broadcast %113 : vector<1x128xf32> to vector<128x128xf32>
    %115 = arith.addf %112, %114 : vector<128x128xf32>
    %116 = arith.addf %109, %115 : vector<128x128xf32>
    %cst_84 = arith.constant 0.000000e+00 : f32
    %117 = vector.broadcast %cst_84 : f32 to vector<128x128xf32>
    %118 = arith.maximumf %116, %117 : vector<128x128xf32>
    %119 = vector.extract_strided_slice %118 {offsets = [120, 0], sizes = [8, 128], strides = [1, 1]} : vector<128x128xf32> to vector<8x128xf32>
    %120 = arith.truncf %119 : vector<8x128xf32> to vector<8x128xbf16>
    %c0_85 = arith.constant 0 : index
    %c0_86 = arith.constant 0 : index
    %121 = vector.load %arg18[%c0_85, %c0_86] : memref<128x128xbf16, #tpu.memory_space<vmem>>, vector<128x128xbf16>
    %cst_87 = arith.constant dense<0.000000e+00> : vector<8x128xf32>
    %122 = tpu.matmul %120, %121, %cst_87 {dimension_numbers = #tpu.dot_dimension_numbers<[1], [0], [0], [1], [0, 0, 1, 1], [], []>} : vector<8x128xbf16>, vector<128x128xbf16>, vector<8x128xf32> -> vector<8x128xf32>
    %c0_88 = arith.constant 0 : index
    %c0_89 = arith.constant 0 : index
    %123 = vector.load %arg19[%c0_88, %c0_89] : memref<1x128xf32, #tpu.memory_space<vmem>>, vector<1x128xf32>
    %124 = vector.broadcast %123 : vector<1x128xf32> to vector<8x128xf32>
    %125 = arith.addf %122, %124 : vector<8x128xf32>
    %c0_90 = arith.constant 0 : index
    %c0_91 = arith.constant 0 : index
    %c0_92 = arith.constant 0 : index
    %126 = vector.load %arg20[%c0_90, %c0_91, %c0_92] : memref<1x8x128xf32, #tpu.memory_space<vmem>>, vector<1x8x128xf32>
    %127 = vector.shape_cast %126 : vector<1x8x128xf32> to vector<8x128xf32>
    %128 = vector.shape_cast %125 : vector<8x128xf32> to vector<1x8x128xf32>
    tpu.vector_store %arg20[%c0_90, %c0_91, %c0_92], %128 {strides = array<i32>} : memref<1x8x128xf32, #tpu.memory_space<vmem>>, vector<1x8x128xf32>,
    return
  }
  func.func @transform_0(%arg0: i32) -> (i32, i32, i32) {
    %c0_i32 = arith.constant 0 : i32
    %c0_i32_0 = arith.constant 0 : i32
    %c0_i32_1 = arith.constant 0 : i32
    return %arg0, %c0_i32, %c0_i32_0 : i32, i32, i32
  }
  func.func @transform_1(%arg0: i32) -> (i32, i32, i32) {
    %c0_i32 = arith.constant 0 : i32
    %c0_i32_0 = arith.constant 0 : i32
    %c0_i32_1 = arith.constant 0 : i32
    %c0_i32_2 = arith.constant 0 : i32
    return %c0_i32, %c0_i32_0, %c0_i32_1 : i32, i32, i32
  }
  func.func @transform_2(%arg0: i32) -> (i32, i32) {
    %c0_i32 = arith.constant 0 : i32
    %c0_i32_0 = arith.constant 0 : i32
    %c0_i32_1 = arith.constant 0 : i32
    return %c0_i32, %c0_i32_0 : i32, i32
  }
  func.func @transform_3(%arg0: i32) -> (i32, i32, i32) {
    %c0_i32 = arith.constant 0 : i32
    %c0_i32_0 = arith.constant 0 : i32
    %c0_i32_1 = arith.constant 0 : i32
    %c0_i32_2 = arith.constant 0 : i32
    return %c0_i32, %c0_i32_0, %c0_i32_1 : i32, i32, i32
  }
  func.func @transform_4(%arg0: i32) -> (i32, i32) {
    %c0_i32 = arith.constant 0 : i32
    %c0_i32_0 = arith.constant 0 : i32
    %c0_i32_1 = arith.constant 0 : i32
    return %c0_i32, %c0_i32_0 : i32, i32
  }
  func.func @transform_5(%arg0: i32) -> (i32, i32) {
    %c0_i32 = arith.constant 0 : i32
    %c0_i32_0 = arith.constant 0 : i32
    %c0_i32_1 = arith.constant 0 : i32
    return %c0_i32, %c0_i32_0 : i32, i32
  }
  func.func @transform_6(%arg0: i32) -> (i32, i32) {
    %c0_i32 = arith.constant 0 : i32
    %c0_i32_0 = arith.constant 0 : i32
    %c0_i32_1 = arith.constant 0 : i32
    return %c0_i32, %c0_i32_0 : i32, i32
  }
  func.func @transform_7(%arg0: i32) -> (i32, i32, i32) {
    %c0_i32 = arith.constant 0 : i32
    %c0_i32_0 = arith.constant 0 : i32
    %c0_i32_1 = arith.constant 0 : i32
    %c0_i32_2 = arith.constant 0 : i32
    return %c0_i32, %c0_i32_0, %c0_i32_1 : i32, i32, i32
  }
  func.func @transform_8(%arg0: i32) -> (i32, i32) {
    %c0_i32 = arith.constant 0 : i32
    %c0_i32_0 = arith.constant 0 : i32
    %c0_i32_1 = arith.constant 0 : i32
    return %c0_i32, %c0_i32_0 : i32, i32
  }
  func.func @transform_9(%arg0: i32) -> (i32, i32, i32) {
    %c0_i32 = arith.constant 0 : i32
    %c0_i32_0 = arith.constant 0 : i32
    %c0_i32_1 = arith.constant 0 : i32
    %c0_i32_2 = arith.constant 0 : i32
    return %c0_i32, %c0_i32_0, %c0_i32_1 : i32, i32, i32
  }
  func.func @transform_10(%arg0: i32) -> (i32, i32) {
    %c0_i32 = arith.constant 0 : i32
    %c0_i32_0 = arith.constant 0 : i32
    %c0_i32_1 = arith.constant 0 : i32
    return %c0_i32, %c0_i32_0 : i32, i32
  }
  func.func @transform_11(%arg0: i32) -> (i32, i32, i32) {
    %c0_i32 = arith.constant 0 : i32
    %c0_i32_0 = arith.constant 0 : i32
    %c0_i32_1 = arith.constant 0 : i32
    %c0_i32_2 = arith.constant 0 : i32
    return %c0_i32, %c0_i32_0, %c0_i32_1 : i32, i32, i32
  }
  func.func @transform_12(%arg0: i32) -> (i32, i32) {
    %c0_i32 = arith.constant 0 : i32
    %c0_i32_0 = arith.constant 0 : i32
    %c0_i32_1 = arith.constant 0 : i32
    return %c0_i32, %c0_i32_0 : i32, i32
  }
  func.func @transform_13(%arg0: i32) -> (i32, i32, i32) {
    %c0_i32 = arith.constant 0 : i32
    %c0_i32_0 = arith.constant 0 : i32
    %c0_i32_1 = arith.constant 0 : i32
    %c0_i32_2 = arith.constant 0 : i32
    return %c0_i32, %c0_i32_0, %c0_i32_1 : i32, i32, i32
  }
  func.func @transform_14(%arg0: i32) -> (i32, i32) {
    %c0_i32 = arith.constant 0 : i32
    %c0_i32_0 = arith.constant 0 : i32
    %c0_i32_1 = arith.constant 0 : i32
    return %c0_i32, %c0_i32_0 : i32, i32
  }
  func.func @transform_15(%arg0: i32) -> (i32, i32) {
    %c0_i32 = arith.constant 0 : i32
    %c0_i32_0 = arith.constant 0 : i32
    %c0_i32_1 = arith.constant 0 : i32
    return %c0_i32, %c0_i32_0 : i32, i32
  }
  func.func @transform_16(%arg0: i32) -> (i32, i32) {
    %c0_i32 = arith.constant 0 : i32
    %c0_i32_0 = arith.constant 0 : i32
    %c0_i32_1 = arith.constant 0 : i32
    return %c0_i32, %c0_i32_0 : i32, i32
  }
  func.func @transform_17(%arg0: i32) -> (i32, i32) {
    %c0_i32 = arith.constant 0 : i32
    %c0_i32_0 = arith.constant 0 : i32
    %c0_i32_1 = arith.constant 0 : i32
    return %c0_i32, %c0_i32_0 : i32, i32
  }
  func.func @transform_18(%arg0: i32) -> (i32, i32) {
    %c0_i32 = arith.constant 0 : i32
    %c0_i32_0 = arith.constant 0 : i32
    %c0_i32_1 = arith.constant 0 : i32
    return %c0_i32, %c0_i32_0 : i32, i32
  }
  func.func @transform_19(%arg0: i32) -> (i32, i32, i32) {
    %c0_i32 = arith.constant 0 : i32
    %c0_i32_0 = arith.constant 0 : i32
    %c0_i32_1 = arith.constant 0 : i32
    return %arg0, %c0_i32, %c0_i32_0 : i32, i32, i32
  }
}

</mosaic_0001>

<llo_original>
// kernel: tpu_custom_call.1
$region0: #{tpu_custom_call.1}
  #allocation0 [shape = 'u32[]', space=smem, size = 0x4, offset = 0x4, fixed_abs, tag = 'smem constant byte address 0x4 - core index']
  #allocation1 [shape = 'u32[144,128]{1,0:T(1,128)}', space=vmem, size = 0x12000, scoped, tag = 'internal scratch']
  %s0 = inlined_call_operand.hbm [shape: f32[2,128,128], index: 0, kind: input, shape index: {}]
  %s1 = inlined_call_operand.hbm [shape: bf16[2,128,128], index: 1, kind: input, shape index: {}]
  %s2 = inlined_call_operand.hbm [shape: f32[1,128], index: 2, kind: input, shape index: {}]
  %s3 = inlined_call_operand.hbm [shape: bf16[2,128,128], index: 3, kind: input, shape index: {}]
  %s4 = inlined_call_operand.hbm [shape: f32[1,128], index: 4, kind: input, shape index: {}]
  %s5 = inlined_call_operand.hbm [shape: bf16[128,128], index: 5, kind: input, shape index: {}]
  %s6 = inlined_call_operand.hbm [shape: f32[1,128], index: 6, kind: input, shape index: {}]
  %s7 = inlined_call_operand.hbm [shape: bf16[2,128,128], index: 7, kind: input, shape index: {}]
  %s8 = inlined_call_operand.hbm [shape: f32[1,128], index: 8, kind: input, shape index: {}]
  %s9 = inlined_call_operand.hbm [shape: bf16[2,128,128], index: 9, kind: input, shape index: {}]
  %s10 = inlined_call_operand.hbm [shape: f32[1,128], index: 10, kind: input, shape index: {}]
  %s11 = inlined_call_operand.hbm [shape: bf16[2,128,128], index: 11, kind: input, shape index: {}]
  %s12 = inlined_call_operand.hbm [shape: f32[1,128], index: 12, kind: input, shape index: {}]
  %s13 = inlined_call_operand.hbm [shape: bf16[2,128,128], index: 13, kind: input, shape index: {}]
  %s14 = inlined_call_operand.hbm [shape: f32[1,128], index: 14, kind: input, shape index: {}]
  %s15 = inlined_call_operand.hbm [shape: bf16[128,128], index: 15, kind: input, shape index: {}]
  %s16 = inlined_call_operand.hbm [shape: f32[1,128], index: 16, kind: input, shape index: {}]
  %s17 = inlined_call_operand.vmem [shape: bf16[128,128], index: 17, kind: input, shape index: {}]
  %s18 = inlined_call_operand.vmem [shape: f32[1,128], index: 18, kind: input, shape index: {}]
  %s19 = inlined_call_operand.hbm [shape: f32[2,8,128], index: 19, kind: output, shape index: {}]
  %s20 = sld [smem:[#allocation0]]
  $region177: #{tpu_custom_call.1} parent=0
    _
  %s22 = ssub.s32 1, %s20
  %s23 = scalar_select 0, %s22, %s20
  $region1: #{tpu_custom_call.1} parent=0
    #allocation2 [shape = 'u8[131072]{0}', space=vmem, size = 0x20000, scoped, tag = 'input window, operand 0']
    #allocation3 [shape = 's32[2]{0}', space=sflag, size = 0x8, scoped, tag = 'scoped memory for tpu_custom_call.1']
    #allocation4 [shape = 's32[2]{0}', space=sflag, size = 0x8, scoped, tag = 'scoped memory for tpu_custom_call.1']
    #allocation5 [shape = 'u8[65536]{0}', space=vmem, size = 0x10000, scoped, tag = 'input window, operand 1, single buffered']
    #allocation6 [shape = 's32[1]{0}', space=sflag, size = 0x4, scoped, tag = 'scoped memory for tpu_custom_call.1']
    #allocation7 [shape = 'u8[512]{0}', space=vmem, size = 0x400, scoped, tag = 'input window, operand 2, single buffered']
    #allocation8 [shape = 'u8[65536]{0}', space=vmem, size = 0x10000, scoped, tag = 'input window, operand 3, single buffered']
    #allocation9 [shape = 's32[1]{0}', space=sflag, size = 0x4, scoped, tag = 'scoped memory for tpu_custom_call.1']
    #allocation10 [shape = 'u8[512]{0}', space=vmem, size = 0x400, scoped, tag = 'input window, operand 4, single buffered']
    #allocation11 [shape = 'u8[32768]{0}', space=vmem, size = 0x8000, scoped, tag = 'input window, operand 5, single buffered']
    #allocation12 [shape = 's32[1]{0}', space=sflag, size = 0x4, scoped, tag = 'scoped memory for tpu_custom_call.1']
    #allocation13 [shape = 'u8[512]{0}', space=vmem, size = 0x400, scoped, tag = 'input window, operand 6, single buffered']
    #allocation14 [shape = 'u8[65536]{0}', space=vmem, size = 0x10000, scoped, tag = 'input window, operand 7, single buffered']
    #allocation15 [shape = 's32[1]{0}', space=sflag, size = 0x4, scoped, tag = 'scoped memory for tpu_custom_call.1']
    #allocation16 [shape = 'u8[512]{0}', space=vmem, size = 0x400, scoped, tag = 'input window, operand 8, single buffered']
    #allocation17 [shape = 'u8[65536]{0}', space=vmem, size = 0x10000, scoped, tag = 'input window, operand 9, single buffered']
    #allocation18 [shape = 's32[1]{0}', space=sflag, size = 0x4, scoped, tag = 'scoped memory for tpu_custom_call.1']
    #allocation19 [shape = 'u8[512]{0}', space=vmem, size = 0x400, scoped, tag = 'input window, operand 10, single buffered']
    #allocation20 [shape = 'u8[65536]{0}', space=vmem, size = 0x10000, scoped, tag = 'input window, operand 11, single buffered']
    #allocation21 [shape = 's32[1]{0}', space=sflag, size = 0x4, scoped, tag = 'scoped memory for tpu_custom_call.1']
    #allocation22 [shape = 'u8[512]{0}', space=vmem, size = 0x400, scoped, tag = 'input window, operand 12, single buffered']
    #allocation23 [shape = 'u8[65536]{0}', space=vmem, size = 0x10000, scoped, tag = 'input window, operand 13, single buffered']
    #allocation24 [shape = 's32[1]{0}', space=sflag, size = 0x4, scoped, tag = 'scoped memory for tpu_custom_call.1']
    #allocation25 [shape = 'u8[512]{0}', space=vmem, size = 0x400, scoped, tag = 'input window, operand 14, single buffered']
    #allocation26 [shape = 'u8[32768]{0}', space=vmem, size = 0x8000, scoped, tag = 'input window, operand 15, single buffered']
    #allocation27 [shape = 's32[1]{0}', space=sflag, size = 0x4, scoped, tag = 'scoped memory for tpu_custom_call.1']
    #allocation28 [shape = 'u8[512]{0}', space=vmem, size = 0x400, scoped, tag = 'input window, operand 16, single buffered']
    #allocation29 [shape = 'u8[8192]{0}', space=vmem, size = 0x2000, scoped, tag = 'output window, operand 0']
    %24 = vsyncpa [#allocation3], 0
    %s25 = scalar_lea.sflag [#allocation3], 1
    %26 = vsyncpa %s25, 0
    %27 = vsyncpa [#allocation6], 0
    %28 = vsyncpa [#allocation9], 0
    %29 = vsyncpa [#allocation12], 0
    %30 = vsyncpa [#allocation15], 0
    %31 = vsyncpa [#allocation18], 0
    %32 = vsyncpa [#allocation21], 0
    %33 = vsyncpa [#allocation24], 0
    %34 = vsyncpa [#allocation27], 0
    %35 = vsyncpa [#allocation4], 0
    %s36 = scalar_lea.sflag [#allocation4], 1
    %37 = vsyncpa %s36, 0
    loop: start=0, step=1, limit=4
    $region2: #{tpu_custom_call.1} parent=1 // loop_pre_header
      _
    $region3: #{tpu_custom_call.1} parent=1 // loop_header
      %s39 = sphi 0, %s43
      %p40 = scmp.ge.s32.totalorder %s39, 4
      %s49 = sphi 0, %s51
      %s52 = sphi 0, %s49
      %s53 = sphi 0, %s52
      %s69 = sphi 0, %s53
      %s73 = sphi 0, %s73
      %s75 = sphi 0, %s73
      %s76 = sphi 0, %s75
      %s90 = sphi 0, %s76
      %s94 = sphi 0, %s94
      %s96 = sphi 0, %s94
      %s97 = sphi 0, %s96
      %s111 = sphi 0, %s97
      %s115 = sphi 0, %s115
      %s117 = sphi 0, %s115
      %s118 = sphi 0, %s117
      %s132 = sphi 0, %s118
      %s136 = sphi 0, %s136
      %s138 = sphi 0, %s136
      %s139 = sphi 0, %s138
      %s153 = sphi 0, %s139
      %s157 = sphi 0, %s157
      %s159 = sphi 0, %s157
      %s160 = sphi 0, %s159
      %s174 = sphi 0, %s160
      %s178 = sphi 0, %s178
      %s180 = sphi 0, %s178
      %s181 = sphi 0, %s180
      %s195 = sphi 0, %s181
      %s199 = sphi 0, %s199
      %s201 = sphi 0, %s199
      %s202 = sphi 0, %s201
      %s216 = sphi 0, %s202
      %s220 = sphi 0, %s220
      %s222 = sphi 0, %s220
      %s223 = sphi 0, %s222
      %s237 = sphi 0, %s223
      %s241 = sphi 0, %s241
      %s243 = sphi 0, %s241
      %s244 = sphi 0, %s243
      %s258 = sphi 0, %s244
      %s262 = sphi 0, %s262
      %s264 = sphi 0, %s262
      %s265 = sphi 0, %s264
      %s279 = sphi 0, %s265
      %s283 = sphi 0, %s283
      %s285 = sphi 0, %s283
      %s286 = sphi 0, %s285
      %s300 = sphi 0, %s286
      %s304 = sphi 0, %s304
      %s306 = sphi 0, %s304
      %s307 = sphi 0, %s306
      %s321 = sphi 0, %s307
      %s325 = sphi 0, %s325
      %s327 = sphi 0, %s325
      %s328 = sphi 0, %s327
      %s342 = sphi 0, %s328
      %s346 = sphi 0, %s346
      %s348 = sphi 0, %s346
      %s349 = sphi 0, %s348
      %s363 = sphi 0, %s349
      %s367 = sphi 0, %s367
      %s369 = sphi 0, %s367
      %s370 = sphi 0, %s369
      %s384 = sphi 0, %s370
      %s388 = sphi 0, %s388
      %s390 = sphi 0, %s388
      %s391 = sphi 0, %s390
      %s405 = sphi 0, %s391
      %s409 = sphi 0, %s409
      %s411 = sphi 0, %s409
      %s412 = sphi 0, %s411
      %s426 = sphi 0, %s412
      %s430 = sphi 0, %s430
      %s432 = sphi 0, %s430
      %s433 = sphi 0, %s432
      %s447 = sphi 0, %s433
      %s453 = sphi 0, %s455
      %s456 = sphi 0, %s453
      %s457 = sphi 0, %s456
      %s473 = sphi 0, %s457
    $region4: #{tpu_custom_call.1} parent=1 // loop_header_branch
      %42 = sbr.rel (%p40) target = $region8
    $region5: #{tpu_custom_call.1} parent=1 // loop_body
      %s44 = ssub.s32 %s39, 1
      %s45 = ssub.s32 %s39, 2
      %s46 = sadd.s32 %s39, 1
      %s47 = ssub.s32 %s39, %s46
      %p48 = scmp.eq.s32.totalorder %s47, 0
      %s50 = sadd.s32 %s49, 1
      %s51 = scalar_select %p48, %s49, %s50
      %p54 = pneg %p48
      %p55 = scmp.eq.s32.totalorder %s39, 1
      %p56 = por %p54, %p55
      %p57 = scmp.ne.s32.totalorder %s49, %s52
      %p58 = scmp.eq.s32.totalorder %s39, 0
      %p59 = por %p57, %p58
      %p60 = scmp.ne.s32.totalorder %s49, %s52
      %p61 = scmp.eq.s32.totalorder %s44, 1
      %p62 = por %p60, %p61
      %p63 = scmp.ne.s32.totalorder %s52, %s53
      %p64 = scmp.eq.s32.totalorder %s44, 0
      %p65 = por %p63, %p64
      %p66 = scmp.ne.s32.totalorder %s52, %s53
      %p67 = scmp.eq.s32.totalorder %s45, 1
      %p68 = por %p66, %p67
      %p70 = scmp.ne.s32.totalorder %s53, %s69
      %p71 = scmp.eq.s32.totalorder %s45, 0
      %p72 = por %p70, %p71
      %s74 = sadd.s32 %s73, 1
      %p77 = scmp.eq.s32.totalorder %s39, 1
      %p78 = scmp.ne.s32.totalorder %s73, %s75
      %p79 = scmp.eq.s32.totalorder %s39, 0
      %p80 = por %p78, %p79
      %p81 = scmp.ne.s32.totalorder %s73, %s75
      %p82 = scmp.eq.s32.totalorder %s44, 1
      %p83 = por %p81, %p82
      %p84 = scmp.ne.s32.totalorder %s75, %s76
      %p85 = scmp.eq.s32.totalorder %s44, 0
      %p86 = por %p84, %p85
      %p87 = scmp.ne.s32.totalorder %s75, %s76
      %p88 = scmp.eq.s32.totalorder %s45, 1
      %p89 = por %p87, %p88
      %p91 = scmp.ne.s32.totalorder %s76, %s90
      %p92 = scmp.eq.s32.totalorder %s45, 0
      %p93 = por %p91, %p92
      %s95 = sadd.s32 %s94, 1
      %p98 = scmp.eq.s32.totalorder %s39, 1
      %p99 = scmp.ne.s32.totalorder %s94, %s96
      %p100 = scmp.eq.s32.totalorder %s39, 0
      %p101 = por %p99, %p100
      %p102 = scmp.ne.s32.totalorder %s94, %s96
      %p103 = scmp.eq.s32.totalorder %s44, 1
      %p104 = por %p102, %p103
      %p105 = scmp.ne.s32.totalorder %s96, %s97
      %p106 = scmp.eq.s32.totalorder %s44, 0
      %p107 = por %p105, %p106
      %p108 = scmp.ne.s32.totalorder %s96, %s97
      %p109 = scmp.eq.s32.totalorder %s45, 1
      %p110 = por %p108, %p109
      %p112 = scmp.ne.s32.totalorder %s97, %s111
      %p113 = scmp.eq.s32.totalorder %s45, 0
      %p114 = por %p112, %p113
      %s116 = sadd.s32 %s115, 1
      %p119 = scmp.eq.s32.totalorder %s39, 1
      %p120 = scmp.ne.s32.totalorder %s115, %s117
      %p121 = scmp.eq.s32.totalorder %s39, 0
      %p122 = por %p120, %p121
      %p123 = scmp.ne.s32.totalorder %s115, %s117
      %p124 = scmp.eq.s32.totalorder %s44, 1
      %p125 = por %p123, %p124
      %p126 = scmp.ne.s32.totalorder %s117, %s118
      %p127 = scmp.eq.s32.totalorder %s44, 0
      %p128 = por %p126, %p127
      %p129 = scmp.ne.s32.totalorder %s117, %s118
      %p130 = scmp.eq.s32.totalorder %s45, 1
      %p131 = por %p129, %p130
      %p133 = scmp.ne.s32.totalorder %s118, %s132
      %p134 = scmp.eq.s32.totalorder %s45, 0
      %p135 = por %p133, %p134
      %s137 = sadd.s32 %s136, 1
      %p140 = scmp.eq.s32.totalorder %s39, 1
      %p141 = scmp.ne.s32.totalorder %s136, %s138
      %p142 = scmp.eq.s32.totalorder %s39, 0
      %p143 = por %p141, %p142
      %p144 = scmp.ne.s32.totalorder %s136, %s138
      %p145 = scmp.eq.s32.totalorder %s44, 1
      %p146 = por %p144, %p145
      %p147 = scmp.ne.s32.totalorder %s138, %s139
      %p148 = scmp.eq.s32.totalorder %s44, 0
      %p149 = por %p147, %p148
      %p150 = scmp.ne.s32.totalorder %s138, %s139
      %p151 = scmp.eq.s32.totalorder %s45, 1
      %p152 = por %p150, %p151
      %p154 = scmp.ne.s32.totalorder %s139, %s153
      %p155 = scmp.eq.s32.totalorder %s45, 0
      %p156 = por %p154, %p155
      %s158 = sadd.s32 %s157, 1
      %p161 = scmp.eq.s32.totalorder %s39, 1
      %p162 = scmp.ne.s32.totalorder %s157, %s159
      %p163 = scmp.eq.s32.totalorder %s39, 0
      %p164 = por %p162, %p163
      %p165 = scmp.ne.s32.totalorder %s157, %s159
      %p166 = scmp.eq.s32.totalorder %s44, 1
      %p167 = por %p165, %p166
      %p168 = scmp.ne.s32.totalorder %s159, %s160
      %p169 = scmp.eq.s32.totalorder %s44, 0
      %p170 = por %p168, %p169
      %p171 = scmp.ne.s32.totalorder %s159, %s160
      %p172 = scmp.eq.s32.totalorder %s45, 1
      %p173 = por %p171, %p172
      %p175 = scmp.ne.s32.totalorder %s160, %s174
      %p176 = scmp.eq.s32.totalorder %s45, 0
      %p177 = por %p175, %p176
      %s179 = sadd.s32 %s178, 1
      %p182 = scmp.eq.s32.totalorder %s39, 1
      %p183 = scmp.ne.s32.totalorder %s178, %s180
      %p184 = scmp.eq.s32.totalorder %s39, 0
      %p185 = por %p183, %p184
      %p186 = scmp.ne.s32.totalorder %s178, %s180
      %p187 = scmp.eq.s32.totalorder %s44, 1
      %p188 = por %p186, %p187
      %p189 = scmp.ne.s32.totalorder %s180, %s181
      %p190 = scmp.eq.s32.totalorder %s44, 0
      %p191 = por %p189, %p190
      %p192 = scmp.ne.s32.totalorder %s180, %s181
      %p193 = scmp.eq.s32.totalorder %s45, 1
      %p194 = por %p192, %p193
      %p196 = scmp.ne.s32.totalorder %s181, %s195
      %p197 = scmp.eq.s32.totalorder %s45, 0
      %p198 = por %p196, %p197
      %s200 = sadd.s32 %s199, 1
      %p203 = scmp.eq.s32.totalorder %s39, 1
      %p204 = scmp.ne.s32.totalorder %s199, %s201
      %p205 = scmp.eq.s32.totalorder %s39, 0
      %p206 = por %p204, %p205
      %p207 = scmp.ne.s32.totalorder %s199, %s201
      %p208 = scmp.eq.s32.totalorder %s44, 1
      %p209 = por %p207, %p208
      %p210 = scmp.ne.s32.totalorder %s201, %s202
      %p211 = scmp.eq.s32.totalorder %s44, 0
      %p212 = por %p210, %p211
      %p213 = scmp.ne.s32.totalorder %s201, %s202
      %p214 = scmp.eq.s32.totalorder %s45, 1
      %p215 = por %p213, %p214
      %p217 = scmp.ne.s32.totalorder %s202, %s216
      %p218 = scmp.eq.s32.totalorder %s45, 0
      %p219 = por %p217, %p218
      %s221 = sadd.s32 %s220, 1
      %p224 = scmp.eq.s32.totalorder %s39, 1
      %p225 = scmp.ne.s32.totalorder %s220, %s222
      %p226 = scmp.eq.s32.totalorder %s39, 0
      %p227 = por %p225, %p226
      %p228 = scmp.ne.s32.totalorder %s220, %s222
      %p229 = scmp.eq.s32.totalorder %s44, 1
      %p230 = por %p228, %p229
      %p231 = scmp.ne.s32.totalorder %s222, %s223
      %p232 = scmp.eq.s32.totalorder %s44, 0
      %p233 = por %p231, %p232
      %p234 = scmp.ne.s32.totalorder %s222, %s223
      %p235 = scmp.eq.s32.totalorder %s45, 1
      %p236 = por %p234, %p235
      %p238 = scmp.ne.s32.totalorder %s223, %s237
      %p239 = scmp.eq.s32.totalorder %s45, 0
      %p240 = por %p238, %p239
      %s242 = sadd.s32 %s241, 1
      %p245 = scmp.eq.s32.totalorder %s39, 1
      %p246 = scmp.ne.s32.totalorder %s241, %s243
      %p247 = scmp.eq.s32.totalorder %s39, 0
      %p248 = por %p246, %p247
      %p249 = scmp.ne.s32.totalorder %s241, %s243
      %p250 = scmp.eq.s32.totalorder %s44, 1
      %p251 = por %p249, %p250
      %p252 = scmp.ne.s32.totalorder %s243, %s244
      %p253 = scmp.eq.s32.totalorder %s44, 0
      %p254 = por %p252, %p253
      %p255 = scmp.ne.s32.totalorder %s243, %s244
      %p256 = scmp.eq.s32.totalorder %s45, 1
      %p257 = por %p255, %p256
      %p259 = scmp.ne.s32.totalorder %s244, %s258
      %p260 = scmp.eq.s32.totalorder %s45, 0
      %p261 = por %p259, %p260
      %s263 = sadd.s32 %s262, 1
      %p266 = scmp.eq.s32.totalorder %s39, 1
      %p267 = scmp.ne.s32.totalorder %s262, %s264
      %p268 = scmp.eq.s32.totalorder %s39, 0
      %p269 = por %p267, %p268
      %p270 = scmp.ne.s32.totalorder %s262, %s264
      %p271 = scmp.eq.s32.totalorder %s44, 1
      %p272 = por %p270, %p271
      %p273 = scmp.ne.s32.totalorder %s264, %s265
      %p274 = scmp.eq.s32.totalorder %s44, 0
      %p275 = por %p273, %p274
      %p276 = scmp.ne.s32.totalorder %s264, %s265
      %p277 = scmp.eq.s32.totalorder %s45, 1
      %p278 = por %p276, %p277
      %p280 = scmp.ne.s32.totalorder %s265, %s279
      %p281 = scmp.eq.s32.totalorder %s45, 0
      %p282 = por %p280, %p281
      %s284 = sadd.s32 %s283, 1
      %p287 = scmp.eq.s32.totalorder %s39, 1
      %p288 = scmp.ne.s32.totalorder %s283, %s285
      %p289 = scmp.eq.s32.totalorder %s39, 0
      %p290 = por %p288, %p289
      %p291 = scmp.ne.s32.totalorder %s283, %s285
      %p292 = scmp.eq.s32.totalorder %s44, 1
      %p293 = por %p291, %p292
      %p294 = scmp.ne.s32.totalorder %s285, %s286
      %p295 = scmp.eq.s32.totalorder %s44, 0
      %p296 = por %p294, %p295
      %p297 = scmp.ne.s32.totalorder %s285, %s286
      %p298 = scmp.eq.s32.totalorder %s45, 1
      %p299 = por %p297, %p298
      %p301 = scmp.ne.s32.totalorder %s286, %s300
      %p302 = scmp.eq.s32.totalorder %s45, 0
      %p303 = por %p301, %p302
      %s305 = sadd.s32 %s304, 1
      %p308 = scmp.eq.s32.totalorder %s39, 1
      %p309 = scmp.ne.s32.totalorder %s304, %s306
      %p310 = scmp.eq.s32.totalorder %s39, 0
      %p311 = por %p309, %p310
      %p312 = scmp.ne.s32.totalorder %s304, %s306
      %p313 = scmp.eq.s32.totalorder %s44, 1
      %p314 = por %p312, %p313
      %p315 = scmp.ne.s32.totalorder %s306, %s307
      %p316 = scmp.eq.s32.totalorder %s44, 0
      %p317 = por %p315, %p316
      %p318 = scmp.ne.s32.totalorder %s306, %s307
      %p319 = scmp.eq.s32.totalorder %s45, 1
      %p320 = por %p318, %p319
      %p322 = scmp.ne.s32.totalorder %s307, %s321
      %p323 = scmp.eq.s32.totalorder %s45, 0
      %p324 = por %p322, %p323
      %s326 = sadd.s32 %s325, 1
      %p329 = scmp.eq.s32.totalorder %s39, 1
      %p330 = scmp.ne.s32.totalorder %s325, %s327
      %p331 = scmp.eq.s32.totalorder %s39, 0
      %p332 = por %p330, %p331
      %p333 = scmp.ne.s32.totalorder %s325, %s327
      %p334 = scmp.eq.s32.totalorder %s44, 1
      %p335 = por %p333, %p334
      %p336 = scmp.ne.s32.totalorder %s327, %s328
      %p337 = scmp.eq.s32.totalorder %s44, 0
      %p338 = por %p336, %p337
      %p339 = scmp.ne.s32.totalorder %s327, %s328
      %p340 = scmp.eq.s32.totalorder %s45, 1
      %p341 = por %p339, %p340
      %p343 = scmp.ne.s32.totalorder %s328, %s342
      %p344 = scmp.eq.s32.totalorder %s45, 0
      %p345 = por %p343, %p344
      %s347 = sadd.s32 %s346, 1
      %p350 = scmp.eq.s32.totalorder %s39, 1
      %p351 = scmp.ne.s32.totalorder %s346, %s348
      %p352 = scmp.eq.s32.totalorder %s39, 0
      %p353 = por %p351, %p352
      %p354 = scmp.ne.s32.totalorder %s346, %s348
      %p355 = scmp.eq.s32.totalorder %s44, 1
      %p356 = por %p354, %p355
      %p357 = scmp.ne.s32.totalorder %s348, %s349
      %p358 = scmp.eq.s32.totalorder %s44, 0
      %p359 = por %p357, %p358
      %p360 = scmp.ne.s32.totalorder %s348, %s349
      %p361 = scmp.eq.s32.totalorder %s45, 1
      %p362 = por %p360, %p361
      %p364 = scmp.ne.s32.totalorder %s349, %s363
      %p365 = scmp.eq.s32.totalorder %s45, 0
      %p366 = por %p364, %p365
      %s368 = sadd.s32 %s367, 1
      %p371 = scmp.eq.s32.totalorder %s39, 1
      %p372 = scmp.ne.s32.totalorder %s367, %s369
      %p373 = scmp.eq.s32.totalorder %s39, 0
      %p374 = por %p372, %p373
      %p375 = scmp.ne.s32.totalorder %s367, %s369
      %p376 = scmp.eq.s32.totalorder %s44, 1
      %p377 = por %p375, %p376
      %p378 = scmp.ne.s32.totalorder %s369, %s370
      %p379 = scmp.eq.s32.totalorder %s44, 0
      %p380 = por %p378, %p379
      %p381 = scmp.ne.s32.totalorder %s369, %s370
      %p382 = scmp.eq.s32.totalorder %s45, 1
      %p383 = por %p381, %p382
      %p385 = scmp.ne.s32.totalorder %s370, %s384
      %p386 = scmp.eq.s32.totalorder %s45, 0
      %p387 = por %p385, %p386
      %s389 = sadd.s32 %s388, 1
      %p392 = scmp.eq.s32.totalorder %s39, 1
      %p393 = scmp.ne.s32.totalorder %s388, %s390
      %p394 = scmp.eq.s32.totalorder %s39, 0
      %p395 = por %p393, %p394
      %p396 = scmp.ne.s32.totalorder %s388, %s390
      %p397 = scmp.eq.s32.totalorder %s44, 1
      %p398 = por %p396, %p397
      %p399 = scmp.ne.s32.totalorder %s390, %s391
      %p400 = scmp.eq.s32.totalorder %s44, 0
      %p401 = por %p399, %p400
      %p402 = scmp.ne.s32.totalorder %s390, %s391
      %p403 = scmp.eq.s32.totalorder %s45, 1
      %p404 = por %p402, %p403
      %p406 = scmp.ne.s32.totalorder %s391, %s405
      %p407 = scmp.eq.s32.totalorder %s45, 0
      %p408 = por %p406, %p407
      %s410 = sadd.s32 %s409, 1
      %p413 = scmp.eq.s32.totalorder %s39, 1
      %p414 = scmp.ne.s32.totalorder %s409, %s411
      %p415 = scmp.eq.s32.totalorder %s39, 0
      %p416 = por %p414, %p415
      %p417 = scmp.ne.s32.totalorder %s409, %s411
      %p418 = scmp.eq.s32.totalorder %s44, 1
      %p419 = por %p417, %p418
      %p420 = scmp.ne.s32.totalorder %s411, %s412
      %p421 = scmp.eq.s32.totalorder %s44, 0
      %p422 = por %p420, %p421
      %p423 = scmp.ne.s32.totalorder %s411, %s412
      %p424 = scmp.eq.s32.totalorder %s45, 1
      %p425 = por %p423, %p424
      %p427 = scmp.ne.s32.totalorder %s412, %s426
      %p428 = scmp.eq.s32.totalorder %s45, 0
      %p429 = por %p427, %p428
      %s431 = sadd.s32 %s430, 1
      %p434 = scmp.eq.s32.totalorder %s39, 1
      %p435 = scmp.ne.s32.totalorder %s430, %s432
      %p436 = scmp.eq.s32.totalorder %s39, 0
      %p437 = por %p435, %p436
      %p438 = scmp.ne.s32.totalorder %s430, %s432
      %p439 = scmp.eq.s32.totalorder %s44, 1
      %p440 = por %p438, %p439
      %p441 = scmp.ne.s32.totalorder %s432, %s433
      %p442 = scmp.eq.s32.totalorder %s44, 0
      %p443 = por %p441, %p442
      %p444 = scmp.ne.s32.totalorder %s432, %s433
      %p445 = scmp.eq.s32.totalorder %s45, 1
      %p446 = por %p444, %p445
      %p448 = scmp.ne.s32.totalorder %s433, %s447
      %p449 = scmp.eq.s32.totalorder %s45, 0
      %p450 = por %p448, %p449
      %s451 = ssub.s32 %s39, %s46
      %p452 = scmp.eq.s32.totalorder %s451, 0
      %s454 = sadd.s32 %s453, 1
      %s455 = scalar_select %p452, %s453, %s454
      %p458 = pneg %p452
      %p459 = scmp.eq.s32.totalorder %s39, 1
      %p460 = por %p458, %p459
      %p461 = scmp.ne.s32.totalorder %s453, %s456
      %p462 = scmp.eq.s32.totalorder %s39, 0
      %p463 = por %p461, %p462
      %p464 = scmp.ne.s32.totalorder %s453, %s456
      %p465 = scmp.eq.s32.totalorder %s44, 1
      %p466 = por %p464, %p465
      %p467 = scmp.ne.s32.totalorder %s456, %s457
      %p468 = scmp.eq.s32.totalorder %s44, 0
      %p469 = por %p467, %p468
      %p470 = scmp.ne.s32.totalorder %s456, %s457
      %p471 = scmp.eq.s32.totalorder %s45, 1
      %p472 = por %p470, %p471
      %p474 = scmp.ne.s32.totalorder %s457, %s473
      %p475 = scmp.eq.s32.totalorder %s45, 0
      %p476 = por %p474, %p475
      %p477 = scmp.le.s32.totalorder 1, %s39
      %p478 = scmp.lt.s32.totalorder %s39, 3
      %p479 = pnand %p477, %p478
      %p480 = pneg %p479
      // Predicated region
      $region9: #{tpu_custom_call.1} parent=5 // pred_check
        _
      $region10: #{tpu_custom_call.1} parent=5 // pred_check_branch
        %482 = sbr.rel (%p479) target = $region12
      $region11: #{tpu_custom_call.1} parent=5 // pred_region
        %s483 = ssub.s32 %s39, 1
        // Predicated region
        $region13: #{tpu_custom_call.1} parent=11 // pred_check
          %p484 = pneg %p86
        $region14: #{tpu_custom_call.1} parent=11 // pred_check_branch
          %486 = sbr.rel (%p484) target = $region16
        $region15: #{tpu_custom_call.1} parent=11 // pred_region
          %s488 = ssub.s32 2048, 2048
          %489 = vsyncadd [#allocation6], %s488
          %s490 = sshll.u32 [#allocation5], 4
          %s491 = int_to_ptr.vmem [resolvable:$true] %s490
          %496 = dma.hbm_to_vmem [thread:$0]  %s1, 2048, %s491, [#allocation6], 64, 64, 4
        $region16: #{tpu_custom_call.1} parent=11 // pred_fallthru
          _
        // Predicated region
        $region17: #{tpu_custom_call.1} parent=11 // pred_check
          %p497 = pneg %p107
        $region18: #{tpu_custom_call.1} parent=11 // pred_check_branch
          %499 = sbr.rel (%p497) target = $region20
        $region19: #{tpu_custom_call.1} parent=11 // pred_region
          %s501 = ssub.s32 16, 16
          %502 = vsyncadd [#allocation6], %s501
          %s504 = sshll.u32 [#allocation7], 4
          %s505 = int_to_ptr.vmem [resolvable:$true] %s504
          %507 = dma.hbm_to_vmem [thread:$0]  %s2, 16, %s505, [#allocation6]
        $region20: #{tpu_custom_call.1} parent=11 // pred_fallthru
          _
        // Predicated region
        $region21: #{tpu_custom_call.1} parent=11 // pred_check
          %p508 = pneg %p128
        $region22: #{tpu_custom_call.1} parent=11 // pred_check_branch
          %510 = sbr.rel (%p508) target = $region24
        $region23: #{tpu_custom_call.1} parent=11 // pred_region
          %s512 = ssub.s32 2048, 2048
          %513 = vsyncadd [#allocation9], %s512
          %s514 = sshll.u32 [#allocation8], 4
          %s515 = int_to_ptr.vmem [resolvable:$true] %s514
          %520 = dma.hbm_to_vmem [thread:$0]  %s3, 2048, %s515, [#allocation9], 64, 64, 4
        $region24: #{tpu_custom_call.1} parent=11 // pred_fallthru
          _
        // Predicated region
        $region25: #{tpu_custom_call.1} parent=11 // pred_check
          %p521 = pneg %p149
        $region26: #{tpu_custom_call.1} parent=11 // pred_check_branch
          %523 = sbr.rel (%p521) target = $region28
        $region27: #{tpu_custom_call.1} parent=11 // pred_region
          %s525 = ssub.s32 16, 16
          %526 = vsyncadd [#allocation9], %s525
          %s528 = sshll.u32 [#allocation10], 4
          %s529 = int_to_ptr.vmem [resolvable:$true] %s528
          %531 = dma.hbm_to_vmem [thread:$0]  %s4, 16, %s529, [#allocation9]
        $region28: #{tpu_custom_call.1} parent=11 // pred_fallthru
          _
        // Predicated region
        $region29: #{tpu_custom_call.1} parent=11 // pred_check
          %p532 = pneg %p170
        $region30: #{tpu_custom_call.1} parent=11 // pred_check_branch
          %534 = sbr.rel (%p532) target = $region32
        $region31: #{tpu_custom_call.1} parent=11 // pred_region
          %s536 = ssub.s32 1024, 1024
          %537 = vsyncadd [#allocation12], %s536
          %s538 = sshll.u32 [#allocation11], 4
          %s539 = int_to_ptr.vmem [resolvable:$true] %s538
          %544 = dma.hbm_to_vmem [thread:$0]  %s5, 1024, %s539, [#allocation12], 64, 64, 4
        $region32: #{tpu_custom_call.1} parent=11 // pred_fallthru
          _
        // Predicated region
        $region33: #{tpu_custom_call.1} parent=11 // pred_check
          %p545 = pneg %p191
        $region34: #{tpu_custom_call.1} parent=11 // pred_check_branch
          %547 = sbr.rel (%p545) target = $region36
        $region35: #{tpu_custom_call.1} parent=11 // pred_region
          %s549 = ssub.s32 16, 16
          %550 = vsyncadd [#allocation12], %s549
          %s552 = sshll.u32 [#allocation13], 4
          %s553 = int_to_ptr.vmem [resolvable:$true] %s552
          %555 = dma.hbm_to_vmem [thread:$0]  %s6, 16, %s553, [#allocation12]
        $region36: #{tpu_custom_call.1} parent=11 // pred_fallthru
          _
        // Predicated region
        $region37: #{tpu_custom_call.1} parent=11 // pred_check
          %p556 = pneg %p212
        $region38: #{tpu_custom_call.1} parent=11 // pred_check_branch
          %558 = sbr.rel (%p556) target = $region40
        $region39: #{tpu_custom_call.1} parent=11 // pred_region
          %s560 = ssub.s32 2048, 2048
          %561 = vsyncadd [#allocation15], %s560
          %s562 = sshll.u32 [#allocation14], 4
          %s563 = int_to_ptr.vmem [resolvable:$true] %s562
          %568 = dma.hbm_to_vmem [thread:$0]  %s7, 2048, %s563, [#allocation15], 64, 64, 4
        $region40: #{tpu_custom_call.1} parent=11 // pred_fallthru
          _
        // Predicated region
        $region41: #{tpu_custom_call.1} parent=11 // pred_check
          %p569 = pneg %p233
        $region42: #{tpu_custom_call.1} parent=11 // pred_check_branch
          %571 = sbr.rel (%p569) target = $region44
        $region43: #{tpu_custom_call.1} parent=11 // pred_region
          %s573 = ssub.s32 16, 16
          %574 = vsyncadd [#allocation15], %s573
          %s576 = sshll.u32 [#allocation16], 4
          %s577 = int_to_ptr.vmem [resolvable:$true] %s576
          %579 = dma.hbm_to_vmem [thread:$0]  %s8, 16, %s577, [#allocation15]
        $region44: #{tpu_custom_call.1} parent=11 // pred_fallthru
          _
        // Predicated region
        $region45: #{tpu_custom_call.1} parent=11 // pred_check
          %p580 = pneg %p254
        $region46: #{tpu_custom_call.1} parent=11 // pred_check_branch
          %582 = sbr.rel (%p580) target = $region48
        $region47: #{tpu_custom_call.1} parent=11 // pred_region
          %s584 = ssub.s32 2048, 2048
          %585 = vsyncadd [#allocation18], %s584
          %s586 = sshll.u32 [#allocation17], 4
          %s587 = int_to_ptr.vmem [resolvable:$true] %s586
          %592 = dma.hbm_to_vmem [thread:$0]  %s9, 2048, %s587, [#allocation18], 64, 64, 4
        $region48: #{tpu_custom_call.1} parent=11 // pred_fallthru
          _
        // Predicated region
        $region49: #{tpu_custom_call.1} parent=11 // pred_check
          %p593 = pneg %p275
        $region50: #{tpu_custom_call.1} parent=11 // pred_check_branch
          %595 = sbr.rel (%p593) target = $region52
        $region51: #{tpu_custom_call.1} parent=11 // pred_region
          %s597 = ssub.s32 16, 16
          %598 = vsyncadd [#allocation18], %s597
          %s600 = sshll.u32 [#allocation19], 4
          %s601 = int_to_ptr.vmem [resolvable:$true] %s600
          %603 = dma.hbm_to_vmem [thread:$0]  %s10, 16, %s601, [#allocation18]
        $region52: #{tpu_custom_call.1} parent=11 // pred_fallthru
          _
        // Predicated region
        $region53: #{tpu_custom_call.1} parent=11 // pred_check
          %p604 = pneg %p296
        $region54: #{tpu_custom_call.1} parent=11 // pred_check_branch
          %606 = sbr.rel (%p604) target = $region56
        $region55: #{tpu_custom_call.1} parent=11 // pred_region
          %s608 = ssub.s32 2048, 2048
          %609 = vsyncadd [#allocation21], %s608
          %s610 = sshll.u32 [#allocation20], 4
          %s611 = int_to_ptr.vmem [resolvable:$true] %s610
          %616 = dma.hbm_to_vmem [thread:$0]  %s11, 2048, %s611, [#allocation21], 64, 64, 4
        $region56: #{tpu_custom_call.1} parent=11 // pred_fallthru
          _
        // Predicated region
        $region57: #{tpu_custom_call.1} parent=11 // pred_check
          %p617 = pneg %p317
        $region58: #{tpu_custom_call.1} parent=11 // pred_check_branch
          %619 = sbr.rel (%p617) target = $region60
        $region59: #{tpu_custom_call.1} parent=11 // pred_region
          %s621 = ssub.s32 16, 16
          %622 = vsyncadd [#allocation21], %s621
          %s624 = sshll.u32 [#allocation22], 4
          %s625 = int_to_ptr.vmem [resolvable:$true] %s624
          %627 = dma.hbm_to_vmem [thread:$0]  %s12, 16, %s625, [#allocation21]
        $region60: #{tpu_custom_call.1} parent=11 // pred_fallthru
          _
        // Predicated region
        $region61: #{tpu_custom_call.1} parent=11 // pred_check
          %p628 = pneg %p338
        $region62: #{tpu_custom_call.1} parent=11 // pred_check_branch
          %630 = sbr.rel (%p628) target = $region64
        $region63: #{tpu_custom_call.1} parent=11 // pred_region
          %s632 = ssub.s32 2048, 2048
          %633 = vsyncadd [#allocation24], %s632
          %s634 = sshll.u32 [#allocation23], 4
          %s635 = int_to_ptr.vmem [resolvable:$true] %s634
          %640 = dma.hbm_to_vmem [thread:$0]  %s13, 2048, %s635, [#allocation24], 64, 64, 4
        $region64: #{tpu_custom_call.1} parent=11 // pred_fallthru
          _
        // Predicated region
        $region65: #{tpu_custom_call.1} parent=11 // pred_check
          %p641 = pneg %p359
        $region66: #{tpu_custom_call.1} parent=11 // pred_check_branch
          %643 = sbr.rel (%p641) target = $region68
        $region67: #{tpu_custom_call.1} parent=11 // pred_region
          %s645 = ssub.s32 16, 16
          %646 = vsyncadd [#allocation24], %s645
          %s648 = sshll.u32 [#allocation25], 4
          %s649 = int_to_ptr.vmem [resolvable:$true] %s648
          %651 = dma.hbm_to_vmem [thread:$0]  %s14, 16, %s649, [#allocation24]
        $region68: #{tpu_custom_call.1} parent=11 // pred_fallthru
          _
        // Predicated region
        $region69: #{tpu_custom_call.1} parent=11 // pred_check
          %p652 = pneg %p380
        $region70: #{tpu_custom_call.1} parent=11 // pred_check_branch
          %654 = sbr.rel (%p652) target = $region72
        $region71: #{tpu_custom_call.1} parent=11 // pred_region
          %s656 = ssub.s32 1024, 1024
          %657 = vsyncadd [#allocation27], %s656
          %s658 = sshll.u32 [#allocation26], 4
          %s659 = int_to_ptr.vmem [resolvable:$true] %s658
          %664 = dma.hbm_to_vmem [thread:$0]  %s15, 1024, %s659, [#allocation27], 64, 64, 4
        $region72: #{tpu_custom_call.1} parent=11 // pred_fallthru
          _
        // Predicated region
        $region73: #{tpu_custom_call.1} parent=11 // pred_check
          %p665 = pneg %p401
        $region74: #{tpu_custom_call.1} parent=11 // pred_check_branch
          %667 = sbr.rel (%p665) target = $region76
        $region75: #{tpu_custom_call.1} parent=11 // pred_region
          %s669 = ssub.s32 16, 16
          %670 = vsyncadd [#allocation27], %s669
          %s672 = sshll.u32 [#allocation28], 4
          %s673 = int_to_ptr.vmem [resolvable:$true] %s672
          %675 = dma.hbm_to_vmem [thread:$0]  %s16, 16, %s673, [#allocation27]
        $region76: #{tpu_custom_call.1} parent=11 // pred_fallthru
          _
        // Predicated region
        $region77: #{tpu_custom_call.1} parent=11 // pred_check
          %p676 = pneg %p422
        $region78: #{tpu_custom_call.1} parent=11 // pred_check_branch
          %678 = sbr.rel (%p676) target = $region80
        $region79: #{tpu_custom_call.1} parent=11 // pred_region
          _
        $region80: #{tpu_custom_call.1} parent=11 // pred_fallthru
          _
        // Predicated region
        $region81: #{tpu_custom_call.1} parent=11 // pred_check
          %p679 = pneg %p443
        $region82: #{tpu_custom_call.1} parent=11 // pred_check_branch
          %681 = sbr.rel (%p679) target = $region84
        $region83: #{tpu_custom_call.1} parent=11 // pred_region
          _
        $region84: #{tpu_custom_call.1} parent=11 // pred_fallthru
          _
      $region12: #{tpu_custom_call.1} parent=5 // pred_fallthru
        _
      %p682 = scmp.lt.s32.totalorder %s39, 2
      // Predicated region
      $region85: #{tpu_custom_call.1} parent=5 // pred_check
        %p683 = pneg %p682
      $region86: #{tpu_custom_call.1} parent=5 // pred_check_branch
        %685 = sbr.rel (%p683) target = $region88
      $region87: #{tpu_custom_call.1} parent=5 // pred_region
        // Predicated region
        $region89: #{tpu_custom_call.1} parent=87 // pred_check
          %p686 = pneg %p59
        $region90: #{tpu_custom_call.1} parent=87 // pred_check_branch
          %688 = sbr.rel (%p686) target = $region92
        $region91: #{tpu_custom_call.1} parent=87 // pred_region
          %s689 = sand.u32 %s49, 1
          %s690 = scalar_lea.sflag [#allocation3], %s689
          %s691 = sand.u32 %s49, 1
          %s692 = smul.addr %s691, 128
          %s693 = scalar_lea.vmem [#allocation2], %s692
          %s695 = ssub.s32 2048, 2048
          %696 = vsyncadd %s690, %s695
          %s697 = smul.addr %s39, 16
          %s698 = smul.addr %s697, 128
          %s699 = scalar_lea.hbm %s0, %s698
          %s700 = sshll.u32 %s693, 4
          %s701 = int_to_ptr.vmem [resolvable:$true] %s700
          %706 = dma.hbm_to_vmem [thread:$0]  %s699, 2048, %s701, %s690, 128, 128, 8
        $region92: #{tpu_custom_call.1} parent=87 // pred_fallthru
          _
      $region88: #{tpu_custom_call.1} parent=5 // pred_fallthru
        _
      %p707 = scmp.le.s32.totalorder 1, %s39
      %p708 = scmp.lt.s32.totalorder %s39, 3
      %p709 = pnand %p707, %p708
      %p710 = pneg %p709
      // Predicated region
      $region93: #{tpu_custom_call.1} parent=5 // pred_check
        _
      $region94: #{tpu_custom_call.1} parent=5 // pred_check_branch
        %712 = sbr.rel (%p709) target = $region96
      $region95: #{tpu_custom_call.1} parent=5 // pred_region
        %s713 = ssub.s32 %s39, 1
        %s714 = sand.u32 %s52, 1
        %s715 = scalar_lea.sflag [#allocation3], %s714
        %s716 = sand.u32 %s52, 1
        %s717 = smul.addr %s716, 128
        %s718 = scalar_lea.vmem [#allocation2], %s717
        // Predicated region
        $region97: #{tpu_custom_call.1} parent=95 // pred_check
          %p719 = pneg %p65
        $region98: #{tpu_custom_call.1} parent=95 // pred_check_branch
          %721 = sbr.rel (%p719) target = $region100
        $region99: #{tpu_custom_call.1} parent=95 // pred_region
          %722 = dma.done %s715, 2048
        $region100: #{tpu_custom_call.1} parent=95 // pred_fallthru
          _
        // Predicated region
        $region101: #{tpu_custom_call.1} parent=95 // pred_check
          %p723 = pneg %p86
        $region102: #{tpu_custom_call.1} parent=95 // pred_check_branch
          %725 = sbr.rel (%p723) target = $region104
        $region103: #{tpu_custom_call.1} parent=95 // pred_region
          %726 = dma.done [#allocation6], 2048
        $region104: #{tpu_custom_call.1} parent=95 // pred_fallthru
          _
        // Predicated region
        $region105: #{tpu_custom_call.1} parent=95 // pred_check
          %p727 = pneg %p107
        $region106: #{tpu_custom_call.1} parent=95 // pred_check_branch
          %729 = sbr.rel (%p727) target = $region108
        $region107: #{tpu_custom_call.1} parent=95 // pred_region
          %730 = dma.done [#allocation6], 16
        $region108: #{tpu_custom_call.1} parent=95 // pred_fallthru
          _
        // Predicated region
        $region109: #{tpu_custom_call.1} parent=95 // pred_check
          %p731 = pneg %p128
        $region110: #{tpu_custom_call.1} parent=95 // pred_check_branch
          %733 = sbr.rel (%p731) target = $region112
        $region111: #{tpu_custom_call.1} parent=95 // pred_region
          %734 = dma.done [#allocation9], 2048
        $region112: #{tpu_custom_call.1} parent=95 // pred_fallthru
          _
        // Predicated region
        $region113: #{tpu_custom_call.1} parent=95 // pred_check
          %p735 = pneg %p149
        $region114: #{tpu_custom_call.1} parent=95 // pred_check_branch
          %737 = sbr.rel (%p735) target = $region116
        $region115: #{tpu_custom_call.1} parent=95 // pred_region
          %738 = dma.done [#allocation9], 16
        $region116: #{tpu_custom_call.1} parent=95 // pred_fallthru
          _
        // Predicated region
        $region117: #{tpu_custom_call.1} parent=95 // pred_check
          %p739 = pneg %p170
        $region118: #{tpu_custom_call.1} parent=95 // pred_check_branch
          %741 = sbr.rel (%p739) target = $region120
        $region119: #{tpu_custom_call.1} parent=95 // pred_region
          %742 = dma.done [#allocation12], 1024
        $region120: #{tpu_custom_call.1} parent=95 // pred_fallthru
          _
        // Predicated region
        $region121: #{tpu_custom_call.1} parent=95 // pred_check
          %p743 = pneg %p191
        $region122: #{tpu_custom_call.1} parent=95 // pred_check_branch
          %745 = sbr.rel (%p743) target = $region124
        $region123: #{tpu_custom_call.1} parent=95 // pred_region
          %746 = dma.done [#allocation12], 16
        $region124: #{tpu_custom_call.1} parent=95 // pred_fallthru
          _
        // Predicated region
        $region125: #{tpu_custom_call.1} parent=95 // pred_check
          %p747 = pneg %p212
        $region126: #{tpu_custom_call.1} parent=95 // pred_check_branch
          %749 = sbr.rel (%p747) target = $region128
        $region127: #{tpu_custom_call.1} parent=95 // pred_region
          %750 = dma.done [#allocation15], 2048
        $region128: #{tpu_custom_call.1} parent=95 // pred_fallthru
          _
        // Predicated region
        $region129: #{tpu_custom_call.1} parent=95 // pred_check
          %p751 = pneg %p233
        $region130: #{tpu_custom_call.1} parent=95 // pred_check_branch
          %753 = sbr.rel (%p751) target = $region132
        $region131: #{tpu_custom_call.1} parent=95 // pred_region
          %754 = dma.done [#allocation15], 16
        $region132: #{tpu_custom_call.1} parent=95 // pred_fallthru
          _
        // Predicated region
        $region133: #{tpu_custom_call.1} parent=95 // pred_check
          %p755 = pneg %p254
        $region134: #{tpu_custom_call.1} parent=95 // pred_check_branch
          %757 = sbr.rel (%p755) target = $region136
        $region135: #{tpu_custom_call.1} parent=95 // pred_region
          %758 = dma.done [#allocation18], 2048
        $region136: #{tpu_custom_call.1} parent=95 // pred_fallthru
          _
        // Predicated region
        $region137: #{tpu_custom_call.1} parent=95 // pred_check
          %p759 = pneg %p275
        $region138: #{tpu_custom_call.1} parent=95 // pred_check_branch
          %761 = sbr.rel (%p759) target = $region140
        $region139: #{tpu_custom_call.1} parent=95 // pred_region
          %762 = dma.done [#allocation18], 16
        $region140: #{tpu_custom_call.1} parent=95 // pred_fallthru
          _
        // Predicated region
        $region141: #{tpu_custom_call.1} parent=95 // pred_check
          %p763 = pneg %p296
        $region142: #{tpu_custom_call.1} parent=95 // pred_check_branch
          %765 = sbr.rel (%p763) target = $region144
        $region143: #{tpu_custom_call.1} parent=95 // pred_region
          %766 = dma.done [#allocation21], 2048
        $region144: #{tpu_custom_call.1} parent=95 // pred_fallthru
          _
        // Predicated region
        $region145: #{tpu_custom_call.1} parent=95 // pred_check
          %p767 = pneg %p317
        $region146: #{tpu_custom_call.1} parent=95 // pred_check_branch
          %769 = sbr.rel (%p767) target = $region148
        $region147: #{tpu_custom_call.1} parent=95 // pred_region
          %770 = dma.done [#allocation21], 16
        $region148: #{tpu_custom_call.1} parent=95 // pred_fallthru
          _
        // Predicated region
        $region149: #{tpu_custom_call.1} parent=95 // pred_check
          %p771 = pneg %p338
        $region150: #{tpu_custom_call.1} parent=95 // pred_check_branch
          %773 = sbr.rel (%p771) target = $region152
        $region151: #{tpu_custom_call.1} parent=95 // pred_region
          %774 = dma.done [#allocation24], 2048
        $region152: #{tpu_custom_call.1} parent=95 // pred_fallthru
          _
        // Predicated region
        $region153: #{tpu_custom_call.1} parent=95 // pred_check
          %p775 = pneg %p359
        $region154: #{tpu_custom_call.1} parent=95 // pred_check_branch
          %777 = sbr.rel (%p775) target = $region156
        $region155: #{tpu_custom_call.1} parent=95 // pred_region
          %778 = dma.done [#allocation24], 16
        $region156: #{tpu_custom_call.1} parent=95 // pred_fallthru
          _
        // Predicated region
        $region157: #{tpu_custom_call.1} parent=95 // pred_check
          %p779 = pneg %p380
        $region158: #{tpu_custom_call.1} parent=95 // pred_check_branch
          %781 = sbr.rel (%p779) target = $region160
        $region159: #{tpu_custom_call.1} parent=95 // pred_region
          %782 = dma.done [#allocation27], 1024
        $region160: #{tpu_custom_call.1} parent=95 // pred_fallthru
          _
        // Predicated region
        $region161: #{tpu_custom_call.1} parent=95 // pred_check
          %p783 = pneg %p401
        $region162: #{tpu_custom_call.1} parent=95 // pred_check_branch
          %785 = sbr.rel (%p783) target = $region164
        $region163: #{tpu_custom_call.1} parent=95 // pred_region
          %786 = dma.done [#allocation27], 16
        $region164: #{tpu_custom_call.1} parent=95 // pred_fallthru
          _
        %s787 = sand.u32 %s52, 1
        %s788 = scalar_lea.sflag [#allocation3], %s787
        %s789 = sand.u32 %s52, 1
        %s790 = smul.addr %s789, 128
        %s791 = scalar_lea.vmem [#allocation2], %s790
        %p792 = pneg %p65
        %p793 = pneg %p62
        %p794 = pneg %p86
        %p795 = pneg %p83
        %p796 = pneg %p107
        %p797 = pneg %p104
        %p798 = pneg %p128
        %p799 = pneg %p125
        %p800 = pneg %p149
        %p801 = pneg %p146
        %p802 = pneg %p170
        %p803 = pneg %p167
        %p804 = pneg %p191
        %p805 = pneg %p188
        %p806 = pneg %p212
        %p807 = pneg %p209
        %p808 = pneg %p233
        %p809 = pneg %p230
        %p810 = pneg %p254
        %p811 = pneg %p251
        %p812 = pneg %p275
        %p813 = pneg %p272
        %p814 = pneg %p296
        %p815 = pneg %p293
        %p816 = pneg %p317
        %p817 = pneg %p314
        %p818 = pneg %p338
        %p819 = pneg %p335
        %p820 = pneg %p359
        %p821 = pneg %p356
        %p822 = pneg %p380
        %p823 = pneg %p377
        %p824 = pneg %p401
        %p825 = pneg %p398
        %p826 = pneg %p422
        %p827 = pneg %p419
        %p828 = pneg %p443
        %p829 = pneg %p440
        %p830 = pneg %p469
        %p831 = pneg %p466
        %s832 = sand.u32 %s456, 1
        %s833 = scalar_lea.sflag [#allocation4], %s832
        %s834 = sand.u32 %s456, 1
        %s835 = smul.addr %s834, 8
        %s836 = scalar_lea.vmem [#allocation29], %s835
        %v838 = vld [vmem:[%s718] sm:$0xff]
        %v839 = vld [vmem:[%s718 + $0x8] sm:$0xff]
        %v840 = vld [vmem:[%s718 + $0x10] sm:$0xff]
        %v841 = vld [vmem:[%s718 + $0x18] sm:$0xff]
        %v842 = vld [vmem:[%s718 + $0x20] sm:$0xff]
        %v843 = vld [vmem:[%s718 + $0x28] sm:$0xff]
        %v844 = vld [vmem:[%s718 + $0x30] sm:$0xff]
        %v845 = vld [vmem:[%s718 + $0x38] sm:$0xff]
        %v846 = vld [vmem:[%s718 + $0x40] sm:$0xff]
        %v847 = vld [vmem:[%s718 + $0x48] sm:$0xff]
        %v848 = vld [vmem:[%s718 + $0x50] sm:$0xff]
        %v849 = vld [vmem:[%s718 + $0x58] sm:$0xff]
        %v850 = vld [vmem:[%s718 + $0x60] sm:$0xff]
        %v851 = vld [vmem:[%s718 + $0x68] sm:$0xff]
        %v852 = vld [vmem:[%s718 + $0x70] sm:$0xff]
        %v853 = vld [vmem:[%s718 + $0x78] sm:$0xff]
        %v854 = vpack.c.bf16 %v839, %v838
        %v855 = vpack.c.bf16 %v841, %v840
        %v856 = vpack.c.bf16 %v843, %v842
        %v857 = vpack.c.bf16 %v845, %v844
        %v858 = vpack.c.bf16 %v847, %v846
        %v859 = vpack.c.bf16 %v849, %v848
        %v860 = vpack.c.bf16 %v851, %v850
        %v861 = vpack.c.bf16 %v853, %v852
        %v862 = vld [vmem:[#allocation5] sm:$0xf]
        %v863 = vld [vmem:[#allocation5 + $0x4] sm:$0xf]
        %v864 = vld [vmem:[#allocation5 + $0x8] sm:$0xf]
        %v865 = vld [vmem:[#allocation5 + $0xc] sm:$0xf]
        %v866 = vld [vmem:[#allocation5 + $0x10] sm:$0xf]
        %v867 = vld [vmem:[#allocation5 + $0x14] sm:$0xf]
        %v868 = vld [vmem:[#allocation5 + $0x18] sm:$0xf]
        %v869 = vld [vmem:[#allocation5 + $0x1c] sm:$0xf]
        %v870 = vld [vmem:[#allocation5 + $0x20] sm:$0xf]
        %v871 = vld [vmem:[#allocation5 + $0x24] sm:$0xf]
        %v872 = vld [vmem:[#allocation5 + $0x28] sm:$0xf]
        %v873 = vld [vmem:[#allocation5 + $0x2c] sm:$0xf]
        %v874 = vld [vmem:[#allocation5 + $0x30] sm:$0xf]
        %v875 = vld [vmem:[#allocation5 + $0x34] sm:$0xf]
        %v876 = vld [vmem:[#allocation5 + $0x38] sm:$0xf]
        %v877 = vld [vmem:[#allocation5 + $0x3c] sm:$0xf]
        %v894 = vunpack.c.l.b16 %v862
        %v895 = vunpack.c.l.b16 %v863
        %v896 = vunpack.c.l.b16 %v864
        %v897 = vunpack.c.l.b16 %v865
        %v898 = vunpack.c.l.b16 %v866
        %v899 = vunpack.c.l.b16 %v867
        %v900 = vunpack.c.l.b16 %v868
        %v901 = vunpack.c.l.b16 %v869
        %v902 = vunpack.c.l.b16 %v870
        %v903 = vunpack.c.l.b16 %v871
        %v904 = vunpack.c.l.b16 %v872
        %v905 = vunpack.c.l.b16 %v873
        %v906 = vunpack.c.l.b16 %v874
        %v907 = vunpack.c.l.b16 %v875
        %v908 = vunpack.c.l.b16 %v876
        %v909 = vunpack.c.l.b16 %v877
        %v910 = vpack.c.b16 %v895, %v894
        %v911 = vpack.c.b16 %v897, %v896
        %v912 = vpack.c.b16 %v899, %v898
        %v913 = vpack.c.b16 %v901, %v900
        %v914 = vpack.c.b16 %v903, %v902
        %v915 = vpack.c.b16 %v905, %v904
        %v916 = vpack.c.b16 %v907, %v906
        %v917 = vpack.c.b16 %v909, %v908
        %926 = vmatprep.subr.bf16.mxu0 0
        %927 = vmatpush1.bf16.msra.mxu0 %v910
        %928 = vmatprep.subr.bf16.mxu0 0
        %929 = vmatpush1.bf16.msra.mxu0 %v911
        %930 = vmatprep.subr.bf16.mxu0 0
        %931 = vmatpush1.bf16.msra.mxu0 %v912
        %932 = vmatprep.subr.bf16.mxu0 0
        %933 = vmatpush1.bf16.msra.mxu0 %v913
        %934 = vmatprep.subr.bf16.mxu0 0
        %935 = vmatpush1.bf16.msra.mxu0 %v914
        %936 = vmatprep.subr.bf16.mxu0 0
        %937 = vmatpush1.bf16.msra.mxu0 %v915
        %938 = vmatprep.subr.bf16.mxu0 0
        %939 = vmatpush1.bf16.msra.mxu0 %v916
        %940 = vmatprep.subr.bf16.mxu0 0
        %941 = vmatpush1.bf16.msra.mxu0 %v917
        %942 = vmatprep.subr.bf16.mxu0 0
        %943 = vmatpush1.bf16.msra.mxu0 0
        %944 = vmatprep.subr.bf16.mxu0 0
        %945 = vmatpush1.bf16.msra.mxu0 0
        %946 = vmatprep.subr.bf16.mxu0 0
        %947 = vmatpush1.bf16.msra.mxu0 0
        %948 = vmatprep.subr.bf16.mxu0 0
        %949 = vmatpush1.bf16.msra.mxu0 0
        %950 = vmatprep.subr.bf16.mxu0 0
        %951 = vmatpush1.bf16.msra.mxu0 0
        %952 = vmatprep.subr.bf16.mxu0 0
        %953 = vmatpush1.bf16.msra.mxu0 0
        %954 = vmatprep.subr.bf16.mxu0 0
        %955 = vmatpush1.bf16.msra.mxu0 0
        %956 = vmatprep.subr.bf16.mxu0 0
        %957 = vmatpush1.bf16.msra.mxu0 0
        %958 = vmatprep.mubr.bf16.mxu0 0
        %959 = vmatmul.mubr.bf16.gmra.mrb[0].mxu0 %v854
        %v960 = vpop.f32.mrb[0].mxu0
        %v961 = vadd.f32 0.0, %v960
        %v962 = vpop.f32.mrb[0].mxu0
        %v963 = vpop.f32.mrb[0].mxu0
        %v964 = vadd.f32 0.0, %v963
        %v965 = vpop.f32.mrb[0].mxu0
        %966 = vmatprep.mubr.bf16.mxu0 0
        %967 = vmatmul.mubr.bf16.gmra.mrb[0].mxu0 %v855
        %v968 = vpop.f32.mrb[0].mxu0
        %v969 = vadd.f32 0.0, %v968
        %v970 = vpop.f32.mrb[0].mxu0
        %v971 = vpop.f32.mrb[0].mxu0
        %v972 = vadd.f32 0.0, %v971
        %v973 = vpop.f32.mrb[0].mxu0
        %974 = vmatprep.mubr.bf16.mxu0 0
        %975 = vmatmul.mubr.bf16.gmra.mrb[0].mxu0 %v856
        %v976 = vpop.f32.mrb[0].mxu0
        %v977 = vadd.f32 0.0, %v976
        %v978 = vpop.f32.mrb[0].mxu0
        %v979 = vpop.f32.mrb[0].mxu0
        %v980 = vadd.f32 0.0, %v979
        %v981 = vpop.f32.mrb[0].mxu0
        %982 = vmatprep.mubr.bf16.mxu0 0
        %983 = vmatmul.mubr.bf16.gmra.mrb[0].mxu0 %v857
        %v984 = vpop.f32.mrb[0].mxu0
        %v985 = vadd.f32 0.0, %v984
        %v986 = vpop.f32.mrb[0].mxu0
        %v987 = vpop.f32.mrb[0].mxu0
        %v988 = vadd.f32 0.0, %v987
        %v989 = vpop.f32.mrb[0].mxu0
        %990 = vmatprep.mubr.bf16.mxu0 0
        %991 = vmatmul.mubr.bf16.gmra.mrb[0].mxu0 %v858
        %v992 = vpop.f32.mrb[0].mxu0
        %v993 = vadd.f32 0.0, %v992
        %v994 = vpop.f32.mrb[0].mxu0
        %v995 = vpop.f32.mrb[0].mxu0
        %v996 = vadd.f32 0.0, %v995
        %v997 = vpop.f32.mrb[0].mxu0
        %998 = vmatprep.mubr.bf16.mxu0 0
        %999 = vmatmul.mubr.bf16.gmra.mrb[0].mxu0 %v859
        %v1000 = vpop.f32.mrb[0].mxu0
        %v1001 = vadd.f32 0.0, %v1000
        %v1002 = vpop.f32.mrb[0].mxu0
        %v1003 = vpop.f32.mrb[0].mxu0
        %v1004 = vadd.f32 0.0, %v1003
        %v1005 = vpop.f32.mrb[0].mxu0
        %1006 = vmatprep.mubr.bf16.mxu0 0
        %1007 = vmatmul.mubr.bf16.gmra.mrb[0].mxu0 %v860
        %v1008 = vpop.f32.mrb[0].mxu0
        %v1009 = vadd.f32 0.0, %v1008
        %v1010 = vpop.f32.mrb[0].mxu0
        %v1011 = vpop.f32.mrb[0].mxu0
        %v1012 = vadd.f32 0.0, %v1011
        %v1013 = vpop.f32.mrb[0].mxu0
        %1014 = vmatprep.mubr.bf16.mxu0 0
        %1015 = vmatmul.mubr.bf16.gmra.mrb[0].mxu0 %v861
        %v1016 = vpop.f32.mrb[0].mxu0
        %v1017 = vadd.f32 0.0, %v1016
        %v1018 = vpop.f32.mrb[0].mxu0
        %v1019 = vpop.f32.mrb[0].mxu0
        %v1020 = vpop.f32.mrb[0].mxu0
        %1021 = vdwg.mxu0
        %s1022 = scalar_lea.vmem [#allocation5], 64
        %v1023 = vld [vmem:[%s1022] sm:$0xf]
        %v1024 = vld [vmem:[%s1022 + $0x4] sm:$0xf]
        %v1025 = vld [vmem:[%s1022 + $0x8] sm:$0xf]
        %v1026 = vld [vmem:[%s1022 + $0xc] sm:$0xf]
        %v1027 = vld [vmem:[%s1022 + $0x10] sm:$0xf]
        %v1028 = vld [vmem:[%s1022 + $0x14] sm:$0xf]
        %v1029 = vld [vmem:[%s1022 + $0x18] sm:$0xf]
        %v1030 = vld [vmem:[%s1022 + $0x1c] sm:$0xf]
        %v1031 = vld [vmem:[%s1022 + $0x20] sm:$0xf]
        %v1032 = vld [vmem:[%s1022 + $0x24] sm:$0xf]
        %v1033 = vld [vmem:[%s1022 + $0x28] sm:$0xf]
        %v1034 = vld [vmem:[%s1022 + $0x2c] sm:$0xf]
        %v1035 = vld [vmem:[%s1022 + $0x30] sm:$0xf]
        %v1036 = vld [vmem:[%s1022 + $0x34] sm:$0xf]
        %v1037 = vld [vmem:[%s1022 + $0x38] sm:$0xf]
        %v1038 = vld [vmem:[%s1022 + $0x3c] sm:$0xf]
        %v1055 = vunpack.c.l.b16 %v1023
        %v1056 = vunpack.c.l.b16 %v1024
        %v1057 = vunpack.c.l.b16 %v1025
        %v1058 = vunpack.c.l.b16 %v1026
        %v1059 = vunpack.c.l.b16 %v1027
        %v1060 = vunpack.c.l.b16 %v1028
        %v1061 = vunpack.c.l.b16 %v1029
        %v1062 = vunpack.c.l.b16 %v1030
        %v1063 = vunpack.c.l.b16 %v1031
        %v1064 = vunpack.c.l.b16 %v1032
        %v1065 = vunpack.c.l.b16 %v1033
        %v1066 = vunpack.c.l.b16 %v1034
        %v1067 = vunpack.c.l.b16 %v1035
        %v1068 = vunpack.c.l.b16 %v1036
        %v1069 = vunpack.c.l.b16 %v1037
        %v1070 = vunpack.c.l.b16 %v1038
        %v1071 = vpack.c.b16 %v1056, %v1055
        %v1072 = vpack.c.b16 %v1058, %v1057
        %v1073 = vpack.c.b16 %v1060, %v1059
        %v1074 = vpack.c.b16 %v1062, %v1061
        %v1075 = vpack.c.b16 %v1064, %v1063
        %v1076 = vpack.c.b16 %v1066, %v1065
        %v1077 = vpack.c.b16 %v1068, %v1067
        %v1078 = vpack.c.b16 %v1070, %v1069
        %1087 = vmatprep.subr.bf16.mxu0 0
        %1088 = vmatpush1.bf16.msra.mxu0 %v1071
        %1089 = vmatprep.subr.bf16.mxu0 0
        %1090 = vmatpush1.bf16.msra.mxu0 %v1072
        %1091 = vmatprep.subr.bf16.mxu0 0
        %1092 = vmatpush1.bf16.msra.mxu0 %v1073
        %1093 = vmatprep.subr.bf16.mxu0 0
        %1094 = vmatpush1.bf16.msra.mxu0 %v1074
        %1095 = vmatprep.subr.bf16.mxu0 0
        %1096 = vmatpush1.bf16.msra.mxu0 %v1075
        %1097 = vmatprep.subr.bf16.mxu0 0
        %1098 = vmatpush1.bf16.msra.mxu0 %v1076
        %1099 = vmatprep.subr.bf16.mxu0 0
        %1100 = vmatpush1.bf16.msra.mxu0 %v1077
        %1101 = vmatprep.subr.bf16.mxu0 0
        %1102 = vmatpush1.bf16.msra.mxu0 %v1078
        %1103 = vmatprep.subr.bf16.mxu0 0
        %1104 = vmatpush1.bf16.msra.mxu0 0
        %1105 = vmatprep.subr.bf16.mxu0 0
        %1106 = vmatpush1.bf16.msra.mxu0 0
        %1107 = vmatprep.subr.bf16.mxu0 0
        %1108 = vmatpush1.bf16.msra.mxu0 0
        %1109 = vmatprep.subr.bf16.mxu0 0
        %1110 = vmatpush1.bf16.msra.mxu0 0
        %1111 = vmatprep.subr.bf16.mxu0 0
        %1112 = vmatpush1.bf16.msra.mxu0 0
        %1113 = vmatprep.subr.bf16.mxu0 0
        %1114 = vmatpush1.bf16.msra.mxu0 0
        %1115 = vmatprep.subr.bf16.mxu0 0
        %1116 = vmatpush1.bf16.msra.mxu0 0
        %1117 = vmatprep.subr.bf16.mxu0 0
        %1118 = vmatpush1.bf16.msra.mxu0 0
        %1119 = vmatprep.mubr.bf16.mxu0 0
        %1120 = vmatmul.mubr.bf16.gmra.mrb[0].mxu0 %v854
        %v1121 = vpop.f32.mrb[0].mxu0
        %v1122 = vadd.f32 0.0, %v1121
        %v1123 = vpop.f32.mrb[0].mxu0
        %v1124 = vpop.f32.mrb[0].mxu0
        %v1125 = vadd.f32 0.0, %v1124
        %v1126 = vpop.f32.mrb[0].mxu0
        %1127 = vmatprep.mubr.bf16.mxu0 0
        %1128 = vmatmul.mubr.bf16.gmra.mrb[0].mxu0 %v855
        %v1129 = vpop.f32.mrb[0].mxu0
        %v1130 = vadd.f32 0.0, %v1129
        %v1131 = vpop.f32.mrb[0].mxu0
        %v1132 = vpop.f32.mrb[0].mxu0
        %v1133 = vadd.f32 0.0, %v1132
        %v1134 = vpop.f32.mrb[0].mxu0
        %1135 = vmatprep.mubr.bf16.mxu0 0
        %1136 = vmatmul.mubr.bf16.gmra.mrb[0].mxu0 %v856
        %v1137 = vpop.f32.mrb[0].mxu0
        %v1138 = vadd.f32 0.0, %v1137
        %v1139 = vpop.f32.mrb[0].mxu0
        %v1140 = vpop.f32.mrb[0].mxu0
        %v1141 = vadd.f32 0.0, %v1140
        %v1142 = vpop.f32.mrb[0].mxu0
        %1143 = vmatprep.mubr.bf16.mxu0 0
        %1144 = vmatmul.mubr.bf16.gmra.mrb[0].mxu0 %v857
        %v1145 = vpop.f32.mrb[0].mxu0
        %v1146 = vadd.f32 0.0, %v1145
        %v1147 = vpop.f32.mrb[0].mxu0
        %v1148 = vpop.f32.mrb[0].mxu0
        %v1149 = vadd.f32 0.0, %v1148
        %v1150 = vpop.f32.mrb[0].mxu0
        %1151 = vmatprep.mubr.bf16.mxu0 0
        %1152 = vmatmul.mubr.bf16.gmra.mrb[0].mxu0 %v858
        %v1153 = vpop.f32.mrb[0].mxu0
        %v1154 = vadd.f32 0.0, %v1153
        %v1155 = vpop.f32.mrb[0].mxu0
        %v1156 = vpop.f32.mrb[0].mxu0
        %v1157 = vadd.f32 0.0, %v1156
        %v1158 = vpop.f32.mrb[0].mxu0
        %1159 = vmatprep.mubr.bf16.mxu0 0
        %1160 = vmatmul.mubr.bf16.gmra.mrb[0].mxu0 %v859
        %v1161 = vpop.f32.mrb[0].mxu0
        %v1162 = vadd.f32 0.0, %v1161
        %v1163 = vpop.f32.mrb[0].mxu0
        %v1164 = vpop.f32.mrb[0].mxu0
        %v1165 = vadd.f32 0.0, %v1164
        %v1166 = vpop.f32.mrb[0].mxu0
        %1167 = vmatprep.mubr.bf16.mxu0 0
        %1168 = vmatmul.mubr.bf16.gmra.mrb[0].mxu0 %v860
        %v1169 = vpop.f32.mrb[0].mxu0
        %v1170 = vadd.f32 0.0, %v1169
        %v1171 = vpop.f32.mrb[0].mxu0
        %v1172 = vpop.f32.mrb[0].mxu0
        %v1173 = vadd.f32 0.0, %v1172
        %v1174 = vpop.f32.mrb[0].mxu0
        %1175 = vmatprep.mubr.bf16.mxu0 0
        %1176 = vmatmul.mubr.bf16.gmra.mrb[0].mxu0 %v861
        %v1177 = vpop.f32.mrb[0].mxu0
        %v1178 = vadd.f32 0.0, %v1177
        %v1179 = vpop.f32.mrb[0].mxu0
        %v1180 = vpop.f32.mrb[0].mxu0
        %v1181 = vadd.f32 0.0, %v1180
        %v1182 = vpop.f32.mrb[0].mxu0
        %1183 = vdwg.mxu0
        %v1184 = vadd.f32 %v1122, 0.0
        %v1185 = vadd.f32 %v961, %v1125
        %v1186 = vadd.f32 %v964, %v1130
        %v1187 = vadd.f32 %v969, %v1133
        %v1188 = vadd.f32 %v972, %v1138
        %v1189 = vadd.f32 %v977, %v1141
        %v1190 = vadd.f32 %v980, %v1146
        %v1191 = vadd.f32 %v985, %v1149
        %v1192 = vadd.f32 %v988, %v1154
        %v1193 = vadd.f32 %v993, %v1157
        %v1194 = vadd.f32 %v996, %v1162
        %v1195 = vadd.f32 %v1001, %v1165
        %v1196 = vadd.f32 %v1004, %v1170
        %v1197 = vadd.f32 %v1009, %v1173
        %v1198 = vadd.f32 %v1012, %v1178
        %v1199 = vadd.f32 %v1017, %v1181
        %v1200 = vld [vmem:[#allocation7] sm:$0x1]
        %v1202 = vlaneseq
        %v1203 = vshrl.u32 %v1202, 7
        %v1204 = vsub.s32 0, %v1203
        %v1205 = vrot.slane %v1200, %v1204
        %v1207 = vadd.f32 %v1184, %v1205
        %v1208 = vadd.f32 %v1185, %v1205
        %v1209 = vadd.f32 %v1186, %v1205
        %v1210 = vadd.f32 %v1187, %v1205
        %v1211 = vadd.f32 %v1188, %v1205
        %v1212 = vadd.f32 %v1189, %v1205
        %v1213 = vadd.f32 %v1190, %v1205
        %v1214 = vadd.f32 %v1191, %v1205
        %v1215 = vadd.f32 %v1192, %v1205
        %v1216 = vadd.f32 %v1193, %v1205
        %v1217 = vadd.f32 %v1194, %v1205
        %v1218 = vadd.f32 %v1195, %v1205
        %v1219 = vadd.f32 %v1196, %v1205
        %v1220 = vadd.f32 %v1197, %v1205
        %v1221 = vadd.f32 %v1198, %v1205
        %v1222 = vadd.f32 %v1199, %v1205
        %v1223 = vmax.f32 %v1207, 0.0
        %v1224 = vmax.f32 %v1208, 0.0
        %v1225 = vmax.f32 %v1209, 0.0
        %v1226 = vmax.f32 %v1210, 0.0
        %v1227 = vmax.f32 %v1211, 0.0
        %v1228 = vmax.f32 %v1212, 0.0
        %v1229 = vmax.f32 %v1213, 0.0
        %v1230 = vmax.f32 %v1214, 0.0
        %v1231 = vmax.f32 %v1215, 0.0
        %v1232 = vmax.f32 %v1216, 0.0
        %v1233 = vmax.f32 %v1217, 0.0
        %v1234 = vmax.f32 %v1218, 0.0
        %v1235 = vmax.f32 %v1219, 0.0
        %v1236 = vmax.f32 %v1220, 0.0
        %v1237 = vmax.f32 %v1221, 0.0
        %v1238 = vmax.f32 %v1222, 0.0
        %v1239 = vpack.c.bf16 %v1224, %v1223
        %v1240 = vpack.c.bf16 %v1226, %v1225
        %v1241 = vpack.c.bf16 %v1228, %v1227
        %v1242 = vpack.c.bf16 %v1230, %v1229
        %v1243 = vpack.c.bf16 %v1232, %v1231
        %v1244 = vpack.c.bf16 %v1234, %v1233
        %v1245 = vpack.c.bf16 %v1236, %v1235
        %v1246 = vpack.c.bf16 %v1238, %v1237
        %v1247 = vld [vmem:[#allocation8] sm:$0xf]
        %v1248 = vld [vmem:[#allocation8 + $0x4] sm:$0xf]
        %v1249 = vld [vmem:[#allocation8 + $0x8] sm:$0xf]
        %v1250 = vld [vmem:[#allocation8 + $0xc] sm:$0xf]
        %v1251 = vld [vmem:[#allocation8 + $0x10] sm:$0xf]
        %v1252 = vld [vmem:[#allocation8 + $0x14] sm:$0xf]
        %v1253 = vld [vmem:[#allocation8 + $0x18] sm:$0xf]
        %v1254 = vld [vmem:[#allocation8 + $0x1c] sm:$0xf]
        %v1255 = vld [vmem:[#allocation8 + $0x20] sm:$0xf]
        %v1256 = vld [vmem:[#allocation8 + $0x24] sm:$0xf]
        %v1257 = vld [vmem:[#allocation8 + $0x28] sm:$0xf]
        %v1258 = vld [vmem:[#allocation8 + $0x2c] sm:$0xf]
        %v1259 = vld [vmem:[#allocation8 + $0x30] sm:$0xf]
        %v1260 = vld [vmem:[#allocation8 + $0x34] sm:$0xf]
        %v1261 = vld [vmem:[#allocation8 + $0x38] sm:$0xf]
        %v1262 = vld [vmem:[#allocation8 + $0x3c] sm:$0xf]
        %v1279 = vunpack.c.l.b16 %v1247
        %v1280 = vunpack.c.l.b16 %v1248
        %v1281 = vunpack.c.l.b16 %v1249
        %v1282 = vunpack.c.l.b16 %v1250
        %v1283 = vunpack.c.l.b16 %v1251
        %v1284 = vunpack.c.l.b16 %v1252
        %v1285 = vunpack.c.l.b16 %v1253
        %v1286 = vunpack.c.l.b16 %v1254
        %v1287 = vunpack.c.l.b16 %v1255
        %v1288 = vunpack.c.l.b16 %v1256
        %v1289 = vunpack.c.l.b16 %v1257
        %v1290 = vunpack.c.l.b16 %v1258
        %v1291 = vunpack.c.l.b16 %v1259
        %v1292 = vunpack.c.l.b16 %v1260
        %v1293 = vunpack.c.l.b16 %v1261
        %v1294 = vunpack.c.l.b16 %v1262
        %v1295 = vpack.c.b16 %v1280, %v1279
        %v1296 = vpack.c.b16 %v1282, %v1281
        %v1297 = vpack.c.b16 %v1284, %v1283
        %v1298 = vpack.c.b16 %v1286, %v1285
        %v1299 = vpack.c.b16 %v1288, %v1287
        %v1300 = vpack.c.b16 %v1290, %v1289
        %v1301 = vpack.c.b16 %v1292, %v1291
        %v1302 = vpack.c.b16 %v1294, %v1293
        %1311 = vmatprep.subr.bf16.mxu0 0
        %1312 = vmatpush1.bf16.msra.mxu0 %v1295
        %1313 = vmatprep.subr.bf16.mxu0 0
        %1314 = vmatpush1.bf16.msra.mxu0 %v1296
        %1315 = vmatprep.subr.bf16.mxu0 0
        %1316 = vmatpush1.bf16.msra.mxu0 %v1297
        %1317 = vmatprep.subr.bf16.mxu0 0
        %1318 = vmatpush1.bf16.msra.mxu0 %v1298
        %1319 = vmatprep.subr.bf16.mxu0 0
        %1320 = vmatpush1.bf16.msra.mxu0 %v1299
        %1321 = vmatprep.subr.bf16.mxu0 0
        %1322 = vmatpush1.bf16.msra.mxu0 %v1300
        %1323 = vmatprep.subr.bf16.mxu0 0
        %1324 = vmatpush1.bf16.msra.mxu0 %v1301
        %1325 = vmatprep.subr.bf16.mxu0 0
        %1326 = vmatpush1.bf16.msra.mxu0 %v1302
        %1327 = vmatprep.subr.bf16.mxu0 0
        %1328 = vmatpush1.bf16.msra.mxu0 0
        %1329 = vmatprep.subr.bf16.mxu0 0
        %1330 = vmatpush1.bf16.msra.mxu0 0
        %1331 = vmatprep.subr.bf16.mxu0 0
        %1332 = vmatpush1.bf16.msra.mxu0 0
        %1333 = vmatprep.subr.bf16.mxu0 0
        %1334 = vmatpush1.bf16.msra.mxu0 0
        %1335 = vmatprep.subr.bf16.mxu0 0
        %1336 = vmatpush1.bf16.msra.mxu0 0
        %1337 = vmatprep.subr.bf16.mxu0 0
        %1338 = vmatpush1.bf16.msra.mxu0 0
        %1339 = vmatprep.subr.bf16.mxu0 0
        %1340 = vmatpush1.bf16.msra.mxu0 0
        %1341 = vmatprep.subr.bf16.mxu0 0
        %1342 = vmatpush1.bf16.msra.mxu0 0
        %1343 = vmatprep.mubr.bf16.mxu0 0
        %1344 = vmatmul.mubr.bf16.gmra.mrb[0].mxu0 %v1239
        %v1345 = vpop.f32.mrb[0].mxu0
        %v1346 = vadd.f32 0.0, %v1345
        %v1347 = vpop.f32.mrb[0].mxu0
        %v1348 = vpop.f32.mrb[0].mxu0
        %v1349 = vadd.f32 0.0, %v1348
        %v1350 = vpop.f32.mrb[0].mxu0
        %1351 = vmatprep.mubr.bf16.mxu0 0
        %1352 = vmatmul.mubr.bf16.gmra.mrb[0].mxu0 %v1240
        %v1353 = vpop.f32.mrb[0].mxu0
        %v1354 = vadd.f32 0.0, %v1353
        %v1355 = vpop.f32.mrb[0].mxu0
        %v1356 = vpop.f32.mrb[0].mxu0
        %v1357 = vadd.f32 0.0, %v1356
        %v1358 = vpop.f32.mrb[0].mxu0
        %1359 = vmatprep.mubr.bf16.mxu0 0
        %1360 = vmatmul.mubr.bf16.gmra.mrb[0].mxu0 %v1241
        %v1361 = vpop.f32.mrb[0].mxu0
        %v1362 = vadd.f32 0.0, %v1361
        %v1363 = vpop.f32.mrb[0].mxu0
        %v1364 = vpop.f32.mrb[0].mxu0
        %v1365 = vadd.f32 0.0, %v1364
        %v1366 = vpop.f32.mrb[0].mxu0
        %1367 = vmatprep.mubr.bf16.mxu0 0
        %1368 = vmatmul.mubr.bf16.gmra.mrb[0].mxu0 %v1242
        %v1369 = vpop.f32.mrb[0].mxu0
        %v1370 = vadd.f32 0.0, %v1369
        %v1371 = vpop.f32.mrb[0].mxu0
        %v1372 = vpop.f32.mrb[0].mxu0
        %v1373 = vadd.f32 0.0, %v1372
        %v1374 = vpop.f32.mrb[0].mxu0
        %1375 = vmatprep.mubr.bf16.mxu0 0
        %1376 = vmatmul.mubr.bf16.gmra.mrb[0].mxu0 %v1243
        %v1377 = vpop.f32.mrb[0].mxu0
        %v1378 = vadd.f32 0.0, %v1377
        %v1379 = vpop.f32.mrb[0].mxu0
        %v1380 = vpop.f32.mrb[0].mxu0
        %v1381 = vadd.f32 0.0, %v1380
        %v1382 = vpop.f32.mrb[0].mxu0
        %1383 = vmatprep.mubr.bf16.mxu0 0
        %1384 = vmatmul.mubr.bf16.gmra.mrb[0].mxu0 %v1244
        %v1385 = vpop.f32.mrb[0].mxu0
        %v1386 = vadd.f32 0.0, %v1385
        %v1387 = vpop.f32.mrb[0].mxu0
        %v1388 = vpop.f32.mrb[0].mxu0
        %v1389 = vadd.f32 0.0, %v1388
        %v1390 = vpop.f32.mrb[0].mxu0
        %1391 = vmatprep.mubr.bf16.mxu0 0
        %1392 = vmatmul.mubr.bf16.gmra.mrb[0].mxu0 %v1245
        %v1393 = vpop.f32.mrb[0].mxu0
        %v1394 = vadd.f32 0.0, %v1393
        %v1395 = vpop.f32.mrb[0].mxu0
        %v1396 = vpop.f32.mrb[0].mxu0
        %v1397 = vadd.f32 0.0, %v1396
        %v1398 = vpop.f32.mrb[0].mxu0
        %1399 = vmatprep.mubr.bf16.mxu0 0
        %1400 = vmatmul.mubr.bf16.gmra.mrb[0].mxu0 %v1246
        %v1401 = vpop.f32.mrb[0].mxu0
        %v1402 = vadd.f32 0.0, %v1401
        %v1403 = vpop.f32.mrb[0].mxu0
        %v1404 = vpop.f32.mrb[0].mxu0
        %v1405 = vpop.f32.mrb[0].mxu0
        %1406 = vdwg.mxu0
        %s1407 = scalar_lea.vmem [#allocation8], 64
        %v1408 = vld [vmem:[%s1407] sm:$0xf]
        %v1409 = vld [vmem:[%s1407 + $0x4] sm:$0xf]
        %v1410 = vld [vmem:[%s1407 + $0x8] sm:$0xf]
        %v1411 = vld [vmem:[%s1407 + $0xc] sm:$0xf]
        %v1412 = vld [vmem:[%s1407 + $0x10] sm:$0xf]
        %v1413 = vld [vmem:[%s1407 + $0x14] sm:$0xf]
        %v1414 = vld [vmem:[%s1407 + $0x18] sm:$0xf]
        %v1415 = vld [vmem:[%s1407 + $0x1c] sm:$0xf]
        %v1416 = vld [vmem:[%s1407 + $0x20] sm:$0xf]
        %v1417 = vld [vmem:[%s1407 + $0x24] sm:$0xf]
        %v1418 = vld [vmem:[%s1407 + $0x28] sm:$0xf]
        %v1419 = vld [vmem:[%s1407 + $0x2c] sm:$0xf]
        %v1420 = vld [vmem:[%s1407 + $0x30] sm:$0xf]
        %v1421 = vld [vmem:[%s1407 + $0x34] sm:$0xf]
        %v1422 = vld [vmem:[%s1407 + $0x38] sm:$0xf]
        %v1423 = vld [vmem:[%s1407 + $0x3c] sm:$0xf]
        %v1440 = vunpack.c.l.b16 %v1408
        %v1441 = vunpack.c.l.b16 %v1409
        %v1442 = vunpack.c.l.b16 %v1410
        %v1443 = vunpack.c.l.b16 %v1411
        %v1444 = vunpack.c.l.b16 %v1412
        %v1445 = vunpack.c.l.b16 %v1413
        %v1446 = vunpack.c.l.b16 %v1414
        %v1447 = vunpack.c.l.b16 %v1415
        %v1448 = vunpack.c.l.b16 %v1416
        %v1449 = vunpack.c.l.b16 %v1417
        %v1450 = vunpack.c.l.b16 %v1418
        %v1451 = vunpack.c.l.b16 %v1419
        %v1452 = vunpack.c.l.b16 %v1420
        %v1453 = vunpack.c.l.b16 %v1421
        %v1454 = vunpack.c.l.b16 %v1422
        %v1455 = vunpack.c.l.b16 %v1423
        %v1456 = vpack.c.b16 %v1441, %v1440
        %v1457 = vpack.c.b16 %v1443, %v1442
        %v1458 = vpack.c.b16 %v1445, %v1444
        %v1459 = vpack.c.b16 %v1447, %v1446
        %v1460 = vpack.c.b16 %v1449, %v1448
        %v1461 = vpack.c.b16 %v1451, %v1450
        %v1462 = vpack.c.b16 %v1453, %v1452
        %v1463 = vpack.c.b16 %v1455, %v1454
        %1472 = vmatprep.subr.bf16.mxu0 0
        %1473 = vmatpush1.bf16.msra.mxu0 %v1456
        %1474 = vmatprep.subr.bf16.mxu0 0
        %1475 = vmatpush1.bf16.msra.mxu0 %v1457
        %1476 = vmatprep.subr.bf16.mxu0 0
        %1477 = vmatpush1.bf16.msra.mxu0 %v1458
        %1478 = vmatprep.subr.bf16.mxu0 0
        %1479 = vmatpush1.bf16.msra.mxu0 %v1459
        %1480 = vmatprep.subr.bf16.mxu0 0
        %1481 = vmatpush1.bf16.msra.mxu0 %v1460
        %1482 = vmatprep.subr.bf16.mxu0 0
        %1483 = vmatpush1.bf16.msra.mxu0 %v1461
        %1484 = vmatprep.subr.bf16.mxu0 0
        %1485 = vmatpush1.bf16.msra.mxu0 %v1462
        %1486 = vmatprep.subr.bf16.mxu0 0
        %1487 = vmatpush1.bf16.msra.mxu0 %v1463
        %1488 = vmatprep.subr.bf16.mxu0 0
        %1489 = vmatpush1.bf16.msra.mxu0 0
        %1490 = vmatprep.subr.bf16.mxu0 0
        %1491 = vmatpush1.bf16.msra.mxu0 0
        %1492 = vmatprep.subr.bf16.mxu0 0
        %1493 = vmatpush1.bf16.msra.mxu0 0
        %1494 = vmatprep.subr.bf16.mxu0 0
        %1495 = vmatpush1.bf16.msra.mxu0 0
        %1496 = vmatprep.subr.bf16.mxu0 0
        %1497 = vmatpush1.bf16.msra.mxu0 0
        %1498 = vmatprep.subr.bf16.mxu0 0
        %1499 = vmatpush1.bf16.msra.mxu0 0
        %1500 = vmatprep.subr.bf16.mxu0 0
        %1501 = vmatpush1.bf16.msra.mxu0 0
        %1502 = vmatprep.subr.bf16.mxu0 0
        %1503 = vmatpush1.bf16.msra.mxu0 0
        %1504 = vmatprep.mubr.bf16.mxu0 0
        %1505 = vmatmul.mubr.bf16.gmra.mrb[0].mxu0 %v1239
        %v1506 = vpop.f32.mrb[0].mxu0
        %v1507 = vadd.f32 0.0, %v1506
        %v1508 = vpop.f32.mrb[0].mxu0
        %v1509 = vpop.f32.mrb[0].mxu0
        %v1510 = vadd.f32 0.0, %v1509
        %v1511 = vpop.f32.mrb[0].mxu0
        %1512 = vmatprep.mubr.bf16.mxu0 0
        %1513 = vmatmul.mubr.bf16.gmra.mrb[0].mxu0 %v1240
        %v1514 = vpop.f32.mrb[0].mxu0
        %v1515 = vadd.f32 0.0, %v1514
        %v1516 = vpop.f32.mrb[0].mxu0
        %v1517 = vpop.f32.mrb[0].mxu0
        %v1518 = vadd.f32 0.0, %v1517
        %v1519 = vpop.f32.mrb[0].mxu0
        %1520 = vmatprep.mubr.bf16.mxu0 0
        %1521 = vmatmul.mubr.bf16.gmra.mrb[0].mxu0 %v1241
        %v1522 = vpop.f32.mrb[0].mxu0
        %v1523 = vadd.f32 0.0, %v1522
        %v1524 = vpop.f32.mrb[0].mxu0
        %v1525 = vpop.f32.mrb[0].mxu0
        %v1526 = vadd.f32 0.0, %v1525
        %v1527 = vpop.f32.mrb[0].mxu0
        %1528 = vmatprep.mubr.bf16.mxu0 0
        %1529 = vmatmul.mubr.bf16.gmra.mrb[0].mxu0 %v1242
        %v1530 = vpop.f32.mrb[0].mxu0
        %v1531 = vadd.f32 0.0, %v1530
        %v1532 = vpop.f32.mrb[0].mxu0
        %v1533 = vpop.f32.mrb[0].mxu0
        %v1534 = vadd.f32 0.0, %v1533
        %v1535 = vpop.f32.mrb[0].mxu0
        %1536 = vmatprep.mubr.bf16.mxu0 0
        %1537 = vmatmul.mubr.bf16.gmra.mrb[0].mxu0 %v1243
        %v1538 = vpop.f32.mrb[0].mxu0
        %v1539 = vadd.f32 0.0, %v1538
        %v1540 = vpop.f32.mrb[0].mxu0
        %v1541 = vpop.f32.mrb[0].mxu0
        %v1542 = vadd.f32 0.0, %v1541
        %v1543 = vpop.f32.mrb[0].mxu0
        %1544 = vmatprep.mubr.bf16.mxu0 0
        %1545 = vmatmul.mubr.bf16.gmra.mrb[0].mxu0 %v1244
        %v1546 = vpop.f32.mrb[0].mxu0
        %v1547 = vadd.f32 0.0, %v1546
        %v1548 = vpop.f32.mrb[0].mxu0
        %v1549 = vpop.f32.mrb[0].mxu0
        %v1550 = vadd.f32 0.0, %v1549
        %v1551 = vpop.f32.mrb[0].mxu0
        %1552 = vmatprep.mubr.bf16.mxu0 0
        %1553 = vmatmul.mubr.bf16.gmra.mrb[0].mxu0 %v1245
        %v1554 = vpop.f32.mrb[0].mxu0
        %v1555 = vadd.f32 0.0, %v1554
        %v1556 = vpop.f32.mrb[0].mxu0
        %v1557 = vpop.f32.mrb[0].mxu0
        %v1558 = vadd.f32 0.0, %v1557
        %v1559 = vpop.f32.mrb[0].mxu0
        %1560 = vmatprep.mubr.bf16.mxu0 0
        %1561 = vmatmul.mubr.bf16.gmra.mrb[0].mxu0 %v1246
        %v1562 = vpop.f32.mrb[0].mxu0
        %v1563 = vadd.f32 0.0, %v1562
        %v1564 = vpop.f32.mrb[0].mxu0
        %v1565 = vpop.f32.mrb[0].mxu0
        %v1566 = vadd.f32 0.0, %v1565
        %v1567 = vpop.f32.mrb[0].mxu0
        %1568 = vdwg.mxu0
        %v1569 = vadd.f32 %v1507, 0.0
        %v1570 = vadd.f32 %v1346, %v1510
        %v1571 = vadd.f32 %v1349, %v1515
        %v1572 = vadd.f32 %v1354, %v1518
        %v1573 = vadd.f32 %v1357, %v1523
        %v1574 = vadd.f32 %v1362, %v1526
        %v1575 = vadd.f32 %v1365, %v1531
        %v1576 = vadd.f32 %v1370, %v1534
        %v1577 = vadd.f32 %v1373, %v1539
        %v1578 = vadd.f32 %v1378, %v1542
        %v1579 = vadd.f32 %v1381, %v1547
        %v1580 = vadd.f32 %v1386, %v1550
        %v1581 = vadd.f32 %v1389, %v1555
        %v1582 = vadd.f32 %v1394, %v1558
        %v1583 = vadd.f32 %v1397, %v1563
        %v1584 = vadd.f32 %v1402, %v1566
        %v1585 = vld [vmem:[#allocation10] sm:$0x1]
        %v1587 = vlaneseq
        %v1588 = vshrl.u32 %v1587, 7
        %v1589 = vsub.s32 0, %v1588
        %v1590 = vrot.slane %v1585, %v1589
        %v1592 = vadd.f32 %v1569, %v1590
        %v1593 = vadd.f32 %v1570, %v1590
        %v1594 = vadd.f32 %v1571, %v1590
        %v1595 = vadd.f32 %v1572, %v1590
        %v1596 = vadd.f32 %v1573, %v1590
        %v1597 = vadd.f32 %v1574, %v1590
        %v1598 = vadd.f32 %v1575, %v1590
        %v1599 = vadd.f32 %v1576, %v1590
        %v1600 = vadd.f32 %v1577, %v1590
        %v1601 = vadd.f32 %v1578, %v1590
        %v1602 = vadd.f32 %v1579, %v1590
        %v1603 = vadd.f32 %v1580, %v1590
        %v1604 = vadd.f32 %v1581, %v1590
        %v1605 = vadd.f32 %v1582, %v1590
        %v1606 = vadd.f32 %v1583, %v1590
        %v1607 = vadd.f32 %v1584, %v1590
        %v1608 = vmax.f32 %v1592, 0.0
        %v1609 = vmax.f32 %v1593, 0.0
        %v1610 = vmax.f32 %v1594, 0.0
        %v1611 = vmax.f32 %v1595, 0.0
        %v1612 = vmax.f32 %v1596, 0.0
        %v1613 = vmax.f32 %v1597, 0.0
        %v1614 = vmax.f32 %v1598, 0.0
        %v1615 = vmax.f32 %v1599, 0.0
        %v1616 = vmax.f32 %v1600, 0.0
        %v1617 = vmax.f32 %v1601, 0.0
        %v1618 = vmax.f32 %v1602, 0.0
        %v1619 = vmax.f32 %v1603, 0.0
        %v1620 = vmax.f32 %v1604, 0.0
        %v1621 = vmax.f32 %v1605, 0.0
        %v1622 = vmax.f32 %v1606, 0.0
        %v1623 = vmax.f32 %v1607, 0.0
        %v1624 = vld [vmem:[#allocation11] sm:$0xf]
        %v1625 = vld [vmem:[#allocation11 + $0x4] sm:$0xf]
        %v1626 = vld [vmem:[#allocation11 + $0x8] sm:$0xf]
        %v1627 = vld [vmem:[#allocation11 + $0xc] sm:$0xf]
        %v1628 = vld [vmem:[#allocation11 + $0x10] sm:$0xf]
        %v1629 = vld [vmem:[#allocation11 + $0x14] sm:$0xf]
        %v1630 = vld [vmem:[#allocation11 + $0x18] sm:$0xf]
        %v1631 = vld [vmem:[#allocation11 + $0x1c] sm:$0xf]
        %v1632 = vld [vmem:[#allocation11 + $0x20] sm:$0xf]
        %v1633 = vld [vmem:[#allocation11 + $0x24] sm:$0xf]
        %v1634 = vld [vmem:[#allocation11 + $0x28] sm:$0xf]
        %v1635 = vld [vmem:[#allocation11 + $0x2c] sm:$0xf]
        %v1636 = vld [vmem:[#allocation11 + $0x30] sm:$0xf]
        %v1637 = vld [vmem:[#allocation11 + $0x34] sm:$0xf]
        %v1638 = vld [vmem:[#allocation11 + $0x38] sm:$0xf]
        %v1639 = vld [vmem:[#allocation11 + $0x3c] sm:$0xf]
        %v1640 = vld [vmem:[#allocation13] sm:$0x1]
        %v1642 = vlaneseq
        %v1643 = vshrl.u32 %v1642, 7
        %v1644 = vsub.s32 0, %v1643
        %v1645 = vrot.slane %v1640, %v1644
        %v1663 = vunpack.c.l.b16 %v1624
        %v1664 = vunpack.c.l.b16 %v1625
        %v1665 = vunpack.c.l.b16 %v1626
        %v1666 = vunpack.c.l.b16 %v1627
        %v1667 = vunpack.c.l.b16 %v1628
        %v1668 = vunpack.c.l.b16 %v1629
        %v1669 = vunpack.c.l.b16 %v1630
        %v1670 = vunpack.c.l.b16 %v1631
        %v1671 = vunpack.c.l.b16 %v1632
        %v1672 = vunpack.c.l.b16 %v1633
        %v1673 = vunpack.c.l.b16 %v1634
        %v1674 = vunpack.c.l.b16 %v1635
        %v1675 = vunpack.c.l.b16 %v1636
        %v1676 = vunpack.c.l.b16 %v1637
        %v1677 = vunpack.c.l.b16 %v1638
        %v1678 = vunpack.c.l.b16 %v1639
        %v1679 = vpack.c.b16 %v1664, %v1663
        %v1680 = vpack.c.b16 %v1666, %v1665
        %v1681 = vpack.c.b16 %v1668, %v1667
        %v1682 = vpack.c.b16 %v1670, %v1669
        %v1683 = vpack.c.b16 %v1672, %v1671
        %v1684 = vpack.c.b16 %v1674, %v1673
        %v1685 = vpack.c.b16 %v1676, %v1675
        %v1686 = vpack.c.b16 %v1678, %v1677
        %1695 = vmatprep.subr.bf16.mxu0 0
        %1696 = vmatpush1.bf16.msra.mxu0 %v1679
        %1697 = vmatprep.subr.bf16.mxu0 0
        %1698 = vmatpush1.bf16.msra.mxu0 %v1680
        %1699 = vmatprep.subr.bf16.mxu0 0
        %1700 = vmatpush1.bf16.msra.mxu0 %v1681
        %1701 = vmatprep.subr.bf16.mxu0 0
        %1702 = vmatpush1.bf16.msra.mxu0 %v1682
        %1703 = vmatprep.subr.bf16.mxu0 0
        %1704 = vmatpush1.bf16.msra.mxu0 %v1683
        %1705 = vmatprep.subr.bf16.mxu0 0
        %1706 = vmatpush1.bf16.msra.mxu0 %v1684
        %1707 = vmatprep.subr.bf16.mxu0 0
        %1708 = vmatpush1.bf16.msra.mxu0 %v1685
        %1709 = vmatprep.subr.bf16.mxu0 0
        %1710 = vmatpush1.bf16.msra.mxu0 %v1686
        %1711 = vmatprep.subr.bf16.mxu0 0
        %1712 = vmatpush1.bf16.msra.mxu0 0
        %1713 = vmatprep.subr.bf16.mxu0 0
        %1714 = vmatpush1.bf16.msra.mxu0 0
        %1715 = vmatprep.subr.bf16.mxu0 0
        %1716 = vmatpush1.bf16.msra.mxu0 0
        %1717 = vmatprep.subr.bf16.mxu0 0
        %1718 = vmatpush1.bf16.msra.mxu0 0
        %1719 = vmatprep.subr.bf16.mxu0 0
        %1720 = vmatpush1.bf16.msra.mxu0 0
        %1721 = vmatprep.subr.bf16.mxu0 0
        %1722 = vmatpush1.bf16.msra.mxu0 0
        %1723 = vmatprep.subr.bf16.mxu0 0
        %1724 = vmatpush1.bf16.msra.mxu0 0
        %1725 = vmatprep.subr.bf16.mxu0 0
        %1726 = vmatpush1.bf16.msra.mxu0 0
        %1727 = vmatprep.mubr.bf16.mxu0 0
        %1728 = vmatmul.mubr.bf16.gmra.mrb[0].mxu0 %v854
        %v1729 = vpop.f32.mrb[0].mxu0
        %v1730 = vadd.f32 %v1645, %v1729
        %v1731 = vpop.f32.mrb[0].mxu0
        %v1732 = vpop.f32.mrb[0].mxu0
        %v1733 = vadd.f32 %v1645, %v1732
        %v1734 = vpop.f32.mrb[0].mxu0
        %1735 = vmatprep.mubr.bf16.mxu0 0
        %1736 = vmatmul.mubr.bf16.gmra.mrb[0].mxu0 %v855
        %v1737 = vpop.f32.mrb[0].mxu0
        %v1738 = vadd.f32 %v1645, %v1737
        %v1739 = vpop.f32.mrb[0].mxu0
        %v1740 = vpop.f32.mrb[0].mxu0
        %v1741 = vadd.f32 %v1645, %v1740
        %v1742 = vpop.f32.mrb[0].mxu0
        %1743 = vmatprep.mubr.bf16.mxu0 0
        %1744 = vmatmul.mubr.bf16.gmra.mrb[0].mxu0 %v856
        %v1745 = vpop.f32.mrb[0].mxu0
        %v1746 = vadd.f32 %v1645, %v1745
        %v1747 = vpop.f32.mrb[0].mxu0
        %v1748 = vpop.f32.mrb[0].mxu0
        %v1749 = vadd.f32 %v1645, %v1748
        %v1750 = vpop.f32.mrb[0].mxu0
        %1751 = vmatprep.mubr.bf16.mxu0 0
        %1752 = vmatmul.mubr.bf16.gmra.mrb[0].mxu0 %v857
        %v1753 = vpop.f32.mrb[0].mxu0
        %v1754 = vadd.f32 %v1645, %v1753
        %v1755 = vpop.f32.mrb[0].mxu0
        %v1756 = vpop.f32.mrb[0].mxu0
        %v1757 = vadd.f32 %v1645, %v1756
        %v1758 = vpop.f32.mrb[0].mxu0
        %1759 = vmatprep.mubr.bf16.mxu0 0
        %1760 = vmatmul.mubr.bf16.gmra.mrb[0].mxu0 %v858
        %v1761 = vpop.f32.mrb[0].mxu0
        %v1762 = vadd.f32 %v1645, %v1761
        %v1763 = vpop.f32.mrb[0].mxu0
        %v1764 = vpop.f32.mrb[0].mxu0
        %v1765 = vadd.f32 %v1645, %v1764
        %v1766 = vpop.f32.mrb[0].mxu0
        %1767 = vmatprep.mubr.bf16.mxu0 0
        %1768 = vmatmul.mubr.bf16.gmra.mrb[0].mxu0 %v859
        %v1769 = vpop.f32.mrb[0].mxu0
        %v1770 = vadd.f32 %v1645, %v1769
        %v1771 = vpop.f32.mrb[0].mxu0
        %v1772 = vpop.f32.mrb[0].mxu0
        %v1773 = vadd.f32 %v1645, %v1772
        %v1774 = vpop.f32.mrb[0].mxu0
        %1775 = vmatprep.mubr.bf16.mxu0 0
        %1776 = vmatmul.mubr.bf16.gmra.mrb[0].mxu0 %v860
        %v1777 = vpop.f32.mrb[0].mxu0
        %v1778 = vadd.f32 %v1645, %v1777
        %v1779 = vpop.f32.mrb[0].mxu0
        %v1780 = vpop.f32.mrb[0].mxu0
        %v1781 = vadd.f32 %v1645, %v1780
        %v1782 = vpop.f32.mrb[0].mxu0
        %1783 = vmatprep.mubr.bf16.mxu0 0
        %1784 = vmatmul.mubr.bf16.gmra.mrb[0].mxu0 %v861
        %v1785 = vpop.f32.mrb[0].mxu0
        %v1786 = vadd.f32 %v1645, %v1785
        %v1787 = vpop.f32.mrb[0].mxu0
        %v1788 = vpop.f32.mrb[0].mxu0
        %v1789 = vadd.f32 %v1645, %v1788
        %v1790 = vpop.f32.mrb[0].mxu0
        %1791 = vdwg.mxu0
        %v1792 = vadd.f32 %v1608, %v1730
        %v1793 = vadd.f32 %v1609, %v1733
        %v1794 = vadd.f32 %v1610, %v1738
        %v1795 = vadd.f32 %v1611, %v1741
        %v1796 = vadd.f32 %v1612, %v1746
        %v1797 = vadd.f32 %v1613, %v1749
        %v1798 = vadd.f32 %v1614, %v1754
        %v1799 = vadd.f32 %v1615, %v1757
        %v1800 = vadd.f32 %v1616, %v1762
        %v1801 = vadd.f32 %v1617, %v1765
        %v1802 = vadd.f32 %v1618, %v1770
        %v1803 = vadd.f32 %v1619, %v1773
        %v1804 = vadd.f32 %v1620, %v1778
        %v1805 = vadd.f32 %v1621, %v1781
        %v1806 = vadd.f32 %v1622, %v1786
        %v1807 = vadd.f32 %v1623, %v1789
        %v1808 = vmax.f32 %v1792, 0.0
        %v1809 = vmax.f32 %v1793, 0.0
        %v1810 = vmax.f32 %v1794, 0.0
        %v1811 = vmax.f32 %v1795, 0.0
        %v1812 = vmax.f32 %v1796, 0.0
        %v1813 = vmax.f32 %v1797, 0.0
        %v1814 = vmax.f32 %v1798, 0.0
        %v1815 = vmax.f32 %v1799, 0.0
        %v1816 = vmax.f32 %v1800, 0.0
        %v1817 = vmax.f32 %v1801, 0.0
        %v1818 = vmax.f32 %v1802, 0.0
        %v1819 = vmax.f32 %v1803, 0.0
        %v1820 = vmax.f32 %v1804, 0.0
        %v1821 = vmax.f32 %v1805, 0.0
        %v1822 = vmax.f32 %v1806, 0.0
        %v1823 = vmax.f32 %v1807, 0.0
        %v1824 = vpack.c.bf16 %v1809, %v1808
        %v1825 = vpack.c.bf16 %v1811, %v1810
        %v1826 = vpack.c.bf16 %v1813, %v1812
        %v1827 = vpack.c.bf16 %v1815, %v1814
        %v1828 = vpack.c.bf16 %v1817, %v1816
        %v1829 = vpack.c.bf16 %v1819, %v1818
        %v1830 = vpack.c.bf16 %v1821, %v1820
        %v1831 = vpack.c.bf16 %v1823, %v1822
        %v1832 = vld [vmem:[#allocation14] sm:$0xf]
        %v1833 = vld [vmem:[#allocation14 + $0x4] sm:$0xf]
        %v1834 = vld [vmem:[#allocation14 + $0x8] sm:$0xf]
        %v1835 = vld [vmem:[#allocation14 + $0xc] sm:$0xf]
        %v1836 = vld [vmem:[#allocation14 + $0x10] sm:$0xf]
        %v1837 = vld [vmem:[#allocation14 + $0x14] sm:$0xf]
        %v1838 = vld [vmem:[#allocation14 + $0x18] sm:$0xf]
        %v1839 = vld [vmem:[#allocation14 + $0x1c] sm:$0xf]
        %v1840 = vld [vmem:[#allocation14 + $0x20] sm:$0xf]
        %v1841 = vld [vmem:[#allocation14 + $0x24] sm:$0xf]
        %v1842 = vld [vmem:[#allocation14 + $0x28] sm:$0xf]
        %v1843 = vld [vmem:[#allocation14 + $0x2c] sm:$0xf]
        %v1844 = vld [vmem:[#allocation14 + $0x30] sm:$0xf]
        %v1845 = vld [vmem:[#allocation14 + $0x34] sm:$0xf]
        %v1846 = vld [vmem:[#allocation14 + $0x38] sm:$0xf]
        %v1847 = vld [vmem:[#allocation14 + $0x3c] sm:$0xf]
        %v1864 = vunpack.c.l.b16 %v1832
        %v1865 = vunpack.c.l.b16 %v1833
        %v1866 = vunpack.c.l.b16 %v1834
        %v1867 = vunpack.c.l.b16 %v1835
        %v1868 = vunpack.c.l.b16 %v1836
        %v1869 = vunpack.c.l.b16 %v1837
        %v1870 = vunpack.c.l.b16 %v1838
        %v1871 = vunpack.c.l.b16 %v1839
        %v1872 = vunpack.c.l.b16 %v1840
        %v1873 = vunpack.c.l.b16 %v1841
        %v1874 = vunpack.c.l.b16 %v1842
        %v1875 = vunpack.c.l.b16 %v1843
        %v1876 = vunpack.c.l.b16 %v1844
        %v1877 = vunpack.c.l.b16 %v1845
        %v1878 = vunpack.c.l.b16 %v1846
        %v1879 = vunpack.c.l.b16 %v1847
        %v1880 = vpack.c.b16 %v1865, %v1864
        %v1881 = vpack.c.b16 %v1867, %v1866
        %v1882 = vpack.c.b16 %v1869, %v1868
        %v1883 = vpack.c.b16 %v1871, %v1870
        %v1884 = vpack.c.b16 %v1873, %v1872
        %v1885 = vpack.c.b16 %v1875, %v1874
        %v1886 = vpack.c.b16 %v1877, %v1876
        %v1887 = vpack.c.b16 %v1879, %v1878
        %1896 = vmatprep.subr.bf16.mxu0 0
        %1897 = vmatpush1.bf16.msra.mxu0 %v1880
        %1898 = vmatprep.subr.bf16.mxu0 0
        %1899 = vmatpush1.bf16.msra.mxu0 %v1881
        %1900 = vmatprep.subr.bf16.mxu0 0
        %1901 = vmatpush1.bf16.msra.mxu0 %v1882
        %1902 = vmatprep.subr.bf16.mxu0 0
        %1903 = vmatpush1.bf16.msra.mxu0 %v1883
        %1904 = vmatprep.subr.bf16.mxu0 0
        %1905 = vmatpush1.bf16.msra.mxu0 %v1884
        %1906 = vmatprep.subr.bf16.mxu0 0
        %1907 = vmatpush1.bf16.msra.mxu0 %v1885
        %1908 = vmatprep.subr.bf16.mxu0 0
        %1909 = vmatpush1.bf16.msra.mxu0 %v1886
        %1910 = vmatprep.subr.bf16.mxu0 0
        %1911 = vmatpush1.bf16.msra.mxu0 %v1887
        %1912 = vmatprep.subr.bf16.mxu0 0
        %1913 = vmatpush1.bf16.msra.mxu0 0
        %1914 = vmatprep.subr.bf16.mxu0 0
        %1915 = vmatpush1.bf16.msra.mxu0 0
        %1916 = vmatprep.subr.bf16.mxu0 0
        %1917 = vmatpush1.bf16.msra.mxu0 0
        %1918 = vmatprep.subr.bf16.mxu0 0
        %1919 = vmatpush1.bf16.msra.mxu0 0
        %1920 = vmatprep.subr.bf16.mxu0 0
        %1921 = vmatpush1.bf16.msra.mxu0 0
        %1922 = vmatprep.subr.bf16.mxu0 0
        %1923 = vmatpush1.bf16.msra.mxu0 0
        %1924 = vmatprep.subr.bf16.mxu0 0
        %1925 = vmatpush1.bf16.msra.mxu0 0
        %1926 = vmatprep.subr.bf16.mxu0 0
        %1927 = vmatpush1.bf16.msra.mxu0 0
        %1928 = vmatprep.mubr.bf16.mxu0 0
        %1929 = vmatmul.mubr.bf16.gmra.mrb[0].mxu0 %v1824
        %v1930 = vpop.f32.mrb[0].mxu0
        %v1931 = vadd.f32 0.0, %v1930
        %v1932 = vpop.f32.mrb[0].mxu0
        %v1933 = vpop.f32.mrb[0].mxu0
        %v1934 = vadd.f32 0.0, %v1933
        %v1935 = vpop.f32.mrb[0].mxu0
        %1936 = vmatprep.mubr.bf16.mxu0 0
        %1937 = vmatmul.mubr.bf16.gmra.mrb[0].mxu0 %v1825
        %v1938 = vpop.f32.mrb[0].mxu0
        %v1939 = vadd.f32 0.0, %v1938
        %v1940 = vpop.f32.mrb[0].mxu0
        %v1941 = vpop.f32.mrb[0].mxu0
        %v1942 = vadd.f32 0.0, %v1941
        %v1943 = vpop.f32.mrb[0].mxu0
        %1944 = vmatprep.mubr.bf16.mxu0 0
        %1945 = vmatmul.mubr.bf16.gmra.mrb[0].mxu0 %v1826
        %v1946 = vpop.f32.mrb[0].mxu0
        %v1947 = vadd.f32 0.0, %v1946
        %v1948 = vpop.f32.mrb[0].mxu0
        %v1949 = vpop.f32.mrb[0].mxu0
        %v1950 = vadd.f32 0.0, %v1949
        %v1951 = vpop.f32.mrb[0].mxu0
        %1952 = vmatprep.mubr.bf16.mxu0 0
        %1953 = vmatmul.mubr.bf16.gmra.mrb[0].mxu0 %v1827
        %v1954 = vpop.f32.mrb[0].mxu0
        %v1955 = vadd.f32 0.0, %v1954
        %v1956 = vpop.f32.mrb[0].mxu0
        %v1957 = vpop.f32.mrb[0].mxu0
        %v1958 = vadd.f32 0.0, %v1957
        %v1959 = vpop.f32.mrb[0].mxu0
        %1960 = vmatprep.mubr.bf16.mxu0 0
        %1961 = vmatmul.mubr.bf16.gmra.mrb[0].mxu0 %v1828
        %v1962 = vpop.f32.mrb[0].mxu0
        %v1963 = vadd.f32 0.0, %v1962
        %v1964 = vpop.f32.mrb[0].mxu0
        %v1965 = vpop.f32.mrb[0].mxu0
        %v1966 = vadd.f32 0.0, %v1965
        %v1967 = vpop.f32.mrb[0].mxu0
        %1968 = vmatprep.mubr.bf16.mxu0 0
        %1969 = vmatmul.mubr.bf16.gmra.mrb[0].mxu0 %v1829
        %v1970 = vpop.f32.mrb[0].mxu0
        %v1971 = vadd.f32 0.0, %v1970
        %v1972 = vpop.f32.mrb[0].mxu0
        %v1973 = vpop.f32.mrb[0].mxu0
        %v1974 = vadd.f32 0.0, %v1973
        %v1975 = vpop.f32.mrb[0].mxu0
        %1976 = vmatprep.mubr.bf16.mxu0 0
        %1977 = vmatmul.mubr.bf16.gmra.mrb[0].mxu0 %v1830
        %v1978 = vpop.f32.mrb[0].mxu0
        %v1979 = vadd.f32 0.0, %v1978
        %v1980 = vpop.f32.mrb[0].mxu0
        %v1981 = vpop.f32.mrb[0].mxu0
        %v1982 = vadd.f32 0.0, %v1981
        %v1983 = vpop.f32.mrb[0].mxu0
        %1984 = vmatprep.mubr.bf16.mxu0 0
        %1985 = vmatmul.mubr.bf16.gmra.mrb[0].mxu0 %v1831
        %v1986 = vpop.f32.mrb[0].mxu0
        %v1987 = vpop.f32.mrb[0].mxu0
        %v1988 = vpop.f32.mrb[0].mxu0
        %v1989 = vpop.f32.mrb[0].mxu0
        %1990 = vdwg.mxu0
        %s1991 = scalar_lea.vmem [#allocation14], 64
        %v1992 = vld [vmem:[%s1991] sm:$0xf]
        %v1993 = vld [vmem:[%s1991 + $0x4] sm:$0xf]
        %v1994 = vld [vmem:[%s1991 + $0x8] sm:$0xf]
        %v1995 = vld [vmem:[%s1991 + $0xc] sm:$0xf]
        %v1996 = vld [vmem:[%s1991 + $0x10] sm:$0xf]
        %v1997 = vld [vmem:[%s1991 + $0x14] sm:$0xf]
        %v1998 = vld [vmem:[%s1991 + $0x18] sm:$0xf]
        %v1999 = vld [vmem:[%s1991 + $0x1c] sm:$0xf]
        %v2000 = vld [vmem:[%s1991 + $0x20] sm:$0xf]
        %v2001 = vld [vmem:[%s1991 + $0x24] sm:$0xf]
        %v2002 = vld [vmem:[%s1991 + $0x28] sm:$0xf]
        %v2003 = vld [vmem:[%s1991 + $0x2c] sm:$0xf]
        %v2004 = vld [vmem:[%s1991 + $0x30] sm:$0xf]
        %v2005 = vld [vmem:[%s1991 + $0x34] sm:$0xf]
        %v2006 = vld [vmem:[%s1991 + $0x38] sm:$0xf]
        %v2007 = vld [vmem:[%s1991 + $0x3c] sm:$0xf]
        %v2024 = vunpack.c.l.b16 %v1992
        %v2025 = vunpack.c.l.b16 %v1993
        %v2026 = vunpack.c.l.b16 %v1994
        %v2027 = vunpack.c.l.b16 %v1995
        %v2028 = vunpack.c.l.b16 %v1996
        %v2029 = vunpack.c.l.b16 %v1997
        %v2030 = vunpack.c.l.b16 %v1998
        %v2031 = vunpack.c.l.b16 %v1999
        %v2032 = vunpack.c.l.b16 %v2000
        %v2033 = vunpack.c.l.b16 %v2001
        %v2034 = vunpack.c.l.b16 %v2002
        %v2035 = vunpack.c.l.b16 %v2003
        %v2036 = vunpack.c.l.b16 %v2004
        %v2037 = vunpack.c.l.b16 %v2005
        %v2038 = vunpack.c.l.b16 %v2006
        %v2039 = vunpack.c.l.b16 %v2007
        %v2040 = vpack.c.b16 %v2025, %v2024
        %v2041 = vpack.c.b16 %v2027, %v2026
        %v2042 = vpack.c.b16 %v2029, %v2028
        %v2043 = vpack.c.b16 %v2031, %v2030
        %v2044 = vpack.c.b16 %v2033, %v2032
        %v2045 = vpack.c.b16 %v2035, %v2034
        %v2046 = vpack.c.b16 %v2037, %v2036
        %v2047 = vpack.c.b16 %v2039, %v2038
        %2056 = vmatprep.subr.bf16.mxu0 0
        %2057 = vmatpush1.bf16.msra.mxu0 %v2040
        %2058 = vmatprep.subr.bf16.mxu0 0
        %2059 = vmatpush1.bf16.msra.mxu0 %v2041
        %2060 = vmatprep.subr.bf16.mxu0 0
        %2061 = vmatpush1.bf16.msra.mxu0 %v2042
        %2062 = vmatprep.subr.bf16.mxu0 0
        %2063 = vmatpush1.bf16.msra.mxu0 %v2043
        %2064 = vmatprep.subr.bf16.mxu0 0
        %2065 = vmatpush1.bf16.msra.mxu0 %v2044
        %2066 = vmatprep.subr.bf16.mxu0 0
        %2067 = vmatpush1.bf16.msra.mxu0 %v2045
        %2068 = vmatprep.subr.bf16.mxu0 0
        %2069 = vmatpush1.bf16.msra.mxu0 %v2046
        %2070 = vmatprep.subr.bf16.mxu0 0
        %2071 = vmatpush1.bf16.msra.mxu0 %v2047
        %2072 = vmatprep.subr.bf16.mxu0 0
        %2073 = vmatpush1.bf16.msra.mxu0 0
        %2074 = vmatprep.subr.bf16.mxu0 0
        %2075 = vmatpush1.bf16.msra.mxu0 0
        %2076 = vmatprep.subr.bf16.mxu0 0
        %2077 = vmatpush1.bf16.msra.mxu0 0
        %2078 = vmatprep.subr.bf16.mxu0 0
        %2079 = vmatpush1.bf16.msra.mxu0 0
        %2080 = vmatprep.subr.bf16.mxu0 0
        %2081 = vmatpush1.bf16.msra.mxu0 0
        %2082 = vmatprep.subr.bf16.mxu0 0
        %2083 = vmatpush1.bf16.msra.mxu0 0
        %2084 = vmatprep.subr.bf16.mxu0 0
        %2085 = vmatpush1.bf16.msra.mxu0 0
        %2086 = vmatprep.subr.bf16.mxu0 0
        %2087 = vmatpush1.bf16.msra.mxu0 0
        %2088 = vmatprep.mubr.bf16.mxu0 0
        %2089 = vmatmul.mubr.bf16.gmra.mrb[0].mxu0 %v1824
        %v2090 = vpop.f32.mrb[0].mxu0
        %v2091 = vadd.f32 0.0, %v2090
        %v2092 = vpop.f32.mrb[0].mxu0
        %v2093 = vpop.f32.mrb[0].mxu0
        %v2094 = vadd.f32 0.0, %v2093
        %v2095 = vpop.f32.mrb[0].mxu0
        %2096 = vmatprep.mubr.bf16.mxu0 0
        %2097 = vmatmul.mubr.bf16.gmra.mrb[0].mxu0 %v1825
        %v2098 = vpop.f32.mrb[0].mxu0
        %v2099 = vadd.f32 0.0, %v2098
        %v2100 = vpop.f32.mrb[0].mxu0
        %v2101 = vpop.f32.mrb[0].mxu0
        %v2102 = vadd.f32 0.0, %v2101
        %v2103 = vpop.f32.mrb[0].mxu0
        %2104 = vmatprep.mubr.bf16.mxu0 0
        %2105 = vmatmul.mubr.bf16.gmra.mrb[0].mxu0 %v1826
        %v2106 = vpop.f32.mrb[0].mxu0
        %v2107 = vadd.f32 0.0, %v2106
        %v2108 = vpop.f32.mrb[0].mxu0
        %v2109 = vpop.f32.mrb[0].mxu0
        %v2110 = vadd.f32 0.0, %v2109
        %v2111 = vpop.f32.mrb[0].mxu0
        %2112 = vmatprep.mubr.bf16.mxu0 0
        %2113 = vmatmul.mubr.bf16.gmra.mrb[0].mxu0 %v1827
        %v2114 = vpop.f32.mrb[0].mxu0
        %v2115 = vadd.f32 0.0, %v2114
        %v2116 = vpop.f32.mrb[0].mxu0
        %v2117 = vpop.f32.mrb[0].mxu0
        %v2118 = vadd.f32 0.0, %v2117
        %v2119 = vpop.f32.mrb[0].mxu0
        %2120 = vmatprep.mubr.bf16.mxu0 0
        %2121 = vmatmul.mubr.bf16.gmra.mrb[0].mxu0 %v1828
        %v2122 = vpop.f32.mrb[0].mxu0
        %v2123 = vadd.f32 0.0, %v2122
        %v2124 = vpop.f32.mrb[0].mxu0
        %v2125 = vpop.f32.mrb[0].mxu0
        %v2126 = vadd.f32 0.0, %v2125
        %v2127 = vpop.f32.mrb[0].mxu0
        %2128 = vmatprep.mubr.bf16.mxu0 0
        %2129 = vmatmul.mubr.bf16.gmra.mrb[0].mxu0 %v1829
        %v2130 = vpop.f32.mrb[0].mxu0
        %v2131 = vadd.f32 0.0, %v2130
        %v2132 = vpop.f32.mrb[0].mxu0
        %v2133 = vpop.f32.mrb[0].mxu0
        %v2134 = vadd.f32 0.0, %v2133
        %v2135 = vpop.f32.mrb[0].mxu0
        %2136 = vmatprep.mubr.bf16.mxu0 0
        %2137 = vmatmul.mubr.bf16.gmra.mrb[0].mxu0 %v1830
        %v2138 = vpop.f32.mrb[0].mxu0
        %v2139 = vadd.f32 0.0, %v2138
        %v2140 = vpop.f32.mrb[0].mxu0
        %v2141 = vpop.f32.mrb[0].mxu0
        %v2142 = vadd.f32 0.0, %v2141
        %v2143 = vpop.f32.mrb[0].mxu0
        %2144 = vmatprep.mubr.bf16.mxu0 0
        %2145 = vmatmul.mubr.bf16.gmra.mrb[0].mxu0 %v1831
        %v2146 = vpop.f32.mrb[0].mxu0
        %v2147 = vadd.f32 0.0, %v2146
        %v2148 = vpop.f32.mrb[0].mxu0
        %v2149 = vpop.f32.mrb[0].mxu0
        %v2150 = vadd.f32 0.0, %v2149
        %v2151 = vpop.f32.mrb[0].mxu0
        %2152 = vdwg.mxu0
        %v2153 = vadd.f32 %v2091, 0.0
        %v2154 = vadd.f32 %v2094, 0.0
        %v2155 = vadd.f32 %v1931, %v2099
        %v2156 = vadd.f32 %v1934, %v2102
        %v2157 = vadd.f32 %v1939, %v2107
        %v2158 = vadd.f32 %v1942, %v2110
        %v2159 = vadd.f32 %v1947, %v2115
        %v2160 = vadd.f32 %v1950, %v2118
        %v2161 = vadd.f32 %v1955, %v2123
        %v2162 = vadd.f32 %v1958, %v2126
        %v2163 = vadd.f32 %v1963, %v2131
        %v2164 = vadd.f32 %v1966, %v2134
        %v2165 = vadd.f32 %v1971, %v2139
        %v2166 = vadd.f32 %v1974, %v2142
        %v2167 = vadd.f32 %v1979, %v2147
        %v2168 = vadd.f32 %v1982, %v2150
        %v2169 = vld [vmem:[#allocation16] sm:$0x1]
        %v2171 = vlaneseq
        %v2172 = vshrl.u32 %v2171, 7
        %v2173 = vsub.s32 0, %v2172
        %v2174 = vrot.slane %v2169, %v2173
        %v2176 = vadd.f32 %v2153, %v2174
        %v2177 = vadd.f32 %v2154, %v2174
        %v2178 = vadd.f32 %v2155, %v2174
        %v2179 = vadd.f32 %v2156, %v2174
        %v2180 = vadd.f32 %v2157, %v2174
        %v2181 = vadd.f32 %v2158, %v2174
        %v2182 = vadd.f32 %v2159, %v2174
        %v2183 = vadd.f32 %v2160, %v2174
        %v2184 = vadd.f32 %v2161, %v2174
        %v2185 = vadd.f32 %v2162, %v2174
        %v2186 = vadd.f32 %v2163, %v2174
        %v2187 = vadd.f32 %v2164, %v2174
        %v2188 = vadd.f32 %v2165, %v2174
        %v2189 = vadd.f32 %v2166, %v2174
        %v2190 = vadd.f32 %v2167, %v2174
        %v2191 = vadd.f32 %v2168, %v2174
        %v2192 = vmax.f32 %v2176, 0.0
        %v2193 = vmax.f32 %v2177, 0.0
        %v2194 = vmax.f32 %v2178, 0.0
        %v2195 = vmax.f32 %v2179, 0.0
        %v2196 = vmax.f32 %v2180, 0.0
        %v2197 = vmax.f32 %v2181, 0.0
        %v2198 = vmax.f32 %v2182, 0.0
        %v2199 = vmax.f32 %v2183, 0.0
        %v2200 = vmax.f32 %v2184, 0.0
        %v2201 = vmax.f32 %v2185, 0.0
        %v2202 = vmax.f32 %v2186, 0.0
        %v2203 = vmax.f32 %v2187, 0.0
        %v2204 = vmax.f32 %v2188, 0.0
        %v2205 = vmax.f32 %v2189, 0.0
        %v2206 = vmax.f32 %v2190, 0.0
        %v2207 = vmax.f32 %v2191, 0.0
        %v2208 = vpack.c.bf16 %v2193, %v2192
        %v2209 = vpack.c.bf16 %v2195, %v2194
        %v2210 = vpack.c.bf16 %v2197, %v2196
        %v2211 = vpack.c.bf16 %v2199, %v2198
        %v2212 = vpack.c.bf16 %v2201, %v2200
        %v2213 = vpack.c.bf16 %v2203, %v2202
        %v2214 = vpack.c.bf16 %v2205, %v2204
        %v2215 = vpack.c.bf16 %v2207, %v2206
        %v2216 = vld [vmem:[#allocation17] sm:$0xf]
        %v2217 = vld [vmem:[#allocation17 + $0x4] sm:$0xf]
        %v2218 = vld [vmem:[#allocation17 + $0x8] sm:$0xf]
        %v2219 = vld [vmem:[#allocation17 + $0xc] sm:$0xf]
        %v2220 = vld [vmem:[#allocation17 + $0x10] sm:$0xf]
        %v2221 = vld [vmem:[#allocation17 + $0x14] sm:$0xf]
        %v2222 = vld [vmem:[#allocation17 + $0x18] sm:$0xf]
        %v2223 = vld [vmem:[#allocation17 + $0x1c] sm:$0xf]
        %v2224 = vld [vmem:[#allocation17 + $0x20] sm:$0xf]
        %v2225 = vld [vmem:[#allocation17 + $0x24] sm:$0xf]
        %v2226 = vld [vmem:[#allocation17 + $0x28] sm:$0xf]
        %v2227 = vld [vmem:[#allocation17 + $0x2c] sm:$0xf]
        %v2228 = vld [vmem:[#allocation17 + $0x30] sm:$0xf]
        %v2229 = vld [vmem:[#allocation17 + $0x34] sm:$0xf]
        %v2230 = vld [vmem:[#allocation17 + $0x38] sm:$0xf]
        %v2231 = vld [vmem:[#allocation17 + $0x3c] sm:$0xf]
        %v2248 = vunpack.c.l.b16 %v2216
        %v2249 = vunpack.c.l.b16 %v2217
        %v2250 = vunpack.c.l.b16 %v2218
        %v2251 = vunpack.c.l.b16 %v2219
        %v2252 = vunpack.c.l.b16 %v2220
        %v2253 = vunpack.c.l.b16 %v2221
        %v2254 = vunpack.c.l.b16 %v2222
        %v2255 = vunpack.c.l.b16 %v2223
        %v2256 = vunpack.c.l.b16 %v2224
        %v2257 = vunpack.c.l.b16 %v2225
        %v2258 = vunpack.c.l.b16 %v2226
        %v2259 = vunpack.c.l.b16 %v2227
        %v2260 = vunpack.c.l.b16 %v2228
        %v2261 = vunpack.c.l.b16 %v2229
        %v2262 = vunpack.c.l.b16 %v2230
        %v2263 = vunpack.c.l.b16 %v2231
        %v2264 = vpack.c.b16 %v2249, %v2248
        %v2265 = vpack.c.b16 %v2251, %v2250
        %v2266 = vpack.c.b16 %v2253, %v2252
        %v2267 = vpack.c.b16 %v2255, %v2254
        %v2268 = vpack.c.b16 %v2257, %v2256
        %v2269 = vpack.c.b16 %v2259, %v2258
        %v2270 = vpack.c.b16 %v2261, %v2260
        %v2271 = vpack.c.b16 %v2263, %v2262
        %2280 = vmatprep.subr.bf16.mxu0 0
        %2281 = vmatpush1.bf16.msra.mxu0 %v2264
        %2282 = vmatprep.subr.bf16.mxu0 0
        %2283 = vmatpush1.bf16.msra.mxu0 %v2265
        %2284 = vmatprep.subr.bf16.mxu0 0
        %2285 = vmatpush1.bf16.msra.mxu0 %v2266
        %2286 = vmatprep.subr.bf16.mxu0 0
        %2287 = vmatpush1.bf16.msra.mxu0 %v2267
        %2288 = vmatprep.subr.bf16.mxu0 0
        %2289 = vmatpush1.bf16.msra.mxu0 %v2268
        %2290 = vmatprep.subr.bf16.mxu0 0
        %2291 = vmatpush1.bf16.msra.mxu0 %v2269
        %2292 = vmatprep.subr.bf16.mxu0 0
        %2293 = vmatpush1.bf16.msra.mxu0 %v2270
        %2294 = vmatprep.subr.bf16.mxu0 0
        %2295 = vmatpush1.bf16.msra.mxu0 %v2271
        %2296 = vmatprep.subr.bf16.mxu0 0
        %2297 = vmatpush1.bf16.msra.mxu0 0
        %2298 = vmatprep.subr.bf16.mxu0 0
        %2299 = vmatpush1.bf16.msra.mxu0 0
        %2300 = vmatprep.subr.bf16.mxu0 0
        %2301 = vmatpush1.bf16.msra.mxu0 0
        %2302 = vmatprep.subr.bf16.mxu0 0
        %2303 = vmatpush1.bf16.msra.mxu0 0
        %2304 = vmatprep.subr.bf16.mxu0 0
        %2305 = vmatpush1.bf16.msra.mxu0 0
        %2306 = vmatprep.subr.bf16.mxu0 0
        %2307 = vmatpush1.bf16.msra.mxu0 0
        %2308 = vmatprep.subr.bf16.mxu0 0
        %2309 = vmatpush1.bf16.msra.mxu0 0
        %2310 = vmatprep.subr.bf16.mxu0 0
        %2311 = vmatpush1.bf16.msra.mxu0 0
        %2312 = vmatprep.mubr.bf16.mxu0 0
        %2313 = vmatmul.mubr.bf16.gmra.mrb[0].mxu0 %v2208
        %v2314 = vpop.f32.mrb[0].mxu0
        %v2315 = vadd.f32 0.0, %v2314
        %v2316 = vpop.f32.mrb[0].mxu0
        %v2317 = vpop.f32.mrb[0].mxu0
        %v2318 = vadd.f32 0.0, %v2317
        %v2319 = vpop.f32.mrb[0].mxu0
        %2320 = vmatprep.mubr.bf16.mxu0 0
        %2321 = vmatmul.mubr.bf16.gmra.mrb[0].mxu0 %v2209
        %v2322 = vpop.f32.mrb[0].mxu0
        %v2323 = vadd.f32 0.0, %v2322
        %v2324 = vpop.f32.mrb[0].mxu0
        %v2325 = vpop.f32.mrb[0].mxu0
        %v2326 = vadd.f32 0.0, %v2325
        %v2327 = vpop.f32.mrb[0].mxu0
        %2328 = vmatprep.mubr.bf16.mxu0 0
        %2329 = vmatmul.mubr.bf16.gmra.mrb[0].mxu0 %v2210
        %v2330 = vpop.f32.mrb[0].mxu0
        %v2331 = vadd.f32 0.0, %v2330
        %v2332 = vpop.f32.mrb[0].mxu0
        %v2333 = vpop.f32.mrb[0].mxu0
        %v2334 = vadd.f32 0.0, %v2333
        %v2335 = vpop.f32.mrb[0].mxu0
        %2336 = vmatprep.mubr.bf16.mxu0 0
        %2337 = vmatmul.mubr.bf16.gmra.mrb[0].mxu0 %v2211
        %v2338 = vpop.f32.mrb[0].mxu0
        %v2339 = vadd.f32 0.0, %v2338
        %v2340 = vpop.f32.mrb[0].mxu0
        %v2341 = vpop.f32.mrb[0].mxu0
        %v2342 = vadd.f32 0.0, %v2341
        %v2343 = vpop.f32.mrb[0].mxu0
        %2344 = vmatprep.mubr.bf16.mxu0 0
        %2345 = vmatmul.mubr.bf16.gmra.mrb[0].mxu0 %v2212
        %v2346 = vpop.f32.mrb[0].mxu0
        %v2347 = vadd.f32 0.0, %v2346
        %v2348 = vpop.f32.mrb[0].mxu0
        %v2349 = vpop.f32.mrb[0].mxu0
        %v2350 = vadd.f32 0.0, %v2349
        %v2351 = vpop.f32.mrb[0].mxu0
        %2352 = vmatprep.mubr.bf16.mxu0 0
        %2353 = vmatmul.mubr.bf16.gmra.mrb[0].mxu0 %v2213
        %v2354 = vpop.f32.mrb[0].mxu0
        %v2355 = vadd.f32 0.0, %v2354
        %v2356 = vpop.f32.mrb[0].mxu0
        %v2357 = vpop.f32.mrb[0].mxu0
        %v2358 = vadd.f32 0.0, %v2357
        %v2359 = vpop.f32.mrb[0].mxu0
        %2360 = vmatprep.mubr.bf16.mxu0 0
        %2361 = vmatmul.mubr.bf16.gmra.mrb[0].mxu0 %v2214
        %v2362 = vpop.f32.mrb[0].mxu0
        %v2363 = vadd.f32 0.0, %v2362
        %v2364 = vpop.f32.mrb[0].mxu0
        %v2365 = vpop.f32.mrb[0].mxu0
        %v2366 = vadd.f32 0.0, %v2365
        %v2367 = vpop.f32.mrb[0].mxu0
        %2368 = vmatprep.mubr.bf16.mxu0 0
        %2369 = vmatmul.mubr.bf16.gmra.mrb[0].mxu0 %v2215
        %v2370 = vpop.f32.mrb[0].mxu0
        %v2371 = vpop.f32.mrb[0].mxu0
        %v2372 = vpop.f32.mrb[0].mxu0
        %v2373 = vpop.f32.mrb[0].mxu0
        %2374 = vdwg.mxu0
        %s2375 = scalar_lea.vmem [#allocation17], 64
        %v2376 = vld [vmem:[%s2375] sm:$0xf]
        %v2377 = vld [vmem:[%s2375 + $0x4] sm:$0xf]
        %v2378 = vld [vmem:[%s2375 + $0x8] sm:$0xf]
        %v2379 = vld [vmem:[%s2375 + $0xc] sm:$0xf]
        %v2380 = vld [vmem:[%s2375 + $0x10] sm:$0xf]
        %v2381 = vld [vmem:[%s2375 + $0x14] sm:$0xf]
        %v2382 = vld [vmem:[%s2375 + $0x18] sm:$0xf]
        %v2383 = vld [vmem:[%s2375 + $0x1c] sm:$0xf]
        %v2384 = vld [vmem:[%s2375 + $0x20] sm:$0xf]
        %v2385 = vld [vmem:[%s2375 + $0x24] sm:$0xf]
        %v2386 = vld [vmem:[%s2375 + $0x28] sm:$0xf]
        %v2387 = vld [vmem:[%s2375 + $0x2c] sm:$0xf]
        %v2388 = vld [vmem:[%s2375 + $0x30] sm:$0xf]
        %v2389 = vld [vmem:[%s2375 + $0x34] sm:$0xf]
        %v2390 = vld [vmem:[%s2375 + $0x38] sm:$0xf]
        %v2391 = vld [vmem:[%s2375 + $0x3c] sm:$0xf]
        %v2408 = vunpack.c.l.b16 %v2376
        %v2409 = vunpack.c.l.b16 %v2377
        %v2410 = vunpack.c.l.b16 %v2378
        %v2411 = vunpack.c.l.b16 %v2379
        %v2412 = vunpack.c.l.b16 %v2380
        %v2413 = vunpack.c.l.b16 %v2381
        %v2414 = vunpack.c.l.b16 %v2382
        %v2415 = vunpack.c.l.b16 %v2383
        %v2416 = vunpack.c.l.b16 %v2384
        %v2417 = vunpack.c.l.b16 %v2385
        %v2418 = vunpack.c.l.b16 %v2386
        %v2419 = vunpack.c.l.b16 %v2387
        %v2420 = vunpack.c.l.b16 %v2388
        %v2421 = vunpack.c.l.b16 %v2389
        %v2422 = vunpack.c.l.b16 %v2390
        %v2423 = vunpack.c.l.b16 %v2391
        %v2424 = vpack.c.b16 %v2409, %v2408
        %v2425 = vpack.c.b16 %v2411, %v2410
        %v2426 = vpack.c.b16 %v2413, %v2412
        %v2427 = vpack.c.b16 %v2415, %v2414
        %v2428 = vpack.c.b16 %v2417, %v2416
        %v2429 = vpack.c.b16 %v2419, %v2418
        %v2430 = vpack.c.b16 %v2421, %v2420
        %v2431 = vpack.c.b16 %v2423, %v2422
        %2440 = vmatprep.subr.bf16.mxu0 0
        %2441 = vmatpush1.bf16.msra.mxu0 %v2424
        %2442 = vmatprep.subr.bf16.mxu0 0
        %2443 = vmatpush1.bf16.msra.mxu0 %v2425
        %2444 = vmatprep.subr.bf16.mxu0 0
        %2445 = vmatpush1.bf16.msra.mxu0 %v2426
        %2446 = vmatprep.subr.bf16.mxu0 0
        %2447 = vmatpush1.bf16.msra.mxu0 %v2427
        %2448 = vmatprep.subr.bf16.mxu0 0
        %2449 = vmatpush1.bf16.msra.mxu0 %v2428
        %2450 = vmatprep.subr.bf16.mxu0 0
        %2451 = vmatpush1.bf16.msra.mxu0 %v2429
        %2452 = vmatprep.subr.bf16.mxu0 0
        %2453 = vmatpush1.bf16.msra.mxu0 %v2430
        %2454 = vmatprep.subr.bf16.mxu0 0
        %2455 = vmatpush1.bf16.msra.mxu0 %v2431
        %2456 = vmatprep.subr.bf16.mxu0 0
        %2457 = vmatpush1.bf16.msra.mxu0 0
        %2458 = vmatprep.subr.bf16.mxu0 0
        %2459 = vmatpush1.bf16.msra.mxu0 0
        %2460 = vmatprep.subr.bf16.mxu0 0
        %2461 = vmatpush1.bf16.msra.mxu0 0
        %2462 = vmatprep.subr.bf16.mxu0 0
        %2463 = vmatpush1.bf16.msra.mxu0 0
        %2464 = vmatprep.subr.bf16.mxu0 0
        %2465 = vmatpush1.bf16.msra.mxu0 0
        %2466 = vmatprep.subr.bf16.mxu0 0
        %2467 = vmatpush1.bf16.msra.mxu0 0
        %2468 = vmatprep.subr.bf16.mxu0 0
        %2469 = vmatpush1.bf16.msra.mxu0 0
        %2470 = vmatprep.subr.bf16.mxu0 0
        %2471 = vmatpush1.bf16.msra.mxu0 0
        %2472 = vmatprep.mubr.bf16.mxu0 0
        %2473 = vmatmul.mubr.bf16.gmra.mrb[0].mxu0 %v2208
        %v2474 = vpop.f32.mrb[0].mxu0
        %v2475 = vadd.f32 0.0, %v2474
        %v2476 = vpop.f32.mrb[0].mxu0
        %v2477 = vpop.f32.mrb[0].mxu0
        %v2478 = vadd.f32 0.0, %v2477
        %v2479 = vpop.f32.mrb[0].mxu0
        %2480 = vmatprep.mubr.bf16.mxu0 0
        %2481 = vmatmul.mubr.bf16.gmra.mrb[0].mxu0 %v2209
        %v2482 = vpop.f32.mrb[0].mxu0
        %v2483 = vadd.f32 0.0, %v2482
        %v2484 = vpop.f32.mrb[0].mxu0
        %v2485 = vpop.f32.mrb[0].mxu0
        %v2486 = vadd.f32 0.0, %v2485
        %v2487 = vpop.f32.mrb[0].mxu0
        %2488 = vmatprep.mubr.bf16.mxu0 0
        %2489 = vmatmul.mubr.bf16.gmra.mrb[0].mxu0 %v2210
        %v2490 = vpop.f32.mrb[0].mxu0
        %v2491 = vadd.f32 0.0, %v2490
        %v2492 = vpop.f32.mrb[0].mxu0
        %v2493 = vpop.f32.mrb[0].mxu0
        %v2494 = vadd.f32 0.0, %v2493
        %v2495 = vpop.f32.mrb[0].mxu0
        %2496 = vmatprep.mubr.bf16.mxu0 0
        %2497 = vmatmul.mubr.bf16.gmra.mrb[0].mxu0 %v2211
        %v2498 = vpop.f32.mrb[0].mxu0
        %v2499 = vadd.f32 0.0, %v2498
        %v2500 = vpop.f32.mrb[0].mxu0
        %v2501 = vpop.f32.mrb[0].mxu0
        %v2502 = vadd.f32 0.0, %v2501
        %v2503 = vpop.f32.mrb[0].mxu0
        %2504 = vmatprep.mubr.bf16.mxu0 0
        %2505 = vmatmul.mubr.bf16.gmra.mrb[0].mxu0 %v2212
        %v2506 = vpop.f32.mrb[0].mxu0
        %v2507 = vadd.f32 0.0, %v2506
        %v2508 = vpop.f32.mrb[0].mxu0
        %v2509 = vpop.f32.mrb[0].mxu0
        %v2510 = vadd.f32 0.0, %v2509
        %v2511 = vpop.f32.mrb[0].mxu0
        %2512 = vmatprep.mubr.bf16.mxu0 0
        %2513 = vmatmul.mubr.bf16.gmra.mrb[0].mxu0 %v2213
        %v2514 = vpop.f32.mrb[0].mxu0
        %v2515 = vadd.f32 0.0, %v2514
        %v2516 = vpop.f32.mrb[0].mxu0
        %v2517 = vpop.f32.mrb[0].mxu0
        %v2518 = vadd.f32 0.0, %v2517
        %v2519 = vpop.f32.mrb[0].mxu0
        %2520 = vmatprep.mubr.bf16.mxu0 0
        %2521 = vmatmul.mubr.bf16.gmra.mrb[0].mxu0 %v2214
        %v2522 = vpop.f32.mrb[0].mxu0
        %v2523 = vadd.f32 0.0, %v2522
        %v2524 = vpop.f32.mrb[0].mxu0
        %v2525 = vpop.f32.mrb[0].mxu0
        %v2526 = vadd.f32 0.0, %v2525
        %v2527 = vpop.f32.mrb[0].mxu0
        %2528 = vmatprep.mubr.bf16.mxu0 0
        %2529 = vmatmul.mubr.bf16.gmra.mrb[0].mxu0 %v2215
        %v2530 = vpop.f32.mrb[0].mxu0
        %v2531 = vadd.f32 0.0, %v2530
        %v2532 = vpop.f32.mrb[0].mxu0
        %v2533 = vpop.f32.mrb[0].mxu0
        %v2534 = vadd.f32 0.0, %v2533
        %v2535 = vpop.f32.mrb[0].mxu0
        %2536 = vdwg.mxu0
        %v2537 = vadd.f32 %v2475, 0.0
        %v2538 = vadd.f32 %v2478, 0.0
        %v2539 = vadd.f32 %v2315, %v2483
        %v2540 = vadd.f32 %v2318, %v2486
        %v2541 = vadd.f32 %v2323, %v2491
        %v2542 = vadd.f32 %v2326, %v2494
        %v2543 = vadd.f32 %v2331, %v2499
        %v2544 = vadd.f32 %v2334, %v2502
        %v2545 = vadd.f32 %v2339, %v2507
        %v2546 = vadd.f32 %v2342, %v2510
        %v2547 = vadd.f32 %v2347, %v2515
        %v2548 = vadd.f32 %v2350, %v2518
        %v2549 = vadd.f32 %v2355, %v2523
        %v2550 = vadd.f32 %v2358, %v2526
        %v2551 = vadd.f32 %v2363, %v2531
        %v2552 = vadd.f32 %v2366, %v2534
        %v2553 = vld [vmem:[#allocation19] sm:$0x1]
        %v2555 = vlaneseq
        %v2556 = vshrl.u32 %v2555, 7
        %v2557 = vsub.s32 0, %v2556
        %v2558 = vrot.slane %v2553, %v2557
        %v2560 = vadd.f32 %v2537, %v2558
        %v2561 = vadd.f32 %v2538, %v2558
        %v2562 = vadd.f32 %v2539, %v2558
        %v2563 = vadd.f32 %v2540, %v2558
        %v2564 = vadd.f32 %v2541, %v2558
        %v2565 = vadd.f32 %v2542, %v2558
        %v2566 = vadd.f32 %v2543, %v2558
        %v2567 = vadd.f32 %v2544, %v2558
        %v2568 = vadd.f32 %v2545, %v2558
        %v2569 = vadd.f32 %v2546, %v2558
        %v2570 = vadd.f32 %v2547, %v2558
        %v2571 = vadd.f32 %v2548, %v2558
        %v2572 = vadd.f32 %v2549, %v2558
        %v2573 = vadd.f32 %v2550, %v2558
        %v2574 = vadd.f32 %v2551, %v2558
        %v2575 = vadd.f32 %v2552, %v2558
        %v2576 = vmax.f32 %v2560, 0.0
        %v2577 = vmax.f32 %v2561, 0.0
        %v2578 = vmax.f32 %v2562, 0.0
        %v2579 = vmax.f32 %v2563, 0.0
        %v2580 = vmax.f32 %v2564, 0.0
        %v2581 = vmax.f32 %v2565, 0.0
        %v2582 = vmax.f32 %v2566, 0.0
        %v2583 = vmax.f32 %v2567, 0.0
        %v2584 = vmax.f32 %v2568, 0.0
        %v2585 = vmax.f32 %v2569, 0.0
        %v2586 = vmax.f32 %v2570, 0.0
        %v2587 = vmax.f32 %v2571, 0.0
        %v2588 = vmax.f32 %v2572, 0.0
        %v2589 = vmax.f32 %v2573, 0.0
        %v2590 = vmax.f32 %v2574, 0.0
        %v2591 = vmax.f32 %v2575, 0.0
        %v2592 = vadd.f32 %v2576, %v1808
        %v2593 = vadd.f32 %v2577, %v1809
        %v2594 = vadd.f32 %v2578, %v1810
        %v2595 = vadd.f32 %v2579, %v1811
        %v2596 = vadd.f32 %v2580, %v1812
        %v2597 = vadd.f32 %v2581, %v1813
        %v2598 = vadd.f32 %v2582, %v1814
        %v2599 = vadd.f32 %v2583, %v1815
        %v2600 = vadd.f32 %v2584, %v1816
        %v2601 = vadd.f32 %v2585, %v1817
        %v2602 = vadd.f32 %v2586, %v1818
        %v2603 = vadd.f32 %v2587, %v1819
        %v2604 = vadd.f32 %v2588, %v1820
        %v2605 = vadd.f32 %v2589, %v1821
        %v2606 = vadd.f32 %v2590, %v1822
        %v2607 = vadd.f32 %v2591, %v1823
        %v2608 = vmax.f32 %v2592, 0.0
        %v2609 = vmax.f32 %v2593, 0.0
        %v2610 = vmax.f32 %v2594, 0.0
        %v2611 = vmax.f32 %v2595, 0.0
        %v2612 = vmax.f32 %v2596, 0.0
        %v2613 = vmax.f32 %v2597, 0.0
        %v2614 = vmax.f32 %v2598, 0.0
        %v2615 = vmax.f32 %v2599, 0.0
        %v2616 = vmax.f32 %v2600, 0.0
        %v2617 = vmax.f32 %v2601, 0.0
        %v2618 = vmax.f32 %v2602, 0.0
        %v2619 = vmax.f32 %v2603, 0.0
        %v2620 = vmax.f32 %v2604, 0.0
        %v2621 = vmax.f32 %v2605, 0.0
        %v2622 = vmax.f32 %v2606, 0.0
        %v2623 = vmax.f32 %v2607, 0.0
        %v2624 = vpack.c.bf16 %v2609, %v2608
        %v2625 = vpack.c.bf16 %v2611, %v2610
        %v2626 = vpack.c.bf16 %v2613, %v2612
        %v2627 = vpack.c.bf16 %v2615, %v2614
        %v2628 = vpack.c.bf16 %v2617, %v2616
        %v2629 = vpack.c.bf16 %v2619, %v2618
        %v2630 = vpack.c.bf16 %v2621, %v2620
        %v2631 = vpack.c.bf16 %v2623, %v2622
        %v2632 = vld [vmem:[#allocation20] sm:$0xf]
        %v2633 = vld [vmem:[#allocation20 + $0x4] sm:$0xf]
        %v2634 = vld [vmem:[#allocation20 + $0x8] sm:$0xf]
        %v2635 = vld [vmem:[#allocation20 + $0xc] sm:$0xf]
        %v2636 = vld [vmem:[#allocation20 + $0x10] sm:$0xf]
        %v2637 = vld [vmem:[#allocation20 + $0x14] sm:$0xf]
        %v2638 = vld [vmem:[#allocation20 + $0x18] sm:$0xf]
        %v2639 = vld [vmem:[#allocation20 + $0x1c] sm:$0xf]
        %v2640 = vld [vmem:[#allocation20 + $0x20] sm:$0xf]
        %v2641 = vld [vmem:[#allocation20 + $0x24] sm:$0xf]
        %v2642 = vld [vmem:[#allocation20 + $0x28] sm:$0xf]
        %v2643 = vld [vmem:[#allocation20 + $0x2c] sm:$0xf]
        %v2644 = vld [vmem:[#allocation20 + $0x30] sm:$0xf]
        %v2645 = vld [vmem:[#allocation20 + $0x34] sm:$0xf]
        %v2646 = vld [vmem:[#allocation20 + $0x38] sm:$0xf]
        %v2647 = vld [vmem:[#allocation20 + $0x3c] sm:$0xf]
        %v2664 = vunpack.c.l.b16 %v2632
        %v2665 = vunpack.c.l.b16 %v2633
        %v2666 = vunpack.c.l.b16 %v2634
        %v2667 = vunpack.c.l.b16 %v2635
        %v2668 = vunpack.c.l.b16 %v2636
        %v2669 = vunpack.c.l.b16 %v2637
        %v2670 = vunpack.c.l.b16 %v2638
        %v2671 = vunpack.c.l.b16 %v2639
        %v2672 = vunpack.c.l.b16 %v2640
        %v2673 = vunpack.c.l.b16 %v2641
        %v2674 = vunpack.c.l.b16 %v2642
        %v2675 = vunpack.c.l.b16 %v2643
        %v2676 = vunpack.c.l.b16 %v2644
        %v2677 = vunpack.c.l.b16 %v2645
        %v2678 = vunpack.c.l.b16 %v2646
        %v2679 = vunpack.c.l.b16 %v2647
        %v2680 = vpack.c.b16 %v2665, %v2664
        %v2681 = vpack.c.b16 %v2667, %v2666
        %v2682 = vpack.c.b16 %v2669, %v2668
        %v2683 = vpack.c.b16 %v2671, %v2670
        %v2684 = vpack.c.b16 %v2673, %v2672
        %v2685 = vpack.c.b16 %v2675, %v2674
        %v2686 = vpack.c.b16 %v2677, %v2676
        %v2687 = vpack.c.b16 %v2679, %v2678
        %2696 = vmatprep.subr.bf16.mxu0 0
        %2697 = vmatpush1.bf16.msra.mxu0 %v2680
        %2698 = vmatprep.subr.bf16.mxu0 0
        %2699 = vmatpush1.bf16.msra.mxu0 %v2681
        %2700 = vmatprep.subr.bf16.mxu0 0
        %2701 = vmatpush1.bf16.msra.mxu0 %v2682
        %2702 = vmatprep.subr.bf16.mxu0 0
        %2703 = vmatpush1.bf16.msra.mxu0 %v2683
        %2704 = vmatprep.subr.bf16.mxu0 0
        %2705 = vmatpush1.bf16.msra.mxu0 %v2684
        %2706 = vmatprep.subr.bf16.mxu0 0
        %2707 = vmatpush1.bf16.msra.mxu0 %v2685
        %2708 = vmatprep.subr.bf16.mxu0 0
        %2709 = vmatpush1.bf16.msra.mxu0 %v2686
        %2710 = vmatprep.subr.bf16.mxu0 0
        %2711 = vmatpush1.bf16.msra.mxu0 %v2687
        %2712 = vmatprep.subr.bf16.mxu0 0
        %2713 = vmatpush1.bf16.msra.mxu0 0
        %2714 = vmatprep.subr.bf16.mxu0 0
        %2715 = vmatpush1.bf16.msra.mxu0 0
        %2716 = vmatprep.subr.bf16.mxu0 0
        %2717 = vmatpush1.bf16.msra.mxu0 0
        %2718 = vmatprep.subr.bf16.mxu0 0
        %2719 = vmatpush1.bf16.msra.mxu0 0
        %2720 = vmatprep.subr.bf16.mxu0 0
        %2721 = vmatpush1.bf16.msra.mxu0 0
        %2722 = vmatprep.subr.bf16.mxu0 0
        %2723 = vmatpush1.bf16.msra.mxu0 0
        %2724 = vmatprep.subr.bf16.mxu0 0
        %2725 = vmatpush1.bf16.msra.mxu0 0
        %2726 = vmatprep.subr.bf16.mxu0 0
        %2727 = vmatpush1.bf16.msra.mxu0 0
        %2728 = vmatprep.mubr.bf16.mxu0 0
        %2729 = vmatmul.mubr.bf16.gmra.mrb[0].mxu0 %v2624
        %v2730 = vpop.f32.mrb[0].mxu0
        %v2731 = vadd.f32 0.0, %v2730
        %v2732 = vpop.f32.mrb[0].mxu0
        %v2733 = vpop.f32.mrb[0].mxu0
        %v2734 = vadd.f32 0.0, %v2733
        %v2735 = vpop.f32.mrb[0].mxu0
        %2736 = vmatprep.mubr.bf16.mxu0 0
        %2737 = vmatmul.mubr.bf16.gmra.mrb[0].mxu0 %v2625
        %v2738 = vpop.f32.mrb[0].mxu0
        %v2739 = vadd.f32 0.0, %v2738
        %v2740 = vpop.f32.mrb[0].mxu0
        %v2741 = vpop.f32.mrb[0].mxu0
        %v2742 = vadd.f32 0.0, %v2741
        %v2743 = vpop.f32.mrb[0].mxu0
        %2744 = vmatprep.mubr.bf16.mxu0 0
        %2745 = vmatmul.mubr.bf16.gmra.mrb[0].mxu0 %v2626
        %v2746 = vpop.f32.mrb[0].mxu0
        %v2747 = vadd.f32 0.0, %v2746
        %v2748 = vpop.f32.mrb[0].mxu0
        %v2749 = vpop.f32.mrb[0].mxu0
        %v2750 = vadd.f32 0.0, %v2749
        %v2751 = vpop.f32.mrb[0].mxu0
        %2752 = vmatprep.mubr.bf16.mxu0 0
        %2753 = vmatmul.mubr.bf16.gmra.mrb[0].mxu0 %v2627
        %v2754 = vpop.f32.mrb[0].mxu0
        %v2755 = vadd.f32 0.0, %v2754
        %v2756 = vpop.f32.mrb[0].mxu0
        %v2757 = vpop.f32.mrb[0].mxu0
        %v2758 = vadd.f32 0.0, %v2757
        %v2759 = vpop.f32.mrb[0].mxu0
        %2760 = vmatprep.mubr.bf16.mxu0 0
        %2761 = vmatmul.mubr.bf16.gmra.mrb[0].mxu0 %v2628
        %v2762 = vpop.f32.mrb[0].mxu0
        %v2763 = vadd.f32 0.0, %v2762
        %v2764 = vpop.f32.mrb[0].mxu0
        %v2765 = vpop.f32.mrb[0].mxu0
        %v2766 = vadd.f32 0.0, %v2765
        %v2767 = vpop.f32.mrb[0].mxu0
        %2768 = vmatprep.mubr.bf16.mxu0 0
        %2769 = vmatmul.mubr.bf16.gmra.mrb[0].mxu0 %v2629
        %v2770 = vpop.f32.mrb[0].mxu0
        %v2771 = vadd.f32 0.0, %v2770
        %v2772 = vpop.f32.mrb[0].mxu0
        %v2773 = vpop.f32.mrb[0].mxu0
        %v2774 = vadd.f32 0.0, %v2773
        %v2775 = vpop.f32.mrb[0].mxu0
        %2776 = vmatprep.mubr.bf16.mxu0 0
        %2777 = vmatmul.mubr.bf16.gmra.mrb[0].mxu0 %v2630
        %v2778 = vpop.f32.mrb[0].mxu0
        %v2779 = vpop.f32.mrb[0].mxu0
        %v2780 = vpop.f32.mrb[0].mxu0
        %v2781 = vpop.f32.mrb[0].mxu0
        %2782 = vmatprep.mubr.bf16.mxu0 0
        %2783 = vmatmul.mubr.bf16.gmra.mrb[0].mxu0 %v2631
        %v2784 = vpop.f32.mrb[0].mxu0
        %v2785 = vpop.f32.mrb[0].mxu0
        %v2786 = vpop.f32.mrb[0].mxu0
        %v2787 = vpop.f32.mrb[0].mxu0
        %2788 = vdwg.mxu0
        %s2789 = scalar_lea.vmem [#allocation20], 64
        %v2790 = vld [vmem:[%s2789] sm:$0xf]
        %v2791 = vld [vmem:[%s2789 + $0x4] sm:$0xf]
        %v2792 = vld [vmem:[%s2789 + $0x8] sm:$0xf]
        %v2793 = vld [vmem:[%s2789 + $0xc] sm:$0xf]
        %v2794 = vld [vmem:[%s2789 + $0x10] sm:$0xf]
        %v2795 = vld [vmem:[%s2789 + $0x14] sm:$0xf]
        %v2796 = vld [vmem:[%s2789 + $0x18] sm:$0xf]
        %v2797 = vld [vmem:[%s2789 + $0x1c] sm:$0xf]
        %v2798 = vld [vmem:[%s2789 + $0x20] sm:$0xf]
        %v2799 = vld [vmem:[%s2789 + $0x24] sm:$0xf]
        %v2800 = vld [vmem:[%s2789 + $0x28] sm:$0xf]
        %v2801 = vld [vmem:[%s2789 + $0x2c] sm:$0xf]
        %v2802 = vld [vmem:[%s2789 + $0x30] sm:$0xf]
        %v2803 = vld [vmem:[%s2789 + $0x34] sm:$0xf]
        %v2804 = vld [vmem:[%s2789 + $0x38] sm:$0xf]
        %v2805 = vld [vmem:[%s2789 + $0x3c] sm:$0xf]
        %v2822 = vunpack.c.l.b16 %v2790
        %v2823 = vunpack.c.l.b16 %v2791
        %v2824 = vunpack.c.l.b16 %v2792
        %v2825 = vunpack.c.l.b16 %v2793
        %v2826 = vunpack.c.l.b16 %v2794
        %v2827 = vunpack.c.l.b16 %v2795
        %v2828 = vunpack.c.l.b16 %v2796
        %v2829 = vunpack.c.l.b16 %v2797
        %v2830 = vunpack.c.l.b16 %v2798
        %v2831 = vunpack.c.l.b16 %v2799
        %v2832 = vunpack.c.l.b16 %v2800
        %v2833 = vunpack.c.l.b16 %v2801
        %v2834 = vunpack.c.l.b16 %v2802
        %v2835 = vunpack.c.l.b16 %v2803
        %v2836 = vunpack.c.l.b16 %v2804
        %v2837 = vunpack.c.l.b16 %v2805
        %v2838 = vpack.c.b16 %v2823, %v2822
        %v2839 = vpack.c.b16 %v2825, %v2824
        %v2840 = vpack.c.b16 %v2827, %v2826
        %v2841 = vpack.c.b16 %v2829, %v2828
        %v2842 = vpack.c.b16 %v2831, %v2830
        %v2843 = vpack.c.b16 %v2833, %v2832
        %v2844 = vpack.c.b16 %v2835, %v2834
        %v2845 = vpack.c.b16 %v2837, %v2836
        %2854 = vmatprep.subr.bf16.mxu0 0
        %2855 = vmatpush1.bf16.msra.mxu0 %v2838
        %2856 = vmatprep.subr.bf16.mxu0 0
        %2857 = vmatpush1.bf16.msra.mxu0 %v2839
        %2858 = vmatprep.subr.bf16.mxu0 0
        %2859 = vmatpush1.bf16.msra.mxu0 %v2840
        %2860 = vmatprep.subr.bf16.mxu0 0
        %2861 = vmatpush1.bf16.msra.mxu0 %v2841
        %2862 = vmatprep.subr.bf16.mxu0 0
        %2863 = vmatpush1.bf16.msra.mxu0 %v2842
        %2864 = vmatprep.subr.bf16.mxu0 0
        %2865 = vmatpush1.bf16.msra.mxu0 %v2843
        %2866 = vmatprep.subr.bf16.mxu0 0
        %2867 = vmatpush1.bf16.msra.mxu0 %v2844
        %2868 = vmatprep.subr.bf16.mxu0 0
        %2869 = vmatpush1.bf16.msra.mxu0 %v2845
        %2870 = vmatprep.subr.bf16.mxu0 0
        %2871 = vmatpush1.bf16.msra.mxu0 0
        %2872 = vmatprep.subr.bf16.mxu0 0
        %2873 = vmatpush1.bf16.msra.mxu0 0
        %2874 = vmatprep.subr.bf16.mxu0 0
        %2875 = vmatpush1.bf16.msra.mxu0 0
        %2876 = vmatprep.subr.bf16.mxu0 0
        %2877 = vmatpush1.bf16.msra.mxu0 0
        %2878 = vmatprep.subr.bf16.mxu0 0
        %2879 = vmatpush1.bf16.msra.mxu0 0
        %2880 = vmatprep.subr.bf16.mxu0 0
        %2881 = vmatpush1.bf16.msra.mxu0 0
        %2882 = vmatprep.subr.bf16.mxu0 0
        %2883 = vmatpush1.bf16.msra.mxu0 0
        %2884 = vmatprep.subr.bf16.mxu0 0
        %2885 = vmatpush1.bf16.msra.mxu0 0
        %2886 = vmatprep.mubr.bf16.mxu0 0
        %2887 = vmatmul.mubr.bf16.gmra.mrb[0].mxu0 %v2624
        %v2888 = vpop.f32.mrb[0].mxu0
        %v2889 = vadd.f32 0.0, %v2888
        %v2890 = vpop.f32.mrb[0].mxu0
        %v2891 = vpop.f32.mrb[0].mxu0
        %v2892 = vadd.f32 0.0, %v2891
        %v2893 = vpop.f32.mrb[0].mxu0
        %2894 = vmatprep.mubr.bf16.mxu0 0
        %2895 = vmatmul.mubr.bf16.gmra.mrb[0].mxu0 %v2625
        %v2896 = vpop.f32.mrb[0].mxu0
        %v2897 = vadd.f32 0.0, %v2896
        %v2898 = vpop.f32.mrb[0].mxu0
        %v2899 = vpop.f32.mrb[0].mxu0
        %v2900 = vadd.f32 0.0, %v2899
        %v2901 = vpop.f32.mrb[0].mxu0
        %2902 = vmatprep.mubr.bf16.mxu0 0
        %2903 = vmatmul.mubr.bf16.gmra.mrb[0].mxu0 %v2626
        %v2904 = vpop.f32.mrb[0].mxu0
        %v2905 = vadd.f32 0.0, %v2904
        %v2906 = vpop.f32.mrb[0].mxu0
        %v2907 = vpop.f32.mrb[0].mxu0
        %v2908 = vadd.f32 0.0, %v2907
        %v2909 = vpop.f32.mrb[0].mxu0
        %2910 = vmatprep.mubr.bf16.mxu0 0
        %2911 = vmatmul.mubr.bf16.gmra.mrb[0].mxu0 %v2627
        %v2912 = vpop.f32.mrb[0].mxu0
        %v2913 = vadd.f32 0.0, %v2912
        %v2914 = vpop.f32.mrb[0].mxu0
        %v2915 = vpop.f32.mrb[0].mxu0
        %v2916 = vadd.f32 0.0, %v2915
        %v2917 = vpop.f32.mrb[0].mxu0
        %2918 = vmatprep.mubr.bf16.mxu0 0
        %2919 = vmatmul.mubr.bf16.gmra.mrb[0].mxu0 %v2628
        %v2920 = vpop.f32.mrb[0].mxu0
        %v2921 = vadd.f32 0.0, %v2920
        %v2922 = vpop.f32.mrb[0].mxu0
        %v2923 = vpop.f32.mrb[0].mxu0
        %v2924 = vadd.f32 0.0, %v2923
        %v2925 = vpop.f32.mrb[0].mxu0
        %2926 = vmatprep.mubr.bf16.mxu0 0
        %2927 = vmatmul.mubr.bf16.gmra.mrb[0].mxu0 %v2629
        %v2928 = vpop.f32.mrb[0].mxu0
        %v2929 = vadd.f32 0.0, %v2928
        %v2930 = vpop.f32.mrb[0].mxu0
        %v2931 = vpop.f32.mrb[0].mxu0
        %v2932 = vadd.f32 0.0, %v2931
        %v2933 = vpop.f32.mrb[0].mxu0
        %2934 = vmatprep.mubr.bf16.mxu0 0
        %2935 = vmatmul.mubr.bf16.gmra.mrb[0].mxu0 %v2630
        %v2936 = vpop.f32.mrb[0].mxu0
        %v2937 = vadd.f32 0.0, %v2936
        %v2938 = vpop.f32.mrb[0].mxu0
        %v2939 = vpop.f32.mrb[0].mxu0
        %v2940 = vadd.f32 0.0, %v2939
        %v2941 = vpop.f32.mrb[0].mxu0
        %2942 = vmatprep.mubr.bf16.mxu0 0
        %2943 = vmatmul.mubr.bf16.gmra.mrb[0].mxu0 %v2631
        %v2944 = vpop.f32.mrb[0].mxu0
        %v2945 = vadd.f32 0.0, %v2944
        %v2946 = vpop.f32.mrb[0].mxu0
        %v2947 = vpop.f32.mrb[0].mxu0
        %v2948 = vadd.f32 0.0, %v2947
        %v2949 = vpop.f32.mrb[0].mxu0
        %2950 = vdwg.mxu0
        %v2951 = vadd.f32 %v2889, 0.0
        %v2952 = vadd.f32 %v2892, 0.0
        %v2953 = vadd.f32 %v2897, 0.0
        %v2954 = vadd.f32 %v2900, 0.0
        %v2955 = vadd.f32 %v2731, %v2905
        %v2956 = vadd.f32 %v2734, %v2908
        %v2957 = vadd.f32 %v2739, %v2913
        %v2958 = vadd.f32 %v2742, %v2916
        %v2959 = vadd.f32 %v2747, %v2921
        %v2960 = vadd.f32 %v2750, %v2924
        %v2961 = vadd.f32 %v2755, %v2929
        %v2962 = vadd.f32 %v2758, %v2932
        %v2963 = vadd.f32 %v2763, %v2937
        %v2964 = vadd.f32 %v2766, %v2940
        %v2965 = vadd.f32 %v2771, %v2945
        %v2966 = vadd.f32 %v2774, %v2948
        %v2967 = vld [vmem:[#allocation22] sm:$0x1]
        %v2969 = vlaneseq
        %v2970 = vshrl.u32 %v2969, 7
        %v2971 = vsub.s32 0, %v2970
        %v2972 = vrot.slane %v2967, %v2971
        %v2974 = vadd.f32 %v2951, %v2972
        %v2975 = vadd.f32 %v2952, %v2972
        %v2976 = vadd.f32 %v2953, %v2972
        %v2977 = vadd.f32 %v2954, %v2972
        %v2978 = vadd.f32 %v2955, %v2972
        %v2979 = vadd.f32 %v2956, %v2972
        %v2980 = vadd.f32 %v2957, %v2972
        %v2981 = vadd.f32 %v2958, %v2972
        %v2982 = vadd.f32 %v2959, %v2972
        %v2983 = vadd.f32 %v2960, %v2972
        %v2984 = vadd.f32 %v2961, %v2972
        %v2985 = vadd.f32 %v2962, %v2972
        %v2986 = vadd.f32 %v2963, %v2972
        %v2987 = vadd.f32 %v2964, %v2972
        %v2988 = vadd.f32 %v2965, %v2972
        %v2989 = vadd.f32 %v2966, %v2972
        %v2990 = vmax.f32 %v2974, 0.0
        %v2991 = vmax.f32 %v2975, 0.0
        %v2992 = vmax.f32 %v2976, 0.0
        %v2993 = vmax.f32 %v2977, 0.0
        %v2994 = vmax.f32 %v2978, 0.0
        %v2995 = vmax.f32 %v2979, 0.0
        %v2996 = vmax.f32 %v2980, 0.0
        %v2997 = vmax.f32 %v2981, 0.0
        %v2998 = vmax.f32 %v2982, 0.0
        %v2999 = vmax.f32 %v2983, 0.0
        %v3000 = vmax.f32 %v2984, 0.0
        %v3001 = vmax.f32 %v2985, 0.0
        %v3002 = vmax.f32 %v2986, 0.0
        %v3003 = vmax.f32 %v2987, 0.0
        %v3004 = vmax.f32 %v2988, 0.0
        %v3005 = vmax.f32 %v2989, 0.0
        %v3006 = vpack.c.bf16 %v2991, %v2990
        %v3007 = vpack.c.bf16 %v2993, %v2992
        %v3008 = vpack.c.bf16 %v2995, %v2994
        %v3009 = vpack.c.bf16 %v2997, %v2996
        %v3010 = vpack.c.bf16 %v2999, %v2998
        %v3011 = vpack.c.bf16 %v3001, %v3000
        %v3012 = vpack.c.bf16 %v3003, %v3002
        %v3013 = vpack.c.bf16 %v3005, %v3004
        %v3014 = vld [vmem:[#allocation23] sm:$0xf]
        %v3015 = vld [vmem:[#allocation23 + $0x4] sm:$0xf]
        %v3016 = vld [vmem:[#allocation23 + $0x8] sm:$0xf]
        %v3017 = vld [vmem:[#allocation23 + $0xc] sm:$0xf]
        %v3018 = vld [vmem:[#allocation23 + $0x10] sm:$0xf]
        %v3019 = vld [vmem:[#allocation23 + $0x14] sm:$0xf]
        %v3020 = vld [vmem:[#allocation23 + $0x18] sm:$0xf]
        %v3021 = vld [vmem:[#allocation23 + $0x1c] sm:$0xf]
        %v3022 = vld [vmem:[#allocation23 + $0x20] sm:$0xf]
        %v3023 = vld [vmem:[#allocation23 + $0x24] sm:$0xf]
        %v3024 = vld [vmem:[#allocation23 + $0x28] sm:$0xf]
        %v3025 = vld [vmem:[#allocation23 + $0x2c] sm:$0xf]
        %v3026 = vld [vmem:[#allocation23 + $0x30] sm:$0xf]
        %v3027 = vld [vmem:[#allocation23 + $0x34] sm:$0xf]
        %v3028 = vld [vmem:[#allocation23 + $0x38] sm:$0xf]
        %v3029 = vld [vmem:[#allocation23 + $0x3c] sm:$0xf]
        %v3046 = vunpack.c.l.b16 %v3014
        %v3047 = vunpack.c.l.b16 %v3015
        %v3048 = vunpack.c.l.b16 %v3016
        %v3049 = vunpack.c.l.b16 %v3017
        %v3050 = vunpack.c.l.b16 %v3018
        %v3051 = vunpack.c.l.b16 %v3019
        %v3052 = vunpack.c.l.b16 %v3020
        %v3053 = vunpack.c.l.b16 %v3021
        %v3054 = vunpack.c.l.b16 %v3022
        %v3055 = vunpack.c.l.b16 %v3023
        %v3056 = vunpack.c.l.b16 %v3024
        %v3057 = vunpack.c.l.b16 %v3025
        %v3058 = vunpack.c.l.b16 %v3026
        %v3059 = vunpack.c.l.b16 %v3027
        %v3060 = vunpack.c.l.b16 %v3028
        %v3061 = vunpack.c.l.b16 %v3029
        %v3062 = vpack.c.b16 %v3047, %v3046
        %v3063 = vpack.c.b16 %v3049, %v3048
        %v3064 = vpack.c.b16 %v3051, %v3050
        %v3065 = vpack.c.b16 %v3053, %v3052
        %v3066 = vpack.c.b16 %v3055, %v3054
        %v3067 = vpack.c.b16 %v3057, %v3056
        %v3068 = vpack.c.b16 %v3059, %v3058
        %v3069 = vpack.c.b16 %v3061, %v3060
        %3078 = vmatprep.subr.bf16.mxu0 0
        %3079 = vmatpush1.bf16.msra.mxu0 %v3062
        %3080 = vmatprep.subr.bf16.mxu0 0
        %3081 = vmatpush1.bf16.msra.mxu0 %v3063
        %3082 = vmatprep.subr.bf16.mxu0 0
        %3083 = vmatpush1.bf16.msra.mxu0 %v3064
        %3084 = vmatprep.subr.bf16.mxu0 0
        %3085 = vmatpush1.bf16.msra.mxu0 %v3065
        %3086 = vmatprep.subr.bf16.mxu0 0
        %3087 = vmatpush1.bf16.msra.mxu0 %v3066
        %3088 = vmatprep.subr.bf16.mxu0 0
        %3089 = vmatpush1.bf16.msra.mxu0 %v3067
        %3090 = vmatprep.subr.bf16.mxu0 0
        %3091 = vmatpush1.bf16.msra.mxu0 %v3068
        %3092 = vmatprep.subr.bf16.mxu0 0
        %3093 = vmatpush1.bf16.msra.mxu0 %v3069
        %3094 = vmatprep.subr.bf16.mxu0 0
        %3095 = vmatpush1.bf16.msra.mxu0 0
        %3096 = vmatprep.subr.bf16.mxu0 0
        %3097 = vmatpush1.bf16.msra.mxu0 0
        %3098 = vmatprep.subr.bf16.mxu0 0
        %3099 = vmatpush1.bf16.msra.mxu0 0
        %3100 = vmatprep.subr.bf16.mxu0 0
        %3101 = vmatpush1.bf16.msra.mxu0 0
        %3102 = vmatprep.subr.bf16.mxu0 0
        %3103 = vmatpush1.bf16.msra.mxu0 0
        %3104 = vmatprep.subr.bf16.mxu0 0
        %3105 = vmatpush1.bf16.msra.mxu0 0
        %3106 = vmatprep.subr.bf16.mxu0 0
        %3107 = vmatpush1.bf16.msra.mxu0 0
        %3108 = vmatprep.subr.bf16.mxu0 0
        %3109 = vmatpush1.bf16.msra.mxu0 0
        %3110 = vmatprep.mubr.bf16.mxu0 0
        %3111 = vmatmul.mubr.bf16.gmra.mrb[0].mxu0 %v3006
        %v3112 = vpop.f32.mrb[0].mxu0
        %v3113 = vpop.f32.mrb[0].mxu0
        %v3114 = vpop.f32.mrb[0].mxu0
        %v3115 = vpop.f32.mrb[0].mxu0
        %3116 = vmatprep.mubr.bf16.mxu0 0
        %3117 = vmatmul.mubr.bf16.gmra.mrb[0].mxu0 %v3007
        %v3118 = vpop.f32.mrb[0].mxu0
        %v3119 = vpop.f32.mrb[0].mxu0
        %v3120 = vpop.f32.mrb[0].mxu0
        %v3121 = vpop.f32.mrb[0].mxu0
        %3122 = vmatprep.mubr.bf16.mxu0 0
        %3123 = vmatmul.mubr.bf16.gmra.mrb[0].mxu0 %v3008
        %v3124 = vpop.f32.mrb[0].mxu0
        %v3125 = vpop.f32.mrb[0].mxu0
        %v3126 = vpop.f32.mrb[0].mxu0
        %v3127 = vpop.f32.mrb[0].mxu0
        %3128 = vmatprep.mubr.bf16.mxu0 0
        %3129 = vmatmul.mubr.bf16.gmra.mrb[0].mxu0 %v3009
        %v3130 = vpop.f32.mrb[0].mxu0
        %v3131 = vpop.f32.mrb[0].mxu0
        %v3132 = vpop.f32.mrb[0].mxu0
        %v3133 = vpop.f32.mrb[0].mxu0
        %3134 = vmatprep.mubr.bf16.mxu0 0
        %3135 = vmatmul.mubr.bf16.gmra.mrb[0].mxu0 %v3010
        %v3136 = vpop.f32.mrb[0].mxu0
        %v3137 = vpop.f32.mrb[0].mxu0
        %v3138 = vpop.f32.mrb[0].mxu0
        %v3139 = vpop.f32.mrb[0].mxu0
        %3140 = vmatprep.mubr.bf16.mxu0 0
        %3141 = vmatmul.mubr.bf16.gmra.mrb[0].mxu0 %v3011
        %v3142 = vpop.f32.mrb[0].mxu0
        %v3143 = vpop.f32.mrb[0].mxu0
        %v3144 = vpop.f32.mrb[0].mxu0
        %v3145 = vadd.f32 0.0, %v3144
        %v3146 = vpop.f32.mrb[0].mxu0
        %3147 = vmatprep.mubr.bf16.mxu0 0
        %3148 = vmatmul.mubr.bf16.gmra.mrb[0].mxu0 %v3012
        %v3149 = vpop.f32.mrb[0].mxu0
        %v3150 = vpop.f32.mrb[0].mxu0
        %v3151 = vpop.f32.mrb[0].mxu0
        %v3152 = vpop.f32.mrb[0].mxu0
        %3153 = vmatprep.mubr.bf16.mxu0 0
        %3154 = vmatmul.mubr.bf16.gmra.mrb[0].mxu0 %v3013
        %v3155 = vpop.f32.mrb[0].mxu0
        %v3156 = vpop.f32.mrb[0].mxu0
        %v3157 = vpop.f32.mrb[0].mxu0
        %v3158 = vpop.f32.mrb[0].mxu0
        %3159 = vdwg.mxu0
        %s3160 = scalar_lea.vmem [#allocation23], 64
        %v3161 = vld [vmem:[%s3160] sm:$0xf]
        %v3162 = vld [vmem:[%s3160 + $0x4] sm:$0xf]
        %v3163 = vld [vmem:[%s3160 + $0x8] sm:$0xf]
        %v3164 = vld [vmem:[%s3160 + $0xc] sm:$0xf]
        %v3165 = vld [vmem:[%s3160 + $0x10] sm:$0xf]
        %v3166 = vld [vmem:[%s3160 + $0x14] sm:$0xf]
        %v3167 = vld [vmem:[%s3160 + $0x18] sm:$0xf]
        %v3168 = vld [vmem:[%s3160 + $0x1c] sm:$0xf]
        %v3169 = vld [vmem:[%s3160 + $0x20] sm:$0xf]
        %v3170 = vld [vmem:[%s3160 + $0x24] sm:$0xf]
        %v3171 = vld [vmem:[%s3160 + $0x28] sm:$0xf]
        %v3172 = vld [vmem:[%s3160 + $0x2c] sm:$0xf]
        %v3173 = vld [vmem:[%s3160 + $0x30] sm:$0xf]
        %v3174 = vld [vmem:[%s3160 + $0x34] sm:$0xf]
        %v3175 = vld [vmem:[%s3160 + $0x38] sm:$0xf]
        %v3176 = vld [vmem:[%s3160 + $0x3c] sm:$0xf]
        %v3193 = vunpack.c.l.b16 %v3161
        %v3194 = vunpack.c.l.b16 %v3162
        %v3195 = vunpack.c.l.b16 %v3163
        %v3196 = vunpack.c.l.b16 %v3164
        %v3197 = vunpack.c.l.b16 %v3165
        %v3198 = vunpack.c.l.b16 %v3166
        %v3199 = vunpack.c.l.b16 %v3167
        %v3200 = vunpack.c.l.b16 %v3168
        %v3201 = vunpack.c.l.b16 %v3169
        %v3202 = vunpack.c.l.b16 %v3170
        %v3203 = vunpack.c.l.b16 %v3171
        %v3204 = vunpack.c.l.b16 %v3172
        %v3205 = vunpack.c.l.b16 %v3173
        %v3206 = vunpack.c.l.b16 %v3174
        %v3207 = vunpack.c.l.b16 %v3175
        %v3208 = vunpack.c.l.b16 %v3176
        %v3209 = vpack.c.b16 %v3194, %v3193
        %v3210 = vpack.c.b16 %v3196, %v3195
        %v3211 = vpack.c.b16 %v3198, %v3197
        %v3212 = vpack.c.b16 %v3200, %v3199
        %v3213 = vpack.c.b16 %v3202, %v3201
        %v3214 = vpack.c.b16 %v3204, %v3203
        %v3215 = vpack.c.b16 %v3206, %v3205
        %v3216 = vpack.c.b16 %v3208, %v3207
        %3225 = vmatprep.subr.bf16.mxu0 0
        %3226 = vmatpush1.bf16.msra.mxu0 %v3209
        %3227 = vmatprep.subr.bf16.mxu0 0
        %3228 = vmatpush1.bf16.msra.mxu0 %v3210
        %3229 = vmatprep.subr.bf16.mxu0 0
        %3230 = vmatpush1.bf16.msra.mxu0 %v3211
        %3231 = vmatprep.subr.bf16.mxu0 0
        %3232 = vmatpush1.bf16.msra.mxu0 %v3212
        %3233 = vmatprep.subr.bf16.mxu0 0
        %3234 = vmatpush1.bf16.msra.mxu0 %v3213
        %3235 = vmatprep.subr.bf16.mxu0 0
        %3236 = vmatpush1.bf16.msra.mxu0 %v3214
        %3237 = vmatprep.subr.bf16.mxu0 0
        %3238 = vmatpush1.bf16.msra.mxu0 %v3215
        %3239 = vmatprep.subr.bf16.mxu0 0
        %3240 = vmatpush1.bf16.msra.mxu0 %v3216
        %3241 = vmatprep.subr.bf16.mxu0 0
        %3242 = vmatpush1.bf16.msra.mxu0 0
        %3243 = vmatprep.subr.bf16.mxu0 0
        %3244 = vmatpush1.bf16.msra.mxu0 0
        %3245 = vmatprep.subr.bf16.mxu0 0
        %3246 = vmatpush1.bf16.msra.mxu0 0
        %3247 = vmatprep.subr.bf16.mxu0 0
        %3248 = vmatpush1.bf16.msra.mxu0 0
        %3249 = vmatprep.subr.bf16.mxu0 0
        %3250 = vmatpush1.bf16.msra.mxu0 0
        %3251 = vmatprep.subr.bf16.mxu0 0
        %3252 = vmatpush1.bf16.msra.mxu0 0
        %3253 = vmatprep.subr.bf16.mxu0 0
        %3254 = vmatpush1.bf16.msra.mxu0 0
        %3255 = vmatprep.subr.bf16.mxu0 0
        %3256 = vmatpush1.bf16.msra.mxu0 0
        %3257 = vmatprep.mubr.bf16.mxu0 0
        %3258 = vmatmul.mubr.bf16.gmra.mrb[0].mxu0 %v3006
        %v3259 = vpop.f32.mrb[0].mxu0
        %v3260 = vpop.f32.mrb[0].mxu0
        %v3261 = vpop.f32.mrb[0].mxu0
        %v3262 = vpop.f32.mrb[0].mxu0
        %3263 = vmatprep.mubr.bf16.mxu0 0
        %3264 = vmatmul.mubr.bf16.gmra.mrb[0].mxu0 %v3007
        %v3265 = vpop.f32.mrb[0].mxu0
        %v3266 = vpop.f32.mrb[0].mxu0
        %v3267 = vpop.f32.mrb[0].mxu0
        %v3268 = vpop.f32.mrb[0].mxu0
        %3269 = vmatprep.mubr.bf16.mxu0 0
        %3270 = vmatmul.mubr.bf16.gmra.mrb[0].mxu0 %v3008
        %v3271 = vpop.f32.mrb[0].mxu0
        %v3272 = vpop.f32.mrb[0].mxu0
        %v3273 = vpop.f32.mrb[0].mxu0
        %v3274 = vpop.f32.mrb[0].mxu0
        %3275 = vmatprep.mubr.bf16.mxu0 0
        %3276 = vmatmul.mubr.bf16.gmra.mrb[0].mxu0 %v3009
        %v3277 = vpop.f32.mrb[0].mxu0
        %v3278 = vpop.f32.mrb[0].mxu0
        %v3279 = vpop.f32.mrb[0].mxu0
        %v3280 = vpop.f32.mrb[0].mxu0
        %3281 = vmatprep.mubr.bf16.mxu0 0
        %3282 = vmatmul.mubr.bf16.gmra.mrb[0].mxu0 %v3010
        %v3283 = vpop.f32.mrb[0].mxu0
        %v3284 = vpop.f32.mrb[0].mxu0
        %v3285 = vpop.f32.mrb[0].mxu0
        %v3286 = vpop.f32.mrb[0].mxu0
        %3287 = vmatprep.mubr.bf16.mxu0 0
        %3288 = vmatmul.mubr.bf16.gmra.mrb[0].mxu0 %v3011
        %v3289 = vpop.f32.mrb[0].mxu0
        %v3290 = vpop.f32.mrb[0].mxu0
        %v3291 = vpop.f32.mrb[0].mxu0
        %v3292 = vpop.f32.mrb[0].mxu0
        %3293 = vmatprep.mubr.bf16.mxu0 0
        %3294 = vmatmul.mubr.bf16.gmra.mrb[0].mxu0 %v3012
        %v3295 = vpop.f32.mrb[0].mxu0
        %v3296 = vpop.f32.mrb[0].mxu0
        %v3297 = vpop.f32.mrb[0].mxu0
        %v3298 = vpop.f32.mrb[0].mxu0
        %3299 = vmatprep.mubr.bf16.mxu0 0
        %3300 = vmatmul.mubr.bf16.gmra.mrb[0].mxu0 %v3013
        %v3301 = vpop.f32.mrb[0].mxu0
        %v3302 = vpop.f32.mrb[0].mxu0
        %v3303 = vpop.f32.mrb[0].mxu0
        %v3304 = vadd.f32 0.0, %v3303
        %v3305 = vpop.f32.mrb[0].mxu0
        %3306 = vdwg.mxu0
        %v3307 = vadd.f32 %v3145, %v3304
        %v3308 = vld [vmem:[#allocation25] sm:$0x1]
        %v3310 = vlaneseq
        %v3311 = vshrl.u32 %v3310, 7
        %v3312 = vsub.s32 0, %v3311
        %v3313 = vrot.slane %v3308, %v3312
        %v3315 = vadd.f32 %v3307, %v3313
        %v3316 = vmax.f32 %v3315, 0.0
        %v3317 = vld [vmem:[#allocation26] sm:$0xf]
        %v3318 = vld [vmem:[#allocation26 + $0x4] sm:$0xf]
        %v3319 = vld [vmem:[#allocation26 + $0x8] sm:$0xf]
        %v3320 = vld [vmem:[#allocation26 + $0xc] sm:$0xf]
        %v3321 = vld [vmem:[#allocation26 + $0x10] sm:$0xf]
        %v3322 = vld [vmem:[#allocation26 + $0x14] sm:$0xf]
        %v3323 = vld [vmem:[#allocation26 + $0x18] sm:$0xf]
        %v3324 = vld [vmem:[#allocation26 + $0x1c] sm:$0xf]
        %v3325 = vld [vmem:[#allocation26 + $0x20] sm:$0xf]
        %v3326 = vld [vmem:[#allocation26 + $0x24] sm:$0xf]
        %v3327 = vld [vmem:[#allocation26 + $0x28] sm:$0xf]
        %v3328 = vld [vmem:[#allocation26 + $0x2c] sm:$0xf]
        %v3329 = vld [vmem:[#allocation26 + $0x30] sm:$0xf]
        %v3330 = vld [vmem:[#allocation26 + $0x34] sm:$0xf]
        %v3331 = vld [vmem:[#allocation26 + $0x38] sm:$0xf]
        %v3332 = vld [vmem:[#allocation26 + $0x3c] sm:$0xf]
        %v3333 = vld [vmem:[#allocation28] sm:$0x1]
        %v3335 = vlaneseq
        %v3336 = vshrl.u32 %v3335, 7
        %v3337 = vsub.s32 0, %v3336
        %v3338 = vrot.slane %v3333, %v3337
        %v3356 = vunpack.c.l.b16 %v3317
        %v3357 = vunpack.c.l.b16 %v3318
        %v3358 = vunpack.c.l.b16 %v3319
        %v3359 = vunpack.c.l.b16 %v3320
        %v3360 = vunpack.c.l.b16 %v3321
        %v3361 = vunpack.c.l.b16 %v3322
        %v3362 = vunpack.c.l.b16 %v3323
        %v3363 = vunpack.c.l.b16 %v3324
        %v3364 = vunpack.c.l.b16 %v3325
        %v3365 = vunpack.c.l.b16 %v3326
        %v3366 = vunpack.c.l.b16 %v3327
        %v3367 = vunpack.c.l.b16 %v3328
        %v3368 = vunpack.c.l.b16 %v3329
        %v3369 = vunpack.c.l.b16 %v3330
        %v3370 = vunpack.c.l.b16 %v3331
        %v3371 = vunpack.c.l.b16 %v3332
        %v3372 = vpack.c.b16 %v3357, %v3356
        %v3373 = vpack.c.b16 %v3359, %v3358
        %v3374 = vpack.c.b16 %v3361, %v3360
        %v3375 = vpack.c.b16 %v3363, %v3362
        %v3376 = vpack.c.b16 %v3365, %v3364
        %v3377 = vpack.c.b16 %v3367, %v3366
        %v3378 = vpack.c.b16 %v3369, %v3368
        %v3379 = vpack.c.b16 %v3371, %v3370
        %3388 = vmatprep.subr.bf16.mxu0 0
        %3389 = vmatpush1.bf16.msra.mxu0 %v3372
        %3390 = vmatprep.subr.bf16.mxu0 0
        %3391 = vmatpush1.bf16.msra.mxu0 %v3373
        %3392 = vmatprep.subr.bf16.mxu0 0
        %3393 = vmatpush1.bf16.msra.mxu0 %v3374
        %3394 = vmatprep.subr.bf16.mxu0 0
        %3395 = vmatpush1.bf16.msra.mxu0 %v3375
        %3396 = vmatprep.subr.bf16.mxu0 0
        %3397 = vmatpush1.bf16.msra.mxu0 %v3376
        %3398 = vmatprep.subr.bf16.mxu0 0
        %3399 = vmatpush1.bf16.msra.mxu0 %v3377
        %3400 = vmatprep.subr.bf16.mxu0 0
        %3401 = vmatpush1.bf16.msra.mxu0 %v3378
        %3402 = vmatprep.subr.bf16.mxu0 0
        %3403 = vmatpush1.bf16.msra.mxu0 %v3379
        %3404 = vmatprep.subr.bf16.mxu0 0
        %3405 = vmatpush1.bf16.msra.mxu0 0
        %3406 = vmatprep.subr.bf16.mxu0 0
        %3407 = vmatpush1.bf16.msra.mxu0 0
        %3408 = vmatprep.subr.bf16.mxu0 0
        %3409 = vmatpush1.bf16.msra.mxu0 0
        %3410 = vmatprep.subr.bf16.mxu0 0
        %3411 = vmatpush1.bf16.msra.mxu0 0
        %3412 = vmatprep.subr.bf16.mxu0 0
        %3413 = vmatpush1.bf16.msra.mxu0 0
        %3414 = vmatprep.subr.bf16.mxu0 0
        %3415 = vmatpush1.bf16.msra.mxu0 0
        %3416 = vmatprep.subr.bf16.mxu0 0
        %3417 = vmatpush1.bf16.msra.mxu0 0
        %3418 = vmatprep.subr.bf16.mxu0 0
        %3419 = vmatpush1.bf16.msra.mxu0 0
        %3420 = vmatprep.mubr.bf16.mxu0 0
        %3421 = vmatmul.mubr.bf16.gmra.mrb[0].mxu0 %v2624
        %v3422 = vpop.f32.mrb[0].mxu0
        %v3423 = vpop.f32.mrb[0].mxu0
        %v3424 = vpop.f32.mrb[0].mxu0
        %v3425 = vpop.f32.mrb[0].mxu0
        %3426 = vmatprep.mubr.bf16.mxu0 0
        %3427 = vmatmul.mubr.bf16.gmra.mrb[0].mxu0 %v2625
        %v3428 = vpop.f32.mrb[0].mxu0
        %v3429 = vpop.f32.mrb[0].mxu0
        %v3430 = vpop.f32.mrb[0].mxu0
        %v3431 = vpop.f32.mrb[0].mxu0
        %3432 = vmatprep.mubr.bf16.mxu0 0
        %3433 = vmatmul.mubr.bf16.gmra.mrb[0].mxu0 %v2626
        %v3434 = vpop.f32.mrb[0].mxu0
        %v3435 = vpop.f32.mrb[0].mxu0
        %v3436 = vpop.f32.mrb[0].mxu0
        %v3437 = vpop.f32.mrb[0].mxu0
        %3438 = vmatprep.mubr.bf16.mxu0 0
        %3439 = vmatmul.mubr.bf16.gmra.mrb[0].mxu0 %v2627
        %v3440 = vpop.f32.mrb[0].mxu0
        %v3441 = vpop.f32.mrb[0].mxu0
        %v3442 = vpop.f32.mrb[0].mxu0
        %v3443 = vpop.f32.mrb[0].mxu0
        %3444 = vmatprep.mubr.bf16.mxu0 0
        %3445 = vmatmul.mubr.bf16.gmra.mrb[0].mxu0 %v2628
        %v3446 = vpop.f32.mrb[0].mxu0
        %v3447 = vpop.f32.mrb[0].mxu0
        %v3448 = vpop.f32.mrb[0].mxu0
        %v3449 = vpop.f32.mrb[0].mxu0
        %3450 = vmatprep.mubr.bf16.mxu0 0
        %3451 = vmatmul.mubr.bf16.gmra.mrb[0].mxu0 %v2629
        %v3452 = vpop.f32.mrb[0].mxu0
        %v3453 = vpop.f32.mrb[0].mxu0
        %v3454 = vpop.f32.mrb[0].mxu0
        %v3455 = vpop.f32.mrb[0].mxu0
        %3456 = vmatprep.mubr.bf16.mxu0 0
        %3457 = vmatmul.mubr.bf16.gmra.mrb[0].mxu0 %v2630
        %v3458 = vpop.f32.mrb[0].mxu0
        %v3459 = vpop.f32.mrb[0].mxu0
        %v3460 = vpop.f32.mrb[0].mxu0
        %v3461 = vpop.f32.mrb[0].mxu0
        %3462 = vmatprep.mubr.bf16.mxu0 0
        %3463 = vmatmul.mubr.bf16.gmra.mrb[0].mxu0 %v2631
        %v3464 = vpop.f32.mrb[0].mxu0
        %v3465 = vpop.f32.mrb[0].mxu0
        %v3466 = vpop.f32.mrb[0].mxu0
        %v3467 = vadd.f32 %v3338, %v3466
        %v3468 = vpop.f32.mrb[0].mxu0
        %3469 = vdwg.mxu0
        %v3470 = vadd.f32 %v3316, %v3467
        %v3471 = vmax.f32 %v3470, 0.0
        %v3472 = vpack.c.bf16 %v3471, %v3471
        %v3473 = vld [vmem:[%s17] sm:$0xf]
        %v3474 = vld [vmem:[%s17 + $0x4] sm:$0xf]
        %v3475 = vld [vmem:[%s17 + $0x8] sm:$0xf]
        %v3476 = vld [vmem:[%s17 + $0xc] sm:$0xf]
        %v3477 = vld [vmem:[%s17 + $0x10] sm:$0xf]
        %v3478 = vld [vmem:[%s17 + $0x14] sm:$0xf]
        %v3479 = vld [vmem:[%s17 + $0x18] sm:$0xf]
        %v3480 = vld [vmem:[%s17 + $0x1c] sm:$0xf]
        %v3481 = vld [vmem:[%s17 + $0x20] sm:$0xf]
        %v3482 = vld [vmem:[%s17 + $0x24] sm:$0xf]
        %v3483 = vld [vmem:[%s17 + $0x28] sm:$0xf]
        %v3484 = vld [vmem:[%s17 + $0x2c] sm:$0xf]
        %v3485 = vld [vmem:[%s17 + $0x30] sm:$0xf]
        %v3486 = vld [vmem:[%s17 + $0x34] sm:$0xf]
        %v3487 = vld [vmem:[%s17 + $0x38] sm:$0xf]
        %v3488 = vld [vmem:[%s17 + $0x3c] sm:$0xf]
        %v3489 = vld [vmem:[%s18] sm:$0x1]
        %v3491 = vlaneseq
        %v3492 = vshrl.u32 %v3491, 7
        %v3493 = vsub.s32 0, %v3492
        %v3494 = vrot.slane %v3489, %v3493
        %v3512 = vunpack.c.l.b16 %v3473
        %v3513 = vunpack.c.l.b16 %v3474
        %v3514 = vunpack.c.l.b16 %v3475
        %v3515 = vunpack.c.l.b16 %v3476
        %v3516 = vunpack.c.l.b16 %v3477
        %v3517 = vunpack.c.l.b16 %v3478
        %v3518 = vunpack.c.l.b16 %v3479
        %v3519 = vunpack.c.l.b16 %v3480
        %v3520 = vunpack.c.l.b16 %v3481
        %v3521 = vunpack.c.l.b16 %v3482
        %v3522 = vunpack.c.l.b16 %v3483
        %v3523 = vunpack.c.l.b16 %v3484
        %v3524 = vunpack.c.l.b16 %v3485
        %v3525 = vunpack.c.l.b16 %v3486
        %v3526 = vunpack.c.l.b16 %v3487
        %v3527 = vunpack.c.l.b16 %v3488
        %v3528 = vpack.c.b16 %v3513, %v3512
        %v3529 = vpack.c.b16 %v3515, %v3514
        %v3530 = vpack.c.b16 %v3517, %v3516
        %v3531 = vpack.c.b16 %v3519, %v3518
        %v3532 = vpack.c.b16 %v3521, %v3520
        %v3533 = vpack.c.b16 %v3523, %v3522
        %v3534 = vpack.c.b16 %v3525, %v3524
        %v3535 = vpack.c.b16 %v3527, %v3526
        %3544 = vmatprep.subr.bf16.mxu0 0
        %3545 = vmatpush1.bf16.msra.mxu0 %v3528
        %3546 = vmatprep.subr.bf16.mxu0 0
        %3547 = vmatpush1.bf16.msra.mxu0 %v3529
        %3548 = vmatprep.subr.bf16.mxu0 0
        %3549 = vmatpush1.bf16.msra.mxu0 %v3530
        %3550 = vmatprep.subr.bf16.mxu0 0
        %3551 = vmatpush1.bf16.msra.mxu0 %v3531
        %3552 = vmatprep.subr.bf16.mxu0 0
        %3553 = vmatpush1.bf16.msra.mxu0 %v3532
        %3554 = vmatprep.subr.bf16.mxu0 0
        %3555 = vmatpush1.bf16.msra.mxu0 %v3533
        %3556 = vmatprep.subr.bf16.mxu0 0
        %3557 = vmatpush1.bf16.msra.mxu0 %v3534
        %3558 = vmatprep.subr.bf16.mxu0 0
        %3559 = vmatpush1.bf16.msra.mxu0 %v3535
        %3560 = vmatprep.subr.bf16.mxu0 0
        %3561 = vmatpush1.bf16.msra.mxu0 0
        %3562 = vmatprep.subr.bf16.mxu0 0
        %3563 = vmatpush1.bf16.msra.mxu0 0
        %3564 = vmatprep.subr.bf16.mxu0 0
        %3565 = vmatpush1.bf16.msra.mxu0 0
        %3566 = vmatprep.subr.bf16.mxu0 0
        %3567 = vmatpush1.bf16.msra.mxu0 0
        %3568 = vmatprep.subr.bf16.mxu0 0
        %3569 = vmatpush1.bf16.msra.mxu0 0
        %3570 = vmatprep.subr.bf16.mxu0 0
        %3571 = vmatpush1.bf16.msra.mxu0 0
        %3572 = vmatprep.subr.bf16.mxu0 0
        %3573 = vmatpush1.bf16.msra.mxu0 0
        %3574 = vmatprep.subr.bf16.mxu0 0
        %3575 = vmatpush1.bf16.msra.mxu0 0
        %3576 = vmatprep.mubr.bf16.mxu0 0
        %3577 = vmatmul.mubr.bf16.gmra.mrb[0].mxu0 %v3472
        %v3578 = vpop.f32.mrb[0].mxu0
        %v3579 = vadd.f32 %v3494, %v3578
        %v3580 = vpop.f32.mrb[0].mxu0
        %v3581 = vpop.f32.mrb[0].mxu0
        %v3582 = vpop.f32.mrb[0].mxu0
        %3583 = vdwg.mxu0
        %3584 = vst [vmem:[%s836] sm:$0xff] %v3579
        %s3585 = sand.u32 %s456, 1
        %s3586 = scalar_lea.sflag [#allocation4], %s3585
        %s3587 = sand.u32 %s456, 1
        %s3588 = smul.addr %s3587, 8
        %s3589 = scalar_lea.vmem [#allocation29], %s3588
        // Predicated region
        $region165: #{tpu_custom_call.1} parent=95 // pred_check
          %p3590 = pneg %p466
        $region166: #{tpu_custom_call.1} parent=95 // pred_check_branch
          %3592 = sbr.rel (%p3590) target = $region168
        $region167: #{tpu_custom_call.1} parent=95 // pred_region
          %s3594 = ssub.s32 128, 128
          %3595 = vsyncadd %s3586, %s3594
          %s3596 = smul.addr %s44, 128
          %s3597 = scalar_lea.hbm %s19, %s3596
          %s3599 = sshll.u32 %s3589, 4
          %s3600 = int_to_ptr.vmem [resolvable:$true] %s3599
          %3602 = dma.vmem_to_hbm [thread:$0]  %s3600, 128, %s3597, %s3586
        $region168: #{tpu_custom_call.1} parent=95 // pred_fallthru
          _
      $region96: #{tpu_custom_call.1} parent=5 // pred_fallthru
        _
      %p3603 = scmp.le.s32.totalorder 2, %s39
      // Predicated region
      $region169: #{tpu_custom_call.1} parent=5 // pred_check
        %p3604 = pneg %p3603
      $region170: #{tpu_custom_call.1} parent=5 // pred_check_branch
        %3606 = sbr.rel (%p3604) target = $region172
      $region171: #{tpu_custom_call.1} parent=5 // pred_region
        %s3607 = ssub.s32 %s39, 2
        // Predicated region
        $region173: #{tpu_custom_call.1} parent=171 // pred_check
          %p3608 = pneg %p472
        $region174: #{tpu_custom_call.1} parent=171 // pred_check_branch
          %3610 = sbr.rel (%p3608) target = $region176
        $region175: #{tpu_custom_call.1} parent=171 // pred_region
          %s3611 = sand.u32 %s457, 1
          %s3612 = scalar_lea.sflag [#allocation4], %s3611
          %s3613 = sand.u32 %s457, 1
          %s3614 = smul.addr %s3613, 8
          %s3615 = scalar_lea.vmem [#allocation29], %s3614
          %3616 = dma.done %s3612, 128
        $region176: #{tpu_custom_call.1} parent=171 // pred_fallthru
          _
      $region172: #{tpu_custom_call.1} parent=5 // pred_fallthru
        _
    $region6: #{tpu_custom_call.1} parent=1 // loop_footer
      %s43 = sadd.s32 1, %s39
    $region7: #{tpu_custom_call.1} parent=1 // loop_footer_branch
      %38 = sbr.rel target = $region3
    $region8: #{tpu_custom_call.1} parent=1 // loop_exit
      _
    %3617 = vsyncpa [#allocation3], 1
    %s3618 = scalar_lea.sflag [#allocation3], 1
    %3619 = vsyncpa %s3618, 1
    %3620 = vsyncpa [#allocation6], 1
    %3621 = vsyncpa [#allocation9], 1
    %3622 = vsyncpa [#allocation12], 1
    %3623 = vsyncpa [#allocation15], 1
    %3624 = vsyncpa [#allocation18], 1
    %3625 = vsyncpa [#allocation21], 1
    %3626 = vsyncpa [#allocation24], 1
    %3627 = vsyncpa [#allocation27], 1
    %3628 = vsyncpa [#allocation4], 1
    %s3629 = scalar_lea.sflag [#allocation4], 1
    %3630 = vsyncpa %s3629, 1

</llo_original>
